<compile_context>
chip_gen: v5e
topology: v5e:2x2
jax: 0.10.0
libtpu: 0.0.40
codegen_flags: <defaults>
</compile_context>

<pallas_src>
import math
import functools

import numpy as np
import jax
import jax.numpy as jnp
from jax import lax
from jax.experimental import pallas as pl
from jax.experimental.pallas import tpu as pltpu

INF = 1.0e9
LN_EPS = 1e-5                     # torch.nn.LayerNorm / openfold LayerNorm default
VMEM_LIMIT = 48 * 1024 * 1024     # safe on v5e/v6e (128 MiB phys) and v7x (64 MiB)


def _ln(x, eps=LN_EPS):
    """LayerNorm over the last axis in f32, no affine (affine applied by caller)."""
    x = x.astype(jnp.float32)
    mu = jnp.mean(x, axis=-1, keepdims=True)
    var = jnp.mean(jnp.square(x - mu), axis=-1, keepdims=True)
    return (x - mu) * lax.rsqrt(var + eps)


def _adaln(x, c, ln_s_w, w_gamma, b_gamma, w_beta, cdt):
    """AdaLN (Algorithm 26): LN(x)*sigmoid(Lin(LN_w(c))) + Lin(LN_w(c)).

    LN statistics stay in f32; only the matmul operands are in compute dtype
    (weights arrive pre-cast from the wrapper)."""
    x_ln = _ln(x)
    c_ln = (_ln(c) * ln_s_w).astype(cdt)
    gamma = jax.nn.sigmoid(
        jnp.dot(c_ln, w_gamma, preferred_element_type=jnp.float32) + b_gamma)
    beta = jnp.dot(c_ln, w_beta, preferred_element_type=jnp.float32)
    return x_ln * gamma + beta


# ---------------------------------------------------------------------------
# Kernel P: AdaLN + fused Q|K|V|G projection, once per row.
# grid = (B, I // ti)
# ---------------------------------------------------------------------------
def adaln_qkvg_kernel(
    a_ref, s_ref,
    ln_s_w_ref, w_gamma_ref, b_gamma_ref, w_beta_ref, w_qkvg_ref, b_q_ref,
    q_out_ref, k_out_ref, v_out_ref, g_out_ref,
    *, no_heads, c_hidden, compute_dtype):
    H, D = no_heads, c_hidden
    HD = H * D
    cdt = compute_dtype
    scale = 1.0 / math.sqrt(D)

    a_hat = _adaln(a_ref[0], s_ref[0], ln_s_w_ref[...],
                   w_gamma_ref[...], b_gamma_ref[...], w_beta_ref[...], cdt)
    # single fused MXU pass over a_hat for all four projections
    qkvg = jnp.dot(a_hat.astype(cdt), w_qkvg_ref[...],
                   preferred_element_type=jnp.float32)          # [ti, 4*HD]
    q = (qkvg[:, :HD] + b_q_ref[...]) * scale                   # pre-scaled q
    k = qkvg[:, HD:2 * HD]
    v = qkvg[:, 2 * HD:3 * HD]
    g_out_ref[0] = jax.nn.sigmoid(qkvg[:, 3 * HD:])             # pre-sigmoided gate
    # head-major writeback; this relayout happens ONCE per element here instead
    # of once per (qi, kj) grid step inside the attention inner loop.
    for h in range(H):
        sl = slice(h * D, (h + 1) * D)
        q_out_ref[0, h] = q[:, sl].astype(q_out_ref.dtype)
        k_out_ref[0, h] = k[:, sl].astype(k_out_ref.dtype)
        v_out_ref[0, h] = v[:, sl].astype(v_out_ref.dtype)


# ---------------------------------------------------------------------------
# Kernel A: pair bias  bias^T = linear_z(LayerNorm(z))^T  -> [B, H, I*J]
# grid = (B, (I*J) // R);  lane-dense store, no HBM transpose needed.
# ---------------------------------------------------------------------------
def pair_bias_kernel(z_ref, ln_w_ref, ln_b_ref, wz_ref, out_ref, *, compute_dtype):
    z = z_ref[0]                                                # [R, C_z], native dtype
    z_ln = _ln(z) * ln_w_ref[...] + ln_b_ref[...]               # LN stats in f32
    # bias^T = w_z [H, C_z] . z_ln^T  ->  [H, R]   (q@k^T-style NT matmul,
    # output already in the head-major layout kernel B consumes)
    bias_t = lax.dot_general(
        wz_ref[...], z_ln.astype(compute_dtype),
        dimension_numbers=(((1,), (1,)), ((), ())),
        preferred_element_type=jnp.float32)
    out_ref[0] = bias_t.astype(out_ref.dtype)


# ---------------------------------------------------------------------------
# Kernel B: pair-biased flash attention over pre-projected Q/K/V/G.
# grid = (B, I // tq, J // tk);  key-tile axis (last) is the reduction axis.
# ---------------------------------------------------------------------------
def attention_pair_bias_kernel(
    q_ref, k_ref, v_ref, g_ref, bias_ref, mk_ref, mq_ref, s_ref,
    w_o_ref, w_s_ref, b_s_ref,
    out_ref,
    m_scr, l_scr, acc_scr,
    *, no_heads, compute_dtype, approx_recip):
    H = no_heads
    cdt = compute_dtype
    kj = pl.program_id(2)

    @pl.when(kj == 0)
    def _init():
        m_scr[...] = jnp.full(m_scr.shape, -jnp.inf, jnp.float32)
        l_scr[...] = jnp.zeros(l_scr.shape, jnp.float32)
        acc_scr[...] = jnp.zeros(acc_scr.shape, jnp.float32)

    # head-batched logits + pair bias + additive key mask.
    # NOTE: rows whose keys are ALL masked get logits ~ -1e9 (not -inf), so the
    # online softmax stays finite (near-uniform) exactly like the reference's
    # additive-mask softmax; the query mask zeroes those rows at the end.
    logits = jnp.einsum('hqd,hkd->hqk', q_ref[0], k_ref[0],
                        preferred_element_type=jnp.float32)     # [H, tq, tk]
    logits = (logits + bias_ref[0].astype(jnp.float32)
              + INF * (mk_ref[...] - 1.0))

    # online softmax accumulation over key tiles (f32 state)
    m_prev = m_scr[...]
    m_new = jnp.maximum(m_prev, jnp.max(logits, axis=-1, keepdims=True))
    alpha = jnp.exp(m_prev - m_new)
    p = jnp.exp(logits - m_new)
    l_scr[...] = alpha * l_scr[...] + jnp.sum(p, axis=-1, keepdims=True)
    acc_scr[...] = alpha * acc_scr[...] + jnp.einsum(
        'hqk,hkd->hqd', p.astype(cdt), v_ref[0],
        preferred_element_type=jnp.float32)
    m_scr[...] = m_new

    # finalize on the last key tile
    @pl.when(kj == pl.num_programs(2) - 1)
    def _finalize():
        inv_l = pl.reciprocal(l_scr[...], approx=approx_recip)   # EUP slot
        o_h = acc_scr[...] * inv_l                               # [H, tq, D]
        o = jnp.concatenate([o_h[h] for h in range(H)], axis=-1)  # [tq, HD]
        o = o * g_ref[0]                                         # sigmoid(linear_g) gate
        o = jnp.dot(o.astype(cdt), w_o_ref[...],
                    preferred_element_type=jnp.float32)          # [tq, C_a]
        o = o * mq_ref[0]                                        # single-mask
        gate = jax.nn.sigmoid(
            jnp.dot(s_ref[0].astype(cdt), w_s_ref[...],
                    preferred_element_type=jnp.float32) + b_s_ref[...])
        out_ref[0] = (o * gate).astype(out_ref.dtype)


def _pick_tile(n, cap, mult):
    """Largest t <= cap with n % t == 0 and t % mult == 0; else the full dim.

    NOTE: if no divisor satisfies the multiple constraint this falls back to the
    full dimension (always correct; for huge awkward sizes pick tiles/pad in the
    caller so the per-step bias block stays within the VMEM budget)."""
    if n <= cap:
        return n
    for t in range(cap, 0, -1):
        if n % t == 0 and t % mult == 0:
            return t
    return n


def attention_pair_bias(a, s, z, mask, params, no_heads, c_hidden,
                        compute_dtype=jnp.float32, tq_cap=256, tk_cap=256):
    # tq_cap/tk_cap: 256 is good for v6e/v7x; use 128 on v5e (native 4x128^2 MXU).
    (ln_s_w, w_gamma, b_gamma, w_beta, ln_z_w, ln_z_b, w_z,
     w_q, b_q, w_k, w_v, w_g, w_o, w_s, b_s) = params
    B, I, C_a = a.shape
    C_s = s.shape[-1]
    J, C_z = z.shape[2], z.shape[3]
    assert z.shape[:2] == (B, I) and J == I, "self-attention expects J == I"
    H, D = no_heads, c_hidden
    HD = H * D
    cdt = compute_dtype

    # pre-cast weights ONCE in the wrapper (no per-step casts inside kernels)
    w_qkvg = jnp.concatenate([w_q, w_k, w_v, w_g], axis=1).astype(cdt)
    w_gamma_c = w_gamma.astype(cdt)
    w_beta_c = w_beta.astype(cdt)
    w_z_c = w_z.astype(cdt)
    w_o_c = w_o.astype(cdt)
    w_s_c = w_s.astype(cdt)

    # --------- kernel P: AdaLN + fused Q|K|V|G projection (once per row) ---------
    ti = _pick_tile(I, 256, 8)
    q_hm, k_hm, v_hm, g_flat = pl.pallas_call(
        functools.partial(adaln_qkvg_kernel, no_heads=H, c_hidden=D,
                          compute_dtype=cdt),
        out_shape=(
            jax.ShapeDtypeStruct((B, H, I, D), cdt),       # q (scaled, +bias)
            jax.ShapeDtypeStruct((B, H, I, D), cdt),       # k
            jax.ShapeDtypeStruct((B, H, I, D), cdt),       # v
            jax.ShapeDtypeStruct((B, I, HD), jnp.float32),  # sigmoid(g), lane-dense
        ),
        grid=(B, I // ti),
        in_specs=[
            pl.BlockSpec((1, ti, C_a), lambda b, i: (b, i, 0)),
            pl.BlockSpec((1, ti, C_s), lambda b, i: (b, i, 0)),
            pl.BlockSpec((1, C_s), lambda b, i: (0, 0)),
            pl.BlockSpec((C_s, C_a), lambda b, i: (0, 0)),
            pl.BlockSpec((1, C_a), lambda b, i: (0, 0)),
            pl.BlockSpec((C_s, C_a), lambda b, i: (0, 0)),
            pl.BlockSpec((C_a, 4 * HD), lambda b, i: (0, 0)),
            pl.BlockSpec((1, HD), lambda b, i: (0, 0)),
        ],
        out_specs=(
            pl.BlockSpec((1, H, ti, D), lambda b, i: (b, 0, i, 0)),
            pl.BlockSpec((1, H, ti, D), lambda b, i: (b, 0, i, 0)),
            pl.BlockSpec((1, H, ti, D), lambda b, i: (b, 0, i, 0)),
            pl.BlockSpec((1, ti, HD), lambda b, i: (b, i, 0)),
        ),
        compiler_params=pltpu.CompilerParams(
            dimension_semantics=("parallel", "parallel"),
            vmem_limit_bytes=VMEM_LIMIT),
    )(a, s, ln_s_w, w_gamma_c, b_gamma, w_beta_c, w_qkvg, b_q)

    # --------- kernel A: pair bias, lane-dense [B, H, I*J] (free reshape) ---------
    N = I * J
    R = _pick_tile(N, 2048, 128)
    bias_dtype = jnp.float32 if cdt == jnp.float32 else jnp.bfloat16
    z_flat = z.reshape(B, N, C_z)                  # metadata-only reshape
    zbias_flat = pl.pallas_call(
        functools.partial(pair_bias_kernel, compute_dtype=cdt),
        out_shape=jax.ShapeDtypeStruct((B, H, N), bias_dtype),
        grid=(B, N // R),
        in_specs=[
            pl.BlockSpec((1, R, C_z), lambda b, r: (b, r, 0)),
            pl.BlockSpec((1, C_z), lambda b, r: (0, 0)),
            pl.BlockSpec((1, C_z), lambda b, r: (0, 0)),
            pl.BlockSpec((H, C_z), lambda b, r: (0, 0)),
        ],
        out_specs=pl.BlockSpec((1, H, R), lambda b, r: (b, 0, r)),
        compiler_params=pltpu.CompilerParams(
            dimension_semantics=("parallel", "parallel"),
            vmem_limit_bytes=VMEM_LIMIT),
    )(z_flat, ln_z_w, ln_z_b, w_z_c)
    # [B, H, I*J] -> [B, H, I, J]: contiguous split, NO HBM transpose pass.
    zbias = zbias_flat.reshape(B, H, I, J)

    # --------- kernel B: flash attention over pre-projected Q/K/V/G ---------
    tq = _pick_tile(I, tq_cap, 8)
    tk = _pick_tile(J, tk_cap, 128)
    n_qt, n_kt = I // tq, J // tk

    mask_k = mask.reshape(B, 1, J).astype(jnp.float32)
    mask_q = mask.reshape(B, I, 1).astype(jnp.float32)

    kernel = functools.partial(
        attention_pair_bias_kernel, no_heads=H, compute_dtype=cdt,
        approx_recip=(cdt != jnp.float32))

    isz = jnp.dtype(cdt).itemsize
    flops = int(4 * B * H * I * J * D            # QK^T + P.V
                + 2 * B * I * HD * C_a           # output projection
                + 2 * B * I * C_s * C_a)         # output gate linear
    transcend = int(B * H * I * J + B * I * C_a)
    bytes_acc = int(3 * B * H * I * D * isz                       # q, k, v
                    + B * H * I * J * jnp.dtype(bias_dtype).itemsize
                    + 4 * (B * I * HD + B * I * C_s + B * I * C_a)
                    + 4 * 2 * B * I)
    cost = pl.CostEstimate(flops=flops, transcendentals=transcend,
                           bytes_accessed=bytes_acc)

    out = pl.pallas_call(
        kernel,
        out_shape=jax.ShapeDtypeStruct((B, I, C_a), jnp.float32),
        grid=(B, n_qt, n_kt),
        in_specs=[
            pl.BlockSpec((1, H, tq, D), lambda b, qi, kj: (b, 0, qi, 0)),    # q
            pl.BlockSpec((1, H, tk, D), lambda b, qi, kj: (b, 0, kj, 0)),    # k
            pl.BlockSpec((1, H, tk, D), lambda b, qi, kj: (b, 0, kj, 0)),    # v
            pl.BlockSpec((1, tq, HD), lambda b, qi, kj: (b, qi, 0)),         # gate g
            pl.BlockSpec((1, H, tq, tk), lambda b, qi, kj: (b, 0, qi, kj)),  # pair bias
            pl.BlockSpec((1, 1, tk), lambda b, qi, kj: (b, 0, kj)),          # key mask
            pl.BlockSpec((1, tq, 1), lambda b, qi, kj: (b, qi, 0)),          # query mask
            pl.BlockSpec((1, tq, C_s), lambda b, qi, kj: (b, qi, 0)),        # s (out gate)
            pl.BlockSpec((HD, C_a), lambda b, qi, kj: (0, 0)),               # w_o
            pl.BlockSpec((C_s, C_a), lambda b, qi, kj: (0, 0)),              # w_s
            pl.BlockSpec((1, C_a), lambda b, qi, kj: (0, 0)),                # b_s
        ],
        out_specs=pl.BlockSpec((1, tq, C_a), lambda b, qi, kj: (b, qi, 0)),
        scratch_shapes=[
            pltpu.VMEM((H, tq, 1), jnp.float32),     # running max m
            pltpu.VMEM((H, tq, 1), jnp.float32),     # running sum l
            pltpu.VMEM((H, tq, D), jnp.float32),     # output accumulator
        ],
        compiler_params=pltpu.CompilerParams(
            dimension_semantics=("parallel", "parallel", "arbitrary"),
            vmem_limit_bytes=VMEM_LIMIT),
        cost_estimate=cost,
    )(q_hm, k_hm, v_hm, g_flat, zbias, mask_k, mask_q, s,
      w_o_c, w_s_c, b_s)
    return out


def reference(a, s, z, mask, params, no_heads, c_hidden):
    """Pure-JAX mirror of the PyTorch forward (conditioned=True, global path)."""
    (ln_s_w, w_gamma, b_gamma, w_beta, ln_z_w, ln_z_b, w_z,
     w_q, b_q, w_k, w_v, w_g, w_o, w_s, b_s) = params
    B, I, C_a = a.shape
    HD = no_heads * c_hidden

    # AdaLN
    a_ln = _ln(a)
    s_ln = _ln(s) * ln_s_w
    a_hat = a_ln * jax.nn.sigmoid(s_ln @ w_gamma + b_gamma) + s_ln @ w_beta

    # pair bias
    z_ln = _ln(z) * ln_z_w.reshape(1, 1, 1, -1) + ln_z_b.reshape(1, 1, 1, -1)
    zb = jnp.einsum('bijc,hc->bhij', z_ln, w_z)            # [B, H, I, J]
    mask_bias = INF * (mask - 1.0)                         # [B, I]

    q = (a_hat @ w_q + b_q).reshape(B, I, no_heads, c_hidden).transpose(0, 2, 1, 3)
    k = (a_hat @ w_k).reshape(B, I, no_heads, c_hidden).transpose(0, 2, 1, 3)
    v = (a_hat @ w_v).reshape(B, I, no_heads, c_hidden).transpose(0, 2, 1, 3)
    g = jax.nn.sigmoid(a_hat @ w_g)

    q = q / math.sqrt(c_hidden)
    logits = jnp.einsum('bhid,bhjd->bhij', q, k) + zb + mask_bias[:, None, None, :]
    p = jax.nn.softmax(logits, axis=-1)
    o = jnp.einsum('bhij,bhjd->bhid', p, v).transpose(0, 2, 1, 3).reshape(B, I, HD)
    o = o * g
    o = o @ w_o
    o = o * mask[..., None]
    o = o * jax.nn.sigmoid(s @ w_s + b_s)
    return o


if __name__ == "__main__":
    B, I = 2, 16
    C_a, C_s, C_z = 32, 16, 8
    H, D = 4, 8                        # no_heads, c_hidden

    key = jax.random.PRNGKey(0)
    keys = jax.random.split(key, 24)

    a = jax.random.normal(keys[0], (B, I, C_a), jnp.float32)
    s = jax.random.normal(keys[1], (B, I, C_s), jnp.float32)
    z = jax.random.normal(keys[2], (B, I, I, C_z), jnp.float32)
    mask = jnp.ones((B, I), jnp.float32).at[:, -2:].set(0.0)

    def w(k, shape, scale=0.2):
        return scale * jax.random.normal(k, shape, jnp.float32)

    params = [
        1.0 + w(keys[3], (1, C_s), 0.1),     # AdaLN layer_norm_s weight
        w(keys[4], (C_s, C_a)),              # linear_s_gamma weight (c_s -> c_a)
        w(keys[5], (1, C_a), 0.1),           # linear_s_gamma bias
        w(keys[6], (C_s, C_a)),              # linear_s_beta weight (no bias)
        1.0 + w(keys[7], (1, C_z), 0.1),     # layer_norm_z weight
        w(keys[8], (1, C_z), 0.1),           # layer_norm_z bias
        w(keys[9], (H, C_z)),                # linear_z weight (torch layout [H, C_z])
        w(keys[10], (C_a, H * D)),           # linear_q weight
        w(keys[11], (1, H * D), 0.1),        # linear_q bias
        w(keys[12], (C_a, H * D)),           # linear_k weight (no bias)
        w(keys[13], (C_a, H * D)),           # linear_v weight (no bias)
        w(keys[14], (C_a, H * D)),           # linear_g weight (no bias)
        w(keys[15], (H * D, C_a)),           # linear_o weight (no bias)
        w(keys[16], (C_s, C_a)),             # linear_s weight (output gate)
        w(keys[17], (1, C_a), 0.1),          # linear_s bias
    ]

    ref = reference(a, s, z, mask, params, H, D)

    # exact f32 path: tight correctness check
    run_f32 = jax.jit(functools.partial(
        attention_pair_bias, no_heads=H, c_hidden=D, compute_dtype=jnp.float32))
    out_f32 = jax.block_until_ready(run_f32(a, s, z, mask, params))
    assert out_f32.shape == (B, I, C_a)
    np.testing.assert_allclose(np.asarray(out_f32), np.asarray(ref),
                               rtol=2e-4, atol=2e-4)

    # bf16-MXU path (v6e/v7x optimization): loose sanity check vs f32 reference
    run_bf16 = jax.jit(functools.partial(
        attention_pair_bias, no_heads=H, c_hidden=D, compute_dtype=jnp.bfloat16))
    out_bf16 = jax.block_until_ready(run_bf16(a, s, z, mask, params))
    np.testing.assert_allclose(np.asarray(out_bf16), np.asarray(ref),
                               rtol=1e-1, atol=1e-1)

    print("KERNEL_OK")
</pallas_src>

<mosaic_0001>
module attributes {stable_mosaic.version = 11 : i64} {
  func.func @pair_bias_kernel(%arg0: i32, %arg1: i32, %arg2: memref<1x256x8xf32, #tpu.memory_space<vmem>>, %arg3: memref<1x8xf32, #tpu.memory_space<vmem>>, %arg4: memref<1x8xf32, #tpu.memory_space<vmem>>, %arg5: memref<4x8xf32, #tpu.memory_space<vmem>>, %arg6: memref<1x4x256xf32, #tpu.memory_space<vmem>>) attributes {dimension_semantics = [#tpu.dimension_semantics<parallel>, #tpu.dimension_semantics<parallel>], iteration_bounds = array<i64: 2, 1>, scalar_prefetch = 0 : i64, scratch_operands = 0 : i64, tpu.core_type = #tpu.core_type<tc>, window_params = [{transform_indices = @transform_0, window_bounds = array<i64: 1, 256, 8>}, {pipeline_mode = #tpu.pipeline_mode<synchronous>, transform_indices = @transform_1, window_bounds = array<i64: 1, 8>}, {pipeline_mode = #tpu.pipeline_mode<synchronous>, transform_indices = @transform_2, window_bounds = array<i64: 1, 8>}, {pipeline_mode = #tpu.pipeline_mode<synchronous>, transform_indices = @transform_3, window_bounds = array<i64: 4, 8>}, {transform_indices = @transform_4, window_bounds = array<i64: 1, 4, 256>}]} {
    %c0 = arith.constant 0 : index
    %c0_0 = arith.constant 0 : index
    %c0_1 = arith.constant 0 : index
    %0 = vector.load %arg2[%c0, %c0_0, %c0_1] : memref<1x256x8xf32, #tpu.memory_space<vmem>>, vector<1x256x8xf32>
    %1 = vector.shape_cast %0 : vector<1x256x8xf32> to vector<256x8xf32>
    %cst = arith.constant dense<0.000000e+00> : vector<256xf32>
    %2 = vector.multi_reduction <add>, %1, %cst [1] : vector<256x8xf32> to vector<256xf32>
    %3 = vector.shape_cast %2 : vector<256xf32> to vector<256x1xf32>
    %cst_2 = arith.constant 8.000000e+00 : f32
    %4 = vector.broadcast %cst_2 : f32 to vector<256x1xf32>
    %5 = arith.divf %3, %4 : vector<256x1xf32>
    %6 = vector.broadcast %5 : vector<256x1xf32> to vector<256x8xf32>
    %7 = arith.subf %1, %6 : vector<256x8xf32>
    %8 = arith.mulf %7, %7 : vector<256x8xf32>
    %cst_3 = arith.constant dense<0.000000e+00> : vector<256xf32>
    %9 = vector.multi_reduction <add>, %8, %cst_3 [1] : vector<256x8xf32> to vector<256xf32>
    %10 = vector.shape_cast %9 : vector<256xf32> to vector<256x1xf32>
    %cst_4 = arith.constant 8.000000e+00 : f32
    %11 = vector.broadcast %cst_4 : f32 to vector<256x1xf32>
    %12 = arith.divf %10, %11 : vector<256x1xf32>
    %13 = vector.broadcast %5 : vector<256x1xf32> to vector<256x8xf32>
    %14 = arith.subf %1, %13 : vector<256x8xf32>
    %cst_5 = arith.constant 9.99999974E-6 : f32
    %15 = vector.broadcast %cst_5 : f32 to vector<256x1xf32>
    %16 = arith.addf %12, %15 : vector<256x1xf32>
    %17 = math.rsqrt %16 : vector<256x1xf32>
    %18 = vector.broadcast %17 : vector<256x1xf32> to vector<256x8xf32>
    %19 = arith.mulf %14, %18 : vector<256x8xf32>
    %c0_6 = arith.constant 0 : index
    %c0_7 = arith.constant 0 : index
    %20 = vector.load %arg3[%c0_6, %c0_7] : memref<1x8xf32, #tpu.memory_space<vmem>>, vector<1x8xf32>
    %21 = vector.broadcast %20 : vector<1x8xf32> to vector<256x8xf32>
    %22 = arith.mulf %19, %21 : vector<256x8xf32>
    %c0_8 = arith.constant 0 : index
    %c0_9 = arith.constant 0 : index
    %23 = vector.load %arg4[%c0_8, %c0_9] : memref<1x8xf32, #tpu.memory_space<vmem>>, vector<1x8xf32>
    %24 = vector.broadcast %23 : vector<1x8xf32> to vector<256x8xf32>
    %25 = arith.addf %22, %24 : vector<256x8xf32>
    %c0_10 = arith.constant 0 : index
    %c0_11 = arith.constant 0 : index
    %26 = vector.load %arg5[%c0_10, %c0_11] : memref<4x8xf32, #tpu.memory_space<vmem>>, vector<4x8xf32>
    %cst_12 = arith.constant dense<0.000000e+00> : vector<4x256xf32>
    %27 = tpu.matmul %26, %25, %cst_12 {dimension_numbers = #tpu.dot_dimension_numbers<[1], [1], [0], [0], [0, 0, 1, 0], [], []>} : vector<4x8xf32>, vector<256x8xf32>, vector<4x256xf32> -> vector<4x256xf32>
    %c0_13 = arith.constant 0 : index
    %c0_14 = arith.constant 0 : index
    %c0_15 = arith.constant 0 : index
    %28 = vector.load %arg6[%c0_13, %c0_14, %c0_15] : memref<1x4x256xf32, #tpu.memory_space<vmem>>, vector<1x4x256xf32>
    %29 = vector.shape_cast %28 : vector<1x4x256xf32> to vector<4x256xf32>
    %30 = vector.shape_cast %27 : vector<4x256xf32> to vector<1x4x256xf32>
    tpu.vector_store %arg6[%c0_13, %c0_14, %c0_15], %30 {strides = array<i32>} : memref<1x4x256xf32, #tpu.memory_space<vmem>>, vector<1x4x256xf32>,
    return
  }
  func.func @transform_0(%arg0: i32, %arg1: i32) -> (i32, i32, i32) {
    %c0_i32 = arith.constant 0 : i32
    %c0_i32_0 = arith.constant 0 : i32
    return %arg0, %arg1, %c0_i32 : i32, i32, i32
  }
  func.func @transform_1(%arg0: i32, %arg1: i32) -> (i32, i32) {
    %c0_i32 = arith.constant 0 : i32
    %c0_i32_0 = arith.constant 0 : i32
    %c0_i32_1 = arith.constant 0 : i32
    return %c0_i32, %c0_i32_0 : i32, i32
  }
  func.func @transform_2(%arg0: i32, %arg1: i32) -> (i32, i32) {
    %c0_i32 = arith.constant 0 : i32
    %c0_i32_0 = arith.constant 0 : i32
    %c0_i32_1 = arith.constant 0 : i32
    return %c0_i32, %c0_i32_0 : i32, i32
  }
  func.func @transform_3(%arg0: i32, %arg1: i32) -> (i32, i32) {
    %c0_i32 = arith.constant 0 : i32
    %c0_i32_0 = arith.constant 0 : i32
    %c0_i32_1 = arith.constant 0 : i32
    return %c0_i32, %c0_i32_0 : i32, i32
  }
  func.func @transform_4(%arg0: i32, %arg1: i32) -> (i32, i32, i32) {
    %c0_i32 = arith.constant 0 : i32
    %c0_i32_0 = arith.constant 0 : i32
    return %arg0, %c0_i32, %arg1 : i32, i32, i32
  }
}

module attributes {stable_mosaic.version = 11 : i64} {
  func.func @adaln_qkvg_kernel(%arg0: i32, %arg1: i32, %arg2: memref<1x16x32xf32, #tpu.memory_space<vmem>>, %arg3: memref<1x16x16xf32, #tpu.memory_space<vmem>>, %arg4: memref<1x16xf32, #tpu.memory_space<vmem>>, %arg5: memref<16x32xf32, #tpu.memory_space<vmem>>, %arg6: memref<1x32xf32, #tpu.memory_space<vmem>>, %arg7: memref<16x32xf32, #tpu.memory_space<vmem>>, %arg8: memref<32x128xf32, #tpu.memory_space<vmem>>, %arg9: memref<1x32xf32, #tpu.memory_space<vmem>>, %arg10: memref<1x4x16x8xf32, #tpu.memory_space<vmem>>, %arg11: memref<1x4x16x8xf32, #tpu.memory_space<vmem>>, %arg12: memref<1x4x16x8xf32, #tpu.memory_space<vmem>>, %arg13: memref<1x16x32xf32, #tpu.memory_space<vmem>>) attributes {dimension_semantics = [#tpu.dimension_semantics<parallel>, #tpu.dimension_semantics<parallel>], iteration_bounds = array<i64: 2, 1>, scalar_prefetch = 0 : i64, scratch_operands = 0 : i64, tpu.core_type = #tpu.core_type<tc>, window_params = [{transform_indices = @transform_0, window_bounds = array<i64: 1, 16, 32>}, {transform_indices = @transform_1, window_bounds = array<i64: 1, 16, 16>}, {pipeline_mode = #tpu.pipeline_mode<synchronous>, transform_indices = @transform_2, window_bounds = array<i64: 1, 16>}, {pipeline_mode = #tpu.pipeline_mode<synchronous>, transform_indices = @transform_3, window_bounds = array<i64: 16, 32>}, {pipeline_mode = #tpu.pipeline_mode<synchronous>, transform_indices = @transform_4, window_bounds = array<i64: 1, 32>}, {pipeline_mode = #tpu.pipeline_mode<synchronous>, transform_indices = @transform_5, window_bounds = array<i64: 16, 32>}, {pipeline_mode = #tpu.pipeline_mode<synchronous>, transform_indices = @transform_6, window_bounds = array<i64: 32, 128>}, {pipeline_mode = #tpu.pipeline_mode<synchronous>, transform_indices = @transform_7, window_bounds = array<i64: 1, 32>}, {transform_indices = @transform_8, window_bounds = array<i64: 1, 4, 16, 8>}, {transform_indices = @transform_9, window_bounds = array<i64: 1, 4, 16, 8>}, {transform_indices = @transform_10, window_bounds = array<i64: 1, 4, 16, 8>}, {transform_indices = @transform_11, window_bounds = array<i64: 1, 16, 32>}]} {
    %c0 = arith.constant 0 : index
    %c0_0 = arith.constant 0 : index
    %c0_1 = arith.constant 0 : index
    %0 = vector.load %arg2[%c0, %c0_0, %c0_1] : memref<1x16x32xf32, #tpu.memory_space<vmem>>, vector<1x16x32xf32>
    %1 = vector.shape_cast %0 : vector<1x16x32xf32> to vector<16x32xf32>
    %c0_2 = arith.constant 0 : index
    %c0_3 = arith.constant 0 : index
    %c0_4 = arith.constant 0 : index
    %2 = vector.load %arg3[%c0_2, %c0_3, %c0_4] : memref<1x16x16xf32, #tpu.memory_space<vmem>>, vector<1x16x16xf32>
    %3 = vector.shape_cast %2 : vector<1x16x16xf32> to vector<16x16xf32>
    %c0_5 = arith.constant 0 : index
    %c0_6 = arith.constant 0 : index
    %4 = vector.load %arg4[%c0_5, %c0_6] : memref<1x16xf32, #tpu.memory_space<vmem>>, vector<1x16xf32>
    %c0_7 = arith.constant 0 : index
    %c0_8 = arith.constant 0 : index
    %5 = vector.load %arg5[%c0_7, %c0_8] : memref<16x32xf32, #tpu.memory_space<vmem>>, vector<16x32xf32>
    %c0_9 = arith.constant 0 : index
    %c0_10 = arith.constant 0 : index
    %6 = vector.load %arg6[%c0_9, %c0_10] : memref<1x32xf32, #tpu.memory_space<vmem>>, vector<1x32xf32>
    %c0_11 = arith.constant 0 : index
    %c0_12 = arith.constant 0 : index
    %7 = vector.load %arg7[%c0_11, %c0_12] : memref<16x32xf32, #tpu.memory_space<vmem>>, vector<16x32xf32>
    %cst = arith.constant dense<0.000000e+00> : vector<16xf32>
    %8 = vector.multi_reduction <add>, %1, %cst [1] : vector<16x32xf32> to vector<16xf32>
    %9 = vector.shape_cast %8 : vector<16xf32> to vector<16x1xf32>
    %cst_13 = arith.constant 3.200000e+01 : f32
    %10 = vector.broadcast %cst_13 : f32 to vector<16x1xf32>
    %11 = arith.divf %9, %10 : vector<16x1xf32>
    %12 = vector.broadcast %11 : vector<16x1xf32> to vector<16x32xf32>
    %13 = arith.subf %1, %12 : vector<16x32xf32>
    %14 = arith.mulf %13, %13 : vector<16x32xf32>
    %cst_14 = arith.constant dense<0.000000e+00> : vector<16xf32>
    %15 = vector.multi_reduction <add>, %14, %cst_14 [1] : vector<16x32xf32> to vector<16xf32>
    %16 = vector.shape_cast %15 : vector<16xf32> to vector<16x1xf32>
    %cst_15 = arith.constant 3.200000e+01 : f32
    %17 = vector.broadcast %cst_15 : f32 to vector<16x1xf32>
    %18 = arith.divf %16, %17 : vector<16x1xf32>
    %19 = vector.broadcast %11 : vector<16x1xf32> to vector<16x32xf32>
    %20 = arith.subf %1, %19 : vector<16x32xf32>
    %cst_16 = arith.constant 9.99999974E-6 : f32
    %21 = vector.broadcast %cst_16 : f32 to vector<16x1xf32>
    %22 = arith.addf %18, %21 : vector<16x1xf32>
    %23 = math.rsqrt %22 : vector<16x1xf32>
    %24 = vector.broadcast %23 : vector<16x1xf32> to vector<16x32xf32>
    %25 = arith.mulf %20, %24 : vector<16x32xf32>
    %cst_17 = arith.constant dense<0.000000e+00> : vector<16xf32>
    %26 = vector.multi_reduction <add>, %3, %cst_17 [1] : vector<16x16xf32> to vector<16xf32>
    %27 = vector.shape_cast %26 : vector<16xf32> to vector<16x1xf32>
    %cst_18 = arith.constant 1.600000e+01 : f32
    %28 = vector.broadcast %cst_18 : f32 to vector<16x1xf32>
    %29 = arith.divf %27, %28 : vector<16x1xf32>
    %30 = vector.broadcast %29 : vector<16x1xf32> to vector<16x16xf32>
    %31 = arith.subf %3, %30 : vector<16x16xf32>
    %32 = arith.mulf %31, %31 : vector<16x16xf32>
    %cst_19 = arith.constant dense<0.000000e+00> : vector<16xf32>
    %33 = vector.multi_reduction <add>, %32, %cst_19 [1] : vector<16x16xf32> to vector<16xf32>
    %34 = vector.shape_cast %33 : vector<16xf32> to vector<16x1xf32>
    %cst_20 = arith.constant 1.600000e+01 : f32
    %35 = vector.broadcast %cst_20 : f32 to vector<16x1xf32>
    %36 = arith.divf %34, %35 : vector<16x1xf32>
    %37 = vector.broadcast %29 : vector<16x1xf32> to vector<16x16xf32>
    %38 = arith.subf %3, %37 : vector<16x16xf32>
    %cst_21 = arith.constant 9.99999974E-6 : f32
    %39 = vector.broadcast %cst_21 : f32 to vector<16x1xf32>
    %40 = arith.addf %36, %39 : vector<16x1xf32>
    %41 = math.rsqrt %40 : vector<16x1xf32>
    %42 = vector.broadcast %41 : vector<16x1xf32> to vector<16x16xf32>
    %43 = arith.mulf %38, %42 : vector<16x16xf32>
    %44 = vector.broadcast %4 : vector<1x16xf32> to vector<16x16xf32>
    %45 = arith.mulf %43, %44 : vector<16x16xf32>
    %cst_22 = arith.constant dense<0.000000e+00> : vector<16x32xf32>
    %46 = tpu.matmul %45, %5, %cst_22 {dimension_numbers = #tpu.dot_dimension_numbers<[1], [0], [0], [1], [0, 0, 1, 1], [], []>} : vector<16x16xf32>, vector<16x32xf32>, vector<16x32xf32> -> vector<16x32xf32>
    %47 = vector.broadcast %6 : vector<1x32xf32> to vector<16x32xf32>
    %48 = arith.addf %46, %47 : vector<16x32xf32>
    %49 = arith.negf %48 : vector<16x32xf32>
    %50 = math.exp %49 : vector<16x32xf32>
    %cst_23 = arith.constant 1.000000e+00 : f32
    %51 = vector.broadcast %cst_23 : f32 to vector<16x32xf32>
    %52 = arith.addf %51, %50 : vector<16x32xf32>
    %53 = arith.divf %51, %52 : vector<16x32xf32>
    %cst_24 = arith.constant dense<0.000000e+00> : vector<16x32xf32>
    %54 = tpu.matmul %45, %7, %cst_24 {dimension_numbers = #tpu.dot_dimension_numbers<[1], [0], [0], [1], [0, 0, 1, 1], [], []>} : vector<16x16xf32>, vector<16x32xf32>, vector<16x32xf32> -> vector<16x32xf32>
    %55 = arith.mulf %25, %53 : vector<16x32xf32>
    %56 = arith.addf %55, %54 : vector<16x32xf32>
    %c0_25 = arith.constant 0 : index
    %c0_26 = arith.constant 0 : index
    %57 = vector.load %arg8[%c0_25, %c0_26] : memref<32x128xf32, #tpu.memory_space<vmem>>, vector<32x128xf32>
    %cst_27 = arith.constant dense<0.000000e+00> : vector<16x128xf32>
    %58 = tpu.matmul %56, %57, %cst_27 {dimension_numbers = #tpu.dot_dimension_numbers<[1], [0], [0], [1], [0, 0, 1, 1], [], []>} : vector<16x32xf32>, vector<32x128xf32>, vector<16x128xf32> -> vector<16x128xf32>
    %59 = vector.extract_strided_slice %58 {offsets = [0, 0], sizes = [16, 32], strides = [1, 1]} : vector<16x128xf32> to vector<16x32xf32>
    %c0_28 = arith.constant 0 : index
    %c0_29 = arith.constant 0 : index
    %60 = vector.load %arg9[%c0_28, %c0_29] : memref<1x32xf32, #tpu.memory_space<vmem>>, vector<1x32xf32>
    %61 = vector.broadcast %60 : vector<1x32xf32> to vector<16x32xf32>
    %62 = arith.addf %59, %61 : vector<16x32xf32>
    %cst_30 = arith.constant 0.353553385 : f32
    %63 = vector.broadcast %cst_30 : f32 to vector<16x32xf32>
    %64 = arith.mulf %62, %63 : vector<16x32xf32>
    %65 = vector.extract_strided_slice %58 {offsets = [0, 32], sizes = [16, 32], strides = [1, 1]} : vector<16x128xf32> to vector<16x32xf32>
    %66 = vector.extract_strided_slice %58 {offsets = [0, 64], sizes = [16, 32], strides = [1, 1]} : vector<16x128xf32> to vector<16x32xf32>
    %67 = vector.extract_strided_slice %58 {offsets = [0, 96], sizes = [16, 32], strides = [1, 1]} : vector<16x128xf32> to vector<16x32xf32>
    %68 = arith.negf %67 : vector<16x32xf32>
    %69 = math.exp %68 : vector<16x32xf32>
    %cst_31 = arith.constant 1.000000e+00 : f32
    %70 = vector.broadcast %cst_31 : f32 to vector<16x32xf32>
    %71 = arith.addf %70, %69 : vector<16x32xf32>
    %72 = arith.divf %70, %71 : vector<16x32xf32>
    %c0_32 = arith.constant 0 : index
    %c0_33 = arith.constant 0 : index
    %c0_34 = arith.constant 0 : index
    %73 = vector.load %arg13[%c0_32, %c0_33, %c0_34] : memref<1x16x32xf32, #tpu.memory_space<vmem>>, vector<1x16x32xf32>
    %74 = vector.shape_cast %73 : vector<1x16x32xf32> to vector<16x32xf32>
    %75 = vector.shape_cast %72 : vector<16x32xf32> to vector<1x16x32xf32>
    tpu.vector_store %arg13[%c0_32, %c0_33, %c0_34], %75 {strides = array<i32>} : memref<1x16x32xf32, #tpu.memory_space<vmem>>, vector<1x16x32xf32>,
    %76 = vector.extract_strided_slice %64 {offsets = [0, 0], sizes = [16, 8], strides = [1, 1]} : vector<16x32xf32> to vector<16x8xf32>
    %c0_35 = arith.constant 0 : index
    %c0_36 = arith.constant 0 : index
    %c0_37 = arith.constant 0 : index
    %c0_38 = arith.constant 0 : index
    %77 = vector.load %arg10[%c0_35, %c0_36, %c0_37, %c0_38] : memref<1x4x16x8xf32, #tpu.memory_space<vmem>>, vector<1x1x16x8xf32>
    %78 = vector.shape_cast %77 : vector<1x1x16x8xf32> to vector<16x8xf32>
    %79 = vector.shape_cast %76 : vector<16x8xf32> to vector<1x1x16x8xf32>
    tpu.vector_store %arg10[%c0_35, %c0_36, %c0_37, %c0_38], %79 {strides = array<i32>} : memref<1x4x16x8xf32, #tpu.memory_space<vmem>>, vector<1x1x16x8xf32>,
    %80 = vector.extract_strided_slice %65 {offsets = [0, 0], sizes = [16, 8], strides = [1, 1]} : vector<16x32xf32> to vector<16x8xf32>
    %c0_39 = arith.constant 0 : index
    %c0_40 = arith.constant 0 : index
    %c0_41 = arith.constant 0 : index
    %c0_42 = arith.constant 0 : index
    %81 = vector.load %arg11[%c0_39, %c0_40, %c0_41, %c0_42] : memref<1x4x16x8xf32, #tpu.memory_space<vmem>>, vector<1x1x16x8xf32>
    %82 = vector.shape_cast %81 : vector<1x1x16x8xf32> to vector<16x8xf32>
    %83 = vector.shape_cast %80 : vector<16x8xf32> to vector<1x1x16x8xf32>
    tpu.vector_store %arg11[%c0_39, %c0_40, %c0_41, %c0_42], %83 {strides = array<i32>} : memref<1x4x16x8xf32, #tpu.memory_space<vmem>>, vector<1x1x16x8xf32>,
    %84 = vector.extract_strided_slice %66 {offsets = [0, 0], sizes = [16, 8], strides = [1, 1]} : vector<16x32xf32> to vector<16x8xf32>
    %c0_43 = arith.constant 0 : index
    %c0_44 = arith.constant 0 : index
    %c0_45 = arith.constant 0 : index
    %c0_46 = arith.constant 0 : index
    %85 = vector.load %arg12[%c0_43, %c0_44, %c0_45, %c0_46] : memref<1x4x16x8xf32, #tpu.memory_space<vmem>>, vector<1x1x16x8xf32>
    %86 = vector.shape_cast %85 : vector<1x1x16x8xf32> to vector<16x8xf32>
    %87 = vector.shape_cast %84 : vector<16x8xf32> to vector<1x1x16x8xf32>
    tpu.vector_store %arg12[%c0_43, %c0_44, %c0_45, %c0_46], %87 {strides = array<i32>} : memref<1x4x16x8xf32, #tpu.memory_space<vmem>>, vector<1x1x16x8xf32>,
    %88 = vector.extract_strided_slice %64 {offsets = [0, 8], sizes = [16, 8], strides = [1, 1]} : vector<16x32xf32> to vector<16x8xf32>
    %c0_47 = arith.constant 0 : index
    %c1 = arith.constant 1 : index
    %c0_48 = arith.constant 0 : index
    %c0_49 = arith.constant 0 : index
    %89 = vector.load %arg10[%c0_47, %c1, %c0_48, %c0_49] : memref<1x4x16x8xf32, #tpu.memory_space<vmem>>, vector<1x1x16x8xf32>
    %90 = vector.shape_cast %89 : vector<1x1x16x8xf32> to vector<16x8xf32>
    %91 = vector.shape_cast %88 : vector<16x8xf32> to vector<1x1x16x8xf32>
    tpu.vector_store %arg10[%c0_47, %c1, %c0_48, %c0_49], %91 {strides = array<i32>} : memref<1x4x16x8xf32, #tpu.memory_space<vmem>>, vector<1x1x16x8xf32>,
    %92 = vector.extract_strided_slice %65 {offsets = [0, 8], sizes = [16, 8], strides = [1, 1]} : vector<16x32xf32> to vector<16x8xf32>
    %c0_50 = arith.constant 0 : index
    %c1_51 = arith.constant 1 : index
    %c0_52 = arith.constant 0 : index
    %c0_53 = arith.constant 0 : index
    %93 = vector.load %arg11[%c0_50, %c1_51, %c0_52, %c0_53] : memref<1x4x16x8xf32, #tpu.memory_space<vmem>>, vector<1x1x16x8xf32>
    %94 = vector.shape_cast %93 : vector<1x1x16x8xf32> to vector<16x8xf32>
    %95 = vector.shape_cast %92 : vector<16x8xf32> to vector<1x1x16x8xf32>
    tpu.vector_store %arg11[%c0_50, %c1_51, %c0_52, %c0_53], %95 {strides = array<i32>} : memref<1x4x16x8xf32, #tpu.memory_space<vmem>>, vector<1x1x16x8xf32>,
    %96 = vector.extract_strided_slice %66 {offsets = [0, 8], sizes = [16, 8], strides = [1, 1]} : vector<16x32xf32> to vector<16x8xf32>
    %c0_54 = arith.constant 0 : index
    %c1_55 = arith.constant 1 : index
    %c0_56 = arith.constant 0 : index
    %c0_57 = arith.constant 0 : index
    %97 = vector.load %arg12[%c0_54, %c1_55, %c0_56, %c0_57] : memref<1x4x16x8xf32, #tpu.memory_space<vmem>>, vector<1x1x16x8xf32>
    %98 = vector.shape_cast %97 : vector<1x1x16x8xf32> to vector<16x8xf32>
    %99 = vector.shape_cast %96 : vector<16x8xf32> to vector<1x1x16x8xf32>
    tpu.vector_store %arg12[%c0_54, %c1_55, %c0_56, %c0_57], %99 {strides = array<i32>} : memref<1x4x16x8xf32, #tpu.memory_space<vmem>>, vector<1x1x16x8xf32>,
    %100 = vector.extract_strided_slice %64 {offsets = [0, 16], sizes = [16, 8], strides = [1, 1]} : vector<16x32xf32> to vector<16x8xf32>
    %c0_58 = arith.constant 0 : index
    %c2 = arith.constant 2 : index
    %c0_59 = arith.constant 0 : index
    %c0_60 = arith.constant 0 : index
    %101 = vector.load %arg10[%c0_58, %c2, %c0_59, %c0_60] : memref<1x4x16x8xf32, #tpu.memory_space<vmem>>, vector<1x1x16x8xf32>
    %102 = vector.shape_cast %101 : vector<1x1x16x8xf32> to vector<16x8xf32>
    %103 = vector.shape_cast %100 : vector<16x8xf32> to vector<1x1x16x8xf32>
    tpu.vector_store %arg10[%c0_58, %c2, %c0_59, %c0_60], %103 {strides = array<i32>} : memref<1x4x16x8xf32, #tpu.memory_space<vmem>>, vector<1x1x16x8xf32>,
    %104 = vector.extract_strided_slice %65 {offsets = [0, 16], sizes = [16, 8], strides = [1, 1]} : vector<16x32xf32> to vector<16x8xf32>
    %c0_61 = arith.constant 0 : index
    %c2_62 = arith.constant 2 : index
    %c0_63 = arith.constant 0 : index
    %c0_64 = arith.constant 0 : index
    %105 = vector.load %arg11[%c0_61, %c2_62, %c0_63, %c0_64] : memref<1x4x16x8xf32, #tpu.memory_space<vmem>>, vector<1x1x16x8xf32>
    %106 = vector.shape_cast %105 : vector<1x1x16x8xf32> to vector<16x8xf32>
    %107 = vector.shape_cast %104 : vector<16x8xf32> to vector<1x1x16x8xf32>
    tpu.vector_store %arg11[%c0_61, %c2_62, %c0_63, %c0_64], %107 {strides = array<i32>} : memref<1x4x16x8xf32, #tpu.memory_space<vmem>>, vector<1x1x16x8xf32>,
    %108 = vector.extract_strided_slice %66 {offsets = [0, 16], sizes = [16, 8], strides = [1, 1]} : vector<16x32xf32> to vector<16x8xf32>
    %c0_65 = arith.constant 0 : index
    %c2_66 = arith.constant 2 : index
    %c0_67 = arith.constant 0 : index
    %c0_68 = arith.constant 0 : index
    %109 = vector.load %arg12[%c0_65, %c2_66, %c0_67, %c0_68] : memref<1x4x16x8xf32, #tpu.memory_space<vmem>>, vector<1x1x16x8xf32>
    %110 = vector.shape_cast %109 : vector<1x1x16x8xf32> to vector<16x8xf32>
    %111 = vector.shape_cast %108 : vector<16x8xf32> to vector<1x1x16x8xf32>
    tpu.vector_store %arg12[%c0_65, %c2_66, %c0_67, %c0_68], %111 {strides = array<i32>} : memref<1x4x16x8xf32, #tpu.memory_space<vmem>>, vector<1x1x16x8xf32>,
    %112 = vector.extract_strided_slice %64 {offsets = [0, 24], sizes = [16, 8], strides = [1, 1]} : vector<16x32xf32> to vector<16x8xf32>
    %c0_69 = arith.constant 0 : index
    %c3 = arith.constant 3 : index
    %c0_70 = arith.constant 0 : index
    %c0_71 = arith.constant 0 : index
    %113 = vector.load %arg10[%c0_69, %c3, %c0_70, %c0_71] : memref<1x4x16x8xf32, #tpu.memory_space<vmem>>, vector<1x1x16x8xf32>
    %114 = vector.shape_cast %113 : vector<1x1x16x8xf32> to vector<16x8xf32>
    %115 = vector.shape_cast %112 : vector<16x8xf32> to vector<1x1x16x8xf32>
    tpu.vector_store %arg10[%c0_69, %c3, %c0_70, %c0_71], %115 {strides = array<i32>} : memref<1x4x16x8xf32, #tpu.memory_space<vmem>>, vector<1x1x16x8xf32>,
    %116 = vector.extract_strided_slice %65 {offsets = [0, 24], sizes = [16, 8], strides = [1, 1]} : vector<16x32xf32> to vector<16x8xf32>
    %c0_72 = arith.constant 0 : index
    %c3_73 = arith.constant 3 : index
    %c0_74 = arith.constant 0 : index
    %c0_75 = arith.constant 0 : index
    %117 = vector.load %arg11[%c0_72, %c3_73, %c0_74, %c0_75] : memref<1x4x16x8xf32, #tpu.memory_space<vmem>>, vector<1x1x16x8xf32>
    %118 = vector.shape_cast %117 : vector<1x1x16x8xf32> to vector<16x8xf32>
    %119 = vector.shape_cast %116 : vector<16x8xf32> to vector<1x1x16x8xf32>
    tpu.vector_store %arg11[%c0_72, %c3_73, %c0_74, %c0_75], %119 {strides = array<i32>} : memref<1x4x16x8xf32, #tpu.memory_space<vmem>>, vector<1x1x16x8xf32>,
    %120 = vector.extract_strided_slice %66 {offsets = [0, 24], sizes = [16, 8], strides = [1, 1]} : vector<16x32xf32> to vector<16x8xf32>
    %c0_76 = arith.constant 0 : index
    %c3_77 = arith.constant 3 : index
    %c0_78 = arith.constant 0 : index
    %c0_79 = arith.constant 0 : index
    %121 = vector.load %arg12[%c0_76, %c3_77, %c0_78, %c0_79] : memref<1x4x16x8xf32, #tpu.memory_space<vmem>>, vector<1x1x16x8xf32>
    %122 = vector.shape_cast %121 : vector<1x1x16x8xf32> to vector<16x8xf32>
    %123 = vector.shape_cast %120 : vector<16x8xf32> to vector<1x1x16x8xf32>
    tpu.vector_store %arg12[%c0_76, %c3_77, %c0_78, %c0_79], %123 {strides = array<i32>} : memref<1x4x16x8xf32, #tpu.memory_space<vmem>>, vector<1x1x16x8xf32>,
    return
  }
  func.func @transform_0(%arg0: i32, %arg1: i32) -> (i32, i32, i32) {
    %c0_i32 = arith.constant 0 : i32
    %c0_i32_0 = arith.constant 0 : i32
    return %arg0, %arg1, %c0_i32 : i32, i32, i32
  }
  func.func @transform_1(%arg0: i32, %arg1: i32) -> (i32, i32, i32) {
    %c0_i32 = arith.constant 0 : i32
    %c0_i32_0 = arith.constant 0 : i32
    return %arg0, %arg1, %c0_i32 : i32, i32, i32
  }
  func.func @transform_2(%arg0: i32, %arg1: i32) -> (i32, i32) {
    %c0_i32 = arith.constant 0 : i32
    %c0_i32_0 = arith.constant 0 : i32
    %c0_i32_1 = arith.constant 0 : i32
    return %c0_i32, %c0_i32_0 : i32, i32
  }
  func.func @transform_3(%arg0: i32, %arg1: i32) -> (i32, i32) {
    %c0_i32 = arith.constant 0 : i32
    %c0_i32_0 = arith.constant 0 : i32
    %c0_i32_1 = arith.constant 0 : i32
    return %c0_i32, %c0_i32_0 : i32, i32
  }
  func.func @transform_4(%arg0: i32, %arg1: i32) -> (i32, i32) {
    %c0_i32 = arith.constant 0 : i32
    %c0_i32_0 = arith.constant 0 : i32
    %c0_i32_1 = arith.constant 0 : i32
    return %c0_i32, %c0_i32_0 : i32, i32
  }
  func.func @transform_5(%arg0: i32, %arg1: i32) -> (i32, i32) {
    %c0_i32 = arith.constant 0 : i32
    %c0_i32_0 = arith.constant 0 : i32
    %c0_i32_1 = arith.constant 0 : i32
    return %c0_i32, %c0_i32_0 : i32, i32
  }
  func.func @transform_6(%arg0: i32, %arg1: i32) -> (i32, i32) {
    %c0_i32 = arith.constant 0 : i32
    %c0_i32_0 = arith.constant 0 : i32
    %c0_i32_1 = arith.constant 0 : i32
    return %c0_i32, %c0_i32_0 : i32, i32
  }
  func.func @transform_7(%arg0: i32, %arg1: i32) -> (i32, i32) {
    %c0_i32 = arith.constant 0 : i32
    %c0_i32_0 = arith.constant 0 : i32
    %c0_i32_1 = arith.constant 0 : i32
    return %c0_i32, %c0_i32_0 : i32, i32
  }
  func.func @transform_8(%arg0: i32, %arg1: i32) -> (i32, i32, i32, i32) {
    %c0_i32 = arith.constant 0 : i32
    %c0_i32_0 = arith.constant 0 : i32
    %c0_i32_1 = arith.constant 0 : i32
    return %arg0, %c0_i32, %arg1, %c0_i32_0 : i32, i32, i32, i32
  }
  func.func @transform_9(%arg0: i32, %arg1: i32) -> (i32, i32, i32, i32) {
    %c0_i32 = arith.constant 0 : i32
    %c0_i32_0 = arith.constant 0 : i32
    %c0_i32_1 = arith.constant 0 : i32
    return %arg0, %c0_i32, %arg1, %c0_i32_0 : i32, i32, i32, i32
  }
  func.func @transform_10(%arg0: i32, %arg1: i32) -> (i32, i32, i32, i32) {
    %c0_i32 = arith.constant 0 : i32
    %c0_i32_0 = arith.constant 0 : i32
    %c0_i32_1 = arith.constant 0 : i32
    return %arg0, %c0_i32, %arg1, %c0_i32_0 : i32, i32, i32, i32
  }
  func.func @transform_11(%arg0: i32, %arg1: i32) -> (i32, i32, i32) {
    %c0_i32 = arith.constant 0 : i32
    %c0_i32_0 = arith.constant 0 : i32
    return %arg0, %arg1, %c0_i32 : i32, i32, i32
  }
}

module attributes {stable_mosaic.version = 11 : i64} {
  func.func @attention_pair_bias_kernel(%arg0: i32, %arg1: i32, %arg2: i32, %arg3: memref<1x4x16x8xf32, #tpu.memory_space<vmem>>, %arg4: memref<1x4x16x8xf32, #tpu.memory_space<vmem>>, %arg5: memref<1x4x16x8xf32, #tpu.memory_space<vmem>>, %arg6: memref<1x16x32xf32, #tpu.memory_space<vmem>>, %arg7: memref<1x4x16x16xf32, #tpu.memory_space<vmem>>, %arg8: memref<1x1x16xf32, #tpu.memory_space<vmem>>, %arg9: memref<1x16x1xf32, #tpu.memory_space<vmem>>, %arg10: memref<1x16x16xf32, #tpu.memory_space<vmem>>, %arg11: memref<32x32xf32, #tpu.memory_space<vmem>>, %arg12: memref<16x32xf32, #tpu.memory_space<vmem>>, %arg13: memref<1x32xf32, #tpu.memory_space<vmem>>, %arg14: memref<1x16x32xf32, #tpu.memory_space<vmem>>, %arg15: memref<4x16x1xf32, #tpu.memory_space<vmem>>, %arg16: memref<4x16x1xf32, #tpu.memory_space<vmem>>, %arg17: memref<4x16x8xf32, #tpu.memory_space<vmem>>) attributes {dimension_semantics = [#tpu.dimension_semantics<parallel>, #tpu.dimension_semantics<parallel>, #tpu.dimension_semantics<arbitrary>], iteration_bounds = array<i64: 2, 1, 1>, scalar_prefetch = 0 : i64, scratch_operands = 3 : i64, tpu.core_type = #tpu.core_type<tc>, window_params = [{transform_indices = @transform_0, window_bounds = array<i64: 1, 4, 16, 8>}, {transform_indices = @transform_1, window_bounds = array<i64: 1, 4, 16, 8>}, {transform_indices = @transform_2, window_bounds = array<i64: 1, 4, 16, 8>}, {transform_indices = @transform_3, window_bounds = array<i64: 1, 16, 32>}, {transform_indices = @transform_4, window_bounds = array<i64: 1, 4, 16, 16>}, {transform_indices = @transform_5, window_bounds = array<i64: 1, 1, 16>}, {transform_indices = @transform_6, window_bounds = array<i64: 1, 16, 1>}, {transform_indices = @transform_7, window_bounds = array<i64: 1, 16, 16>}, {pipeline_mode = #tpu.pipeline_mode<synchronous>, transform_indices = @transform_8, window_bounds = array<i64: 32, 32>}, {pipeline_mode = #tpu.pipeline_mode<synchronous>, transform_indices = @transform_9, window_bounds = array<i64: 16, 32>}, {pipeline_mode = #tpu.pipeline_mode<synchronous>, transform_indices = @transform_10, window_bounds = array<i64: 1, 32>}, {transform_indices = @transform_11, window_bounds = array<i64: 1, 16, 32>}]} {
    %c0_i32 = arith.constant 0 : i32
    %0 = arith.cmpi eq, %arg2, %c0_i32 : i32
    %1 = arith.extui %0 : i1 to i32
    %c0_i32_0 = arith.constant 0 : i32
    %2 = arith.cmpi ne, %1, %c0_i32_0 : i32
    scf.if %2 {
      %cst_44 = arith.constant 0xFF800000 : f32
      %45 = vector.broadcast %cst_44 : f32 to vector<4x16x1xf32>
      %c0_45 = arith.constant 0 : index
      %c0_46 = arith.constant 0 : index
      %c0_47 = arith.constant 0 : index
      %46 = vector.load %arg15[%c0_45, %c0_46, %c0_47] : memref<4x16x1xf32, #tpu.memory_space<vmem>>, vector<4x16x1xf32>
      tpu.vector_store %arg15[%c0_45, %c0_46, %c0_47], %45 {strides = array<i32>} : memref<4x16x1xf32, #tpu.memory_space<vmem>>, vector<4x16x1xf32>,
      %cst_48 = arith.constant 0.000000e+00 : f32
      %47 = vector.broadcast %cst_48 : f32 to vector<4x16x1xf32>
      %c0_49 = arith.constant 0 : index
      %c0_50 = arith.constant 0 : index
      %c0_51 = arith.constant 0 : index
      %48 = vector.load %arg16[%c0_49, %c0_50, %c0_51] : memref<4x16x1xf32, #tpu.memory_space<vmem>>, vector<4x16x1xf32>
      tpu.vector_store %arg16[%c0_49, %c0_50, %c0_51], %47 {strides = array<i32>} : memref<4x16x1xf32, #tpu.memory_space<vmem>>, vector<4x16x1xf32>,
      %cst_52 = arith.constant 0.000000e+00 : f32
      %49 = vector.broadcast %cst_52 : f32 to vector<4x16x8xf32>
      %c0_53 = arith.constant 0 : index
      %c0_54 = arith.constant 0 : index
      %c0_55 = arith.constant 0 : index
      %50 = vector.load %arg17[%c0_53, %c0_54, %c0_55] : memref<4x16x8xf32, #tpu.memory_space<vmem>>, vector<4x16x8xf32>
      tpu.vector_store %arg17[%c0_53, %c0_54, %c0_55], %49 {strides = array<i32>} : memref<4x16x8xf32, #tpu.memory_space<vmem>>, vector<4x16x8xf32>,
    } else {
    }
    %c0 = arith.constant 0 : index
    %c0_1 = arith.constant 0 : index
    %c0_2 = arith.constant 0 : index
    %c0_3 = arith.constant 0 : index
    %3 = vector.load %arg3[%c0, %c0_1, %c0_2, %c0_3] : memref<1x4x16x8xf32, #tpu.memory_space<vmem>>, vector<1x4x16x8xf32>
    %4 = vector.shape_cast %3 : vector<1x4x16x8xf32> to vector<4x16x8xf32>
    %c0_4 = arith.constant 0 : index
    %c0_5 = arith.constant 0 : index
    %c0_6 = arith.constant 0 : index
    %c0_7 = arith.constant 0 : index
    %5 = vector.load %arg4[%c0_4, %c0_5, %c0_6, %c0_7] : memref<1x4x16x8xf32, #tpu.memory_space<vmem>>, vector<1x4x16x8xf32>
    %6 = vector.shape_cast %5 : vector<1x4x16x8xf32> to vector<4x16x8xf32>
    "tpu.trace_start"() <{level = 10 : i32, message = "hqd,hkd->hqk"}> : () -> ()
    %cst = arith.constant dense<0.000000e+00> : vector<4x16x16xf32>
    %7 = tpu.matmul %4, %6, %cst {dimension_numbers = #tpu.dot_dimension_numbers<[2], [2], [1], [1], [0, 0, 0, 1, 1, 1], [0], [0]>} : vector<4x16x8xf32>, vector<4x16x8xf32>, vector<4x16x16xf32> -> vector<4x16x16xf32>
    "tpu.trace_stop"() : () -> ()
    %c0_8 = arith.constant 0 : index
    %c0_9 = arith.constant 0 : index
    %c0_10 = arith.constant 0 : index
    %c0_11 = arith.constant 0 : index
    %8 = vector.load %arg7[%c0_8, %c0_9, %c0_10, %c0_11] : memref<1x4x16x16xf32, #tpu.memory_space<vmem>>, vector<1x4x16x16xf32>
    %9 = vector.shape_cast %8 : vector<1x4x16x16xf32> to vector<4x16x16xf32>
    %10 = arith.addf %7, %9 : vector<4x16x16xf32>
    %c0_12 = arith.constant 0 : index
    %c0_13 = arith.constant 0 : index
    %c0_14 = arith.constant 0 : index
    %11 = vector.load %arg8[%c0_12, %c0_13, %c0_14] : memref<1x1x16xf32, #tpu.memory_space<vmem>>, vector<1x1x16xf32>
    %cst_15 = arith.constant 1.000000e+00 : f32
    %12 = vector.broadcast %cst_15 : f32 to vector<1x1x16xf32>
    %13 = arith.subf %11, %12 : vector<1x1x16xf32>
    %cst_16 = arith.constant 1.000000e+09 : f32
    %14 = vector.broadcast %cst_16 : f32 to vector<1x1x16xf32>
    %15 = arith.mulf %14, %13 : vector<1x1x16xf32>
    %16 = vector.broadcast %15 : vector<1x1x16xf32> to vector<4x16x16xf32>
    %17 = arith.addf %10, %16 : vector<4x16x16xf32>
    %c0_17 = arith.constant 0 : index
    %c0_18 = arith.constant 0 : index
    %c0_19 = arith.constant 0 : index
    %18 = vector.load %arg15[%c0_17, %c0_18, %c0_19] : memref<4x16x1xf32, #tpu.memory_space<vmem>>, vector<4x16x1xf32>
    %cst_20 = arith.constant dense<0xFF800000> : vector<4x16xf32>
    %19 = vector.multi_reduction <maximumf>, %17, %cst_20 [2] : vector<4x16x16xf32> to vector<4x16xf32>
    %20 = vector.shape_cast %19 : vector<4x16xf32> to vector<4x16x1xf32>
    %21 = arith.maximumf %18, %20 : vector<4x16x1xf32>
    %22 = arith.subf %18, %21 : vector<4x16x1xf32>
    %23 = math.exp %22 : vector<4x16x1xf32>
    %24 = vector.broadcast %21 : vector<4x16x1xf32> to vector<4x16x16xf32>
    %25 = arith.subf %17, %24 : vector<4x16x16xf32>
    %26 = math.exp %25 : vector<4x16x16xf32>
    %c0_21 = arith.constant 0 : index
    %c0_22 = arith.constant 0 : index
    %c0_23 = arith.constant 0 : index
    %27 = vector.load %arg16[%c0_21, %c0_22, %c0_23] : memref<4x16x1xf32, #tpu.memory_space<vmem>>, vector<4x16x1xf32>
    %28 = arith.mulf %23, %27 : vector<4x16x1xf32>
    %cst_24 = arith.constant dense<0.000000e+00> : vector<4x16xf32>
    %29 = vector.multi_reduction <add>, %26, %cst_24 [2] : vector<4x16x16xf32> to vector<4x16xf32>
    %30 = vector.shape_cast %29 : vector<4x16xf32> to vector<4x16x1xf32>
    %31 = arith.addf %28, %30 : vector<4x16x1xf32>
    %c0_25 = arith.constant 0 : index
    %c0_26 = arith.constant 0 : index
    %c0_27 = arith.constant 0 : index
    %32 = vector.load %arg16[%c0_25, %c0_26, %c0_27] : memref<4x16x1xf32, #tpu.memory_space<vmem>>, vector<4x16x1xf32>
    tpu.vector_store %arg16[%c0_25, %c0_26, %c0_27], %31 {strides = array<i32>} : memref<4x16x1xf32, #tpu.memory_space<vmem>>, vector<4x16x1xf32>,
    %c0_28 = arith.constant 0 : index
    %c0_29 = arith.constant 0 : index
    %c0_30 = arith.constant 0 : index
    %33 = vector.load %arg17[%c0_28, %c0_29, %c0_30] : memref<4x16x8xf32, #tpu.memory_space<vmem>>, vector<4x16x8xf32>
    %34 = vector.broadcast %23 : vector<4x16x1xf32> to vector<4x16x8xf32>
    %35 = arith.mulf %34, %33 : vector<4x16x8xf32>
    %c0_31 = arith.constant 0 : index
    %c0_32 = arith.constant 0 : index
    %c0_33 = arith.constant 0 : index
    %c0_34 = arith.constant 0 : index
    %36 = vector.load %arg5[%c0_31, %c0_32, %c0_33, %c0_34] : memref<1x4x16x8xf32, #tpu.memory_space<vmem>>, vector<1x4x16x8xf32>
    %37 = vector.shape_cast %36 : vector<1x4x16x8xf32> to vector<4x16x8xf32>
    "tpu.trace_start"() <{level = 10 : i32, message = "hqk,hkd->hqd"}> : () -> ()
    %cst_35 = arith.constant dense<0.000000e+00> : vector<4x16x8xf32>
    %38 = tpu.matmul %26, %37, %cst_35 {dimension_numbers = #tpu.dot_dimension_numbers<[2], [1], [1], [2], [0, 0, 0, 1, 1, 2], [0], [0]>} : vector<4x16x16xf32>, vector<4x16x8xf32>, vector<4x16x8xf32> -> vector<4x16x8xf32>
    "tpu.trace_stop"() : () -> ()
    %39 = arith.addf %35, %38 : vector<4x16x8xf32>
    %c0_36 = arith.constant 0 : index
    %c0_37 = arith.constant 0 : index
    %c0_38 = arith.constant 0 : index
    %40 = vector.load %arg17[%c0_36, %c0_37, %c0_38] : memref<4x16x8xf32, #tpu.memory_space<vmem>>, vector<4x16x8xf32>
    tpu.vector_store %arg17[%c0_36, %c0_37, %c0_38], %39 {strides = array<i32>} : memref<4x16x8xf32, #tpu.memory_space<vmem>>, vector<4x16x8xf32>,
    %c0_39 = arith.constant 0 : index
    %c0_40 = arith.constant 0 : index
    %c0_41 = arith.constant 0 : index
    %41 = vector.load %arg15[%c0_39, %c0_40, %c0_41] : memref<4x16x1xf32, #tpu.memory_space<vmem>>, vector<4x16x1xf32>
    tpu.vector_store %arg15[%c0_39, %c0_40, %c0_41], %21 {strides = array<i32>} : memref<4x16x1xf32, #tpu.memory_space<vmem>>, vector<4x16x1xf32>,
    %c0_i32_42 = arith.constant 0 : i32
    %42 = arith.cmpi eq, %arg2, %c0_i32_42 : i32
    %43 = arith.extui %42 : i1 to i32
    %c0_i32_43 = arith.constant 0 : i32
    %44 = arith.cmpi ne, %43, %c0_i32_43 : i32
    scf.if %44 {
      %c0_44 = arith.constant 0 : index
      %c0_45 = arith.constant 0 : index
      %c0_46 = arith.constant 0 : index
      %45 = vector.load %arg16[%c0_44, %c0_45, %c0_46] : memref<4x16x1xf32, #tpu.memory_space<vmem>>, vector<4x16x1xf32>
      %46 = tpu.reciprocal %45 : vector<4x16x1xf32> -> vector<4x16x1xf32>
      %c0_47 = arith.constant 0 : index
      %c0_48 = arith.constant 0 : index
      %c0_49 = arith.constant 0 : index
      %47 = vector.load %arg17[%c0_47, %c0_48, %c0_49] : memref<4x16x8xf32, #tpu.memory_space<vmem>>, vector<4x16x8xf32>
      %48 = vector.broadcast %46 : vector<4x16x1xf32> to vector<4x16x8xf32>
      %49 = arith.mulf %47, %48 : vector<4x16x8xf32>
      %50 = vector.extract_strided_slice %49 {offsets = [0, 0, 0], sizes = [1, 16, 8], strides = [1, 1, 1]} : vector<4x16x8xf32> to vector<1x16x8xf32>
      %51 = vector.shape_cast %50 : vector<1x16x8xf32> to vector<16x8xf32>
      %52 = vector.extract_strided_slice %49 {offsets = [1, 0, 0], sizes = [1, 16, 8], strides = [1, 1, 1]} : vector<4x16x8xf32> to vector<1x16x8xf32>
      %53 = vector.shape_cast %52 : vector<1x16x8xf32> to vector<16x8xf32>
      %54 = vector.extract_strided_slice %49 {offsets = [2, 0, 0], sizes = [1, 16, 8], strides = [1, 1, 1]} : vector<4x16x8xf32> to vector<1x16x8xf32>
      %55 = vector.shape_cast %54 : vector<1x16x8xf32> to vector<16x8xf32>
      %56 = vector.extract_strided_slice %49 {offsets = [3, 0, 0], sizes = [1, 16, 8], strides = [1, 1, 1]} : vector<4x16x8xf32> to vector<1x16x8xf32>
      %57 = vector.shape_cast %56 : vector<1x16x8xf32> to vector<16x8xf32>
      %58 = tpu.concatenate %51, %53, %55, %57 in 1 : vector<16x8xf32>, vector<16x8xf32>, vector<16x8xf32>, vector<16x8xf32> -> vector<16x32xf32>
      %c0_50 = arith.constant 0 : index
      %c0_51 = arith.constant 0 : index
      %c0_52 = arith.constant 0 : index
      %59 = vector.load %arg6[%c0_50, %c0_51, %c0_52] : memref<1x16x32xf32, #tpu.memory_space<vmem>>, vector<1x16x32xf32>
      %60 = vector.shape_cast %59 : vector<1x16x32xf32> to vector<16x32xf32>
      %61 = arith.mulf %58, %60 : vector<16x32xf32>
      %c0_53 = arith.constant 0 : index
      %c0_54 = arith.constant 0 : index
      %62 = vector.load %arg11[%c0_53, %c0_54] : memref<32x32xf32, #tpu.memory_space<vmem>>, vector<32x32xf32>
      %cst_55 = arith.constant dense<0.000000e+00> : vector<16x32xf32>
      %63 = tpu.matmul %61, %62, %cst_55 {dimension_numbers = #tpu.dot_dimension_numbers<[1], [0], [0], [1], [0, 0, 1, 1], [], []>} : vector<16x32xf32>, vector<32x32xf32>, vector<16x32xf32> -> vector<16x32xf32>
      %c0_56 = arith.constant 0 : index
      %c0_57 = arith.constant 0 : index
      %c0_58 = arith.constant 0 : index
      %64 = vector.load %arg9[%c0_56, %c0_57, %c0_58] : memref<1x16x1xf32, #tpu.memory_space<vmem>>, vector<1x16x1xf32>
      %65 = vector.shape_cast %64 : vector<1x16x1xf32> to vector<16x1xf32>
      %66 = vector.broadcast %65 : vector<16x1xf32> to vector<16x32xf32>
      %67 = arith.mulf %63, %66 : vector<16x32xf32>
      %c0_59 = arith.constant 0 : index
      %c0_60 = arith.constant 0 : index
      %c0_61 = arith.constant 0 : index
      %68 = vector.load %arg10[%c0_59, %c0_60, %c0_61] : memref<1x16x16xf32, #tpu.memory_space<vmem>>, vector<1x16x16xf32>
      %69 = vector.shape_cast %68 : vector<1x16x16xf32> to vector<16x16xf32>
      %c0_62 = arith.constant 0 : index
      %c0_63 = arith.constant 0 : index
      %70 = vector.load %arg12[%c0_62, %c0_63] : memref<16x32xf32, #tpu.memory_space<vmem>>, vector<16x32xf32>
      %cst_64 = arith.constant dense<0.000000e+00> : vector<16x32xf32>
      %71 = tpu.matmul %69, %70, %cst_64 {dimension_numbers = #tpu.dot_dimension_numbers<[1], [0], [0], [1], [0, 0, 1, 1], [], []>} : vector<16x16xf32>, vector<16x32xf32>, vector<16x32xf32> -> vector<16x32xf32>
      %c0_65 = arith.constant 0 : index
      %c0_66 = arith.constant 0 : index
      %72 = vector.load %arg13[%c0_65, %c0_66] : memref<1x32xf32, #tpu.memory_space<vmem>>, vector<1x32xf32>
      %73 = vector.broadcast %72 : vector<1x32xf32> to vector<16x32xf32>
      %74 = arith.addf %71, %73 : vector<16x32xf32>
      %75 = arith.negf %74 : vector<16x32xf32>
      %76 = math.exp %75 : vector<16x32xf32>
      %cst_67 = arith.constant 1.000000e+00 : f32
      %77 = vector.broadcast %cst_67 : f32 to vector<16x32xf32>
      %78 = arith.addf %77, %76 : vector<16x32xf32>
      %79 = arith.divf %77, %78 : vector<16x32xf32>
      %80 = arith.mulf %67, %79 : vector<16x32xf32>
      %c0_68 = arith.constant 0 : index
      %c0_69 = arith.constant 0 : index
      %c0_70 = arith.constant 0 : index
      %81 = vector.load %arg14[%c0_68, %c0_69, %c0_70] : memref<1x16x32xf32, #tpu.memory_space<vmem>>, vector<1x16x32xf32>
      %82 = vector.shape_cast %81 : vector<1x16x32xf32> to vector<16x32xf32>
      %83 = vector.shape_cast %80 : vector<16x32xf32> to vector<1x16x32xf32>
      tpu.vector_store %arg14[%c0_68, %c0_69, %c0_70], %83 {strides = array<i32>} : memref<1x16x32xf32, #tpu.memory_space<vmem>>, vector<1x16x32xf32>,
    } else {
    }
    return
  }
  func.func @transform_0(%arg0: i32, %arg1: i32, %arg2: i32) -> (i32, i32, i32, i32) {
    %c0_i32 = arith.constant 0 : i32
    %c0_i32_0 = arith.constant 0 : i32
    %c0_i32_1 = arith.constant 0 : i32
    return %arg0, %c0_i32, %arg1, %c0_i32_0 : i32, i32, i32, i32
  }
  func.func @transform_1(%arg0: i32, %arg1: i32, %arg2: i32) -> (i32, i32, i32, i32) {
    %c0_i32 = arith.constant 0 : i32
    %c0_i32_0 = arith.constant 0 : i32
    %c0_i32_1 = arith.constant 0 : i32
    return %arg0, %c0_i32, %arg2, %c0_i32_0 : i32, i32, i32, i32
  }
  func.func @transform_2(%arg0: i32, %arg1: i32, %arg2: i32) -> (i32, i32, i32, i32) {
    %c0_i32 = arith.constant 0 : i32
    %c0_i32_0 = arith.constant 0 : i32
    %c0_i32_1 = arith.constant 0 : i32
    return %arg0, %c0_i32, %arg2, %c0_i32_0 : i32, i32, i32, i32
  }
  func.func @transform_3(%arg0: i32, %arg1: i32, %arg2: i32) -> (i32, i32, i32) {
    %c0_i32 = arith.constant 0 : i32
    %c0_i32_0 = arith.constant 0 : i32
    return %arg0, %arg1, %c0_i32 : i32, i32, i32
  }
  func.func @transform_4(%arg0: i32, %arg1: i32, %arg2: i32) -> (i32, i32, i32, i32) {
    %c0_i32 = arith.constant 0 : i32
    %c0_i32_0 = arith.constant 0 : i32
    return %arg0, %c0_i32, %arg1, %arg2 : i32, i32, i32, i32
  }
  func.func @transform_5(%arg0: i32, %arg1: i32, %arg2: i32) -> (i32, i32, i32) {
    %c0_i32 = arith.constant 0 : i32
    %c0_i32_0 = arith.constant 0 : i32
    return %arg0, %c0_i32, %arg2 : i32, i32, i32
  }
  func.func @transform_6(%arg0: i32, %arg1: i32, %arg2: i32) -> (i32, i32, i32) {
    %c0_i32 = arith.constant 0 : i32
    %c0_i32_0 = arith.constant 0 : i32
    return %arg0, %arg1, %c0_i32 : i32, i32, i32
  }
  func.func @transform_7(%arg0: i32, %arg1: i32, %arg2: i32) -> (i32, i32, i32) {
    %c0_i32 = arith.constant 0 : i32
    %c0_i32_0 = arith.constant 0 : i32
    return %arg0, %arg1, %c0_i32 : i32, i32, i32
  }
  func.func @transform_8(%arg0: i32, %arg1: i32, %arg2: i32) -> (i32, i32) {
    %c0_i32 = arith.constant 0 : i32
    %c0_i32_0 = arith.constant 0 : i32
    %c0_i32_1 = arith.constant 0 : i32
    return %c0_i32, %c0_i32_0 : i32, i32
  }
  func.func @transform_9(%arg0: i32, %arg1: i32, %arg2: i32) -> (i32, i32) {
    %c0_i32 = arith.constant 0 : i32
    %c0_i32_0 = arith.constant 0 : i32
    %c0_i32_1 = arith.constant 0 : i32
    return %c0_i32, %c0_i32_0 : i32, i32
  }
  func.func @transform_10(%arg0: i32, %arg1: i32, %arg2: i32) -> (i32, i32) {
    %c0_i32 = arith.constant 0 : i32
    %c0_i32_0 = arith.constant 0 : i32
    %c0_i32_1 = arith.constant 0 : i32
    return %c0_i32, %c0_i32_0 : i32, i32
  }
  func.func @transform_11(%arg0: i32, %arg1: i32, %arg2: i32) -> (i32, i32, i32) {
    %c0_i32 = arith.constant 0 : i32
    %c0_i32_0 = arith.constant 0 : i32
    return %arg0, %arg1, %c0_i32 : i32, i32, i32
  }
}

</mosaic_0001>

<llo_original>
// kernel: attention_pair_bias.3
$region0: #{attention_pair_bias.3}
  #allocation0 [shape = 'u32[]', space=smem, size = 0x4, offset = 0x4, fixed_abs, tag = 'smem constant byte address 0x4 - core index']
  #allocation1 [shape = 'u32[72,128]{1,0:T(1,128)}', space=vmem, size = 0x9000, scoped, tag = 'internal scratch']
  %s0 = inlined_call_operand.vmem [shape: f32[2,16,32], index: 0, kind: input, shape index: {}]
  %s1 = inlined_call_operand.vmem [shape: f32[2,16,16], index: 1, kind: input, shape index: {}]
  %s2 = inlined_call_operand.vmem [shape: f32[1,16], index: 2, kind: input, shape index: {}]
  %s3 = inlined_call_operand.vmem [shape: f32[16,32], index: 3, kind: input, shape index: {}]
  %s4 = inlined_call_operand.vmem [shape: f32[1,32], index: 4, kind: input, shape index: {}]
  %s5 = inlined_call_operand.vmem [shape: f32[16,32], index: 5, kind: input, shape index: {}]
  %s6 = inlined_call_operand.vmem [shape: f32[32,128], index: 6, kind: input, shape index: {}]
  %s7 = inlined_call_operand.vmem [shape: f32[1,32], index: 7, kind: input, shape index: {}]
  %s8 = inlined_call_operand.vmem [shape: f32[2,4,16,8], index: 8, kind: output, shape index: {0}]
  %s9 = inlined_call_operand.vmem [shape: f32[2,4,16,8], index: 9, kind: output, shape index: {1}]
  %s10 = inlined_call_operand.vmem [shape: f32[2,4,16,8], index: 10, kind: output, shape index: {2}]
  %s11 = inlined_call_operand.vmem [shape: f32[2,16,32], index: 11, kind: output, shape index: {3}]
  %12 = xla_tuple %s8, %s9, %s10, %s11
  %s13 = sld [smem:[#allocation0]]
  $region89: #{attention_pair_bias.3} parent=0
    _
  %s15 = ssub.s32 1, %s13
  %s16 = scalar_select 0, %s15, %s13
  loop: start=0, step=1, limit=4
  $region2: #{attention_pair_bias.3} parent=0 // loop_pre_header
    _
  $region3: #{attention_pair_bias.3} parent=0 // loop_header
    %s18 = sphi 0, %s22
    %p19 = scmp.ge.s32.totalorder %s18, 4
    %s25 = sphi 0, %s37
    %s26 = sphi 0, %s33
    %s27 = sphi 0, %s25
    %s28 = sphi 0, %s26
    %s29 = sphi 0, %s27
    %s30 = sphi 0, %s28
    %s42 = sphi 0, %s44
    %s45 = sphi 0, %s42
    %s46 = sphi 0, %s45
    %s62 = sphi 0, %s46
    %s70 = sphi 0, %s72
    %s73 = sphi 0, %s70
    %s74 = sphi 0, %s73
    %s90 = sphi 0, %s74
    %s94 = sphi 0, %s94
    %s96 = sphi 0, %s94
    %s97 = sphi 0, %s96
    %s111 = sphi 0, %s97
    %s115 = sphi 0, %s115
    %s117 = sphi 0, %s115
    %s118 = sphi 0, %s117
    %s132 = sphi 0, %s118
    %s136 = sphi 0, %s136
    %s138 = sphi 0, %s136
    %s139 = sphi 0, %s138
    %s153 = sphi 0, %s139
    %s157 = sphi 0, %s157
    %s159 = sphi 0, %s157
    %s160 = sphi 0, %s159
    %s174 = sphi 0, %s160
    %s178 = sphi 0, %s178
    %s180 = sphi 0, %s178
    %s181 = sphi 0, %s180
    %s195 = sphi 0, %s181
    %s199 = sphi 0, %s199
    %s201 = sphi 0, %s199
    %s202 = sphi 0, %s201
    %s216 = sphi 0, %s202
    %s224 = sphi 0, %s226
    %s227 = sphi 0, %s224
    %s228 = sphi 0, %s227
    %s244 = sphi 0, %s228
    %s252 = sphi 0, %s254
    %s255 = sphi 0, %s252
    %s256 = sphi 0, %s255
    %s272 = sphi 0, %s256
    %s280 = sphi 0, %s282
    %s283 = sphi 0, %s280
    %s284 = sphi 0, %s283
    %s300 = sphi 0, %s284
    %s308 = sphi 0, %s310
    %s311 = sphi 0, %s308
    %s312 = sphi 0, %s311
    %s328 = sphi 0, %s312
  $region4: #{attention_pair_bias.3} parent=0 // loop_header_branch
    %21 = sbr.rel (%p19) target = $region8
  $region5: #{attention_pair_bias.3} parent=0 // loop_body
    %s23 = ssub.s32 %s18, 1
    %s24 = ssub.s32 %s18, 2
    %s31 = sadd.s32 1, %s26
    %p32 = scmp.ge.s32.totalorder %s31, 1
    %s33 = scalar_select %p32, 0, %s31
    %s34 = sadd.s32 1, %s25
    %s35 = scalar_select %p32, %s34, %s25
    %p36 = scmp.ge.s32.totalorder %s35, 2
    %s37 = scalar_select %p36, 0, %s35
    %s38 = ssub.s32 %s25, %s37
    %s39 = ssub.s32 %s26, %s33
    %s40 = sor.u32 %s38, %s39
    %p41 = scmp.eq.s32.totalorder %s40, 0
    %s43 = sadd.s32 %s42, 1
    %s44 = scalar_select %p41, %s42, %s43
    %p47 = pneg %p41
    %p48 = scmp.eq.s32.totalorder %s18, 1
    %p49 = por %p47, %p48
    %p50 = scmp.ne.s32.totalorder %s42, %s45
    %p51 = scmp.eq.s32.totalorder %s18, 0
    %p52 = por %p50, %p51
    %p53 = scmp.ne.s32.totalorder %s42, %s45
    %p54 = scmp.eq.s32.totalorder %s23, 1
    %p55 = por %p53, %p54
    %p56 = scmp.ne.s32.totalorder %s45, %s46
    %p57 = scmp.eq.s32.totalorder %s23, 0
    %p58 = por %p56, %p57
    %p59 = scmp.ne.s32.totalorder %s45, %s46
    %p60 = scmp.eq.s32.totalorder %s24, 1
    %p61 = por %p59, %p60
    %p63 = scmp.ne.s32.totalorder %s46, %s62
    %p64 = scmp.eq.s32.totalorder %s24, 0
    %p65 = por %p63, %p64
    %s66 = ssub.s32 %s25, %s37
    %s67 = ssub.s32 %s26, %s33
    %s68 = sor.u32 %s66, %s67
    %p69 = scmp.eq.s32.totalorder %s68, 0
    %s71 = sadd.s32 %s70, 1
    %s72 = scalar_select %p69, %s70, %s71
    %p75 = pneg %p69
    %p76 = scmp.eq.s32.totalorder %s18, 1
    %p77 = por %p75, %p76
    %p78 = scmp.ne.s32.totalorder %s70, %s73
    %p79 = scmp.eq.s32.totalorder %s18, 0
    %p80 = por %p78, %p79
    %p81 = scmp.ne.s32.totalorder %s70, %s73
    %p82 = scmp.eq.s32.totalorder %s23, 1
    %p83 = por %p81, %p82
    %p84 = scmp.ne.s32.totalorder %s73, %s74
    %p85 = scmp.eq.s32.totalorder %s23, 0
    %p86 = por %p84, %p85
    %p87 = scmp.ne.s32.totalorder %s73, %s74
    %p88 = scmp.eq.s32.totalorder %s24, 1
    %p89 = por %p87, %p88
    %p91 = scmp.ne.s32.totalorder %s74, %s90
    %p92 = scmp.eq.s32.totalorder %s24, 0
    %p93 = por %p91, %p92
    %s95 = sadd.s32 %s94, 1
    %p98 = scmp.eq.s32.totalorder %s18, 1
    %p99 = scmp.ne.s32.totalorder %s94, %s96
    %p100 = scmp.eq.s32.totalorder %s18, 0
    %p101 = por %p99, %p100
    %p102 = scmp.ne.s32.totalorder %s94, %s96
    %p103 = scmp.eq.s32.totalorder %s23, 1
    %p104 = por %p102, %p103
    %p105 = scmp.ne.s32.totalorder %s96, %s97
    %p106 = scmp.eq.s32.totalorder %s23, 0
    %p107 = por %p105, %p106
    %p108 = scmp.ne.s32.totalorder %s96, %s97
    %p109 = scmp.eq.s32.totalorder %s24, 1
    %p110 = por %p108, %p109
    %p112 = scmp.ne.s32.totalorder %s97, %s111
    %p113 = scmp.eq.s32.totalorder %s24, 0
    %p114 = por %p112, %p113
    %s116 = sadd.s32 %s115, 1
    %p119 = scmp.eq.s32.totalorder %s18, 1
    %p120 = scmp.ne.s32.totalorder %s115, %s117
    %p121 = scmp.eq.s32.totalorder %s18, 0
    %p122 = por %p120, %p121
    %p123 = scmp.ne.s32.totalorder %s115, %s117
    %p124 = scmp.eq.s32.totalorder %s23, 1
    %p125 = por %p123, %p124
    %p126 = scmp.ne.s32.totalorder %s117, %s118
    %p127 = scmp.eq.s32.totalorder %s23, 0
    %p128 = por %p126, %p127
    %p129 = scmp.ne.s32.totalorder %s117, %s118
    %p130 = scmp.eq.s32.totalorder %s24, 1
    %p131 = por %p129, %p130
    %p133 = scmp.ne.s32.totalorder %s118, %s132
    %p134 = scmp.eq.s32.totalorder %s24, 0
    %p135 = por %p133, %p134
    %s137 = sadd.s32 %s136, 1
    %p140 = scmp.eq.s32.totalorder %s18, 1
    %p141 = scmp.ne.s32.totalorder %s136, %s138
    %p142 = scmp.eq.s32.totalorder %s18, 0
    %p143 = por %p141, %p142
    %p144 = scmp.ne.s32.totalorder %s136, %s138
    %p145 = scmp.eq.s32.totalorder %s23, 1
    %p146 = por %p144, %p145
    %p147 = scmp.ne.s32.totalorder %s138, %s139
    %p148 = scmp.eq.s32.totalorder %s23, 0
    %p149 = por %p147, %p148
    %p150 = scmp.ne.s32.totalorder %s138, %s139
    %p151 = scmp.eq.s32.totalorder %s24, 1
    %p152 = por %p150, %p151
    %p154 = scmp.ne.s32.totalorder %s139, %s153
    %p155 = scmp.eq.s32.totalorder %s24, 0
    %p156 = por %p154, %p155
    %s158 = sadd.s32 %s157, 1
    %p161 = scmp.eq.s32.totalorder %s18, 1
    %p162 = scmp.ne.s32.totalorder %s157, %s159
    %p163 = scmp.eq.s32.totalorder %s18, 0
    %p164 = por %p162, %p163
    %p165 = scmp.ne.s32.totalorder %s157, %s159
    %p166 = scmp.eq.s32.totalorder %s23, 1
    %p167 = por %p165, %p166
    %p168 = scmp.ne.s32.totalorder %s159, %s160
    %p169 = scmp.eq.s32.totalorder %s23, 0
    %p170 = por %p168, %p169
    %p171 = scmp.ne.s32.totalorder %s159, %s160
    %p172 = scmp.eq.s32.totalorder %s24, 1
    %p173 = por %p171, %p172
    %p175 = scmp.ne.s32.totalorder %s160, %s174
    %p176 = scmp.eq.s32.totalorder %s24, 0
    %p177 = por %p175, %p176
    %s179 = sadd.s32 %s178, 1
    %p182 = scmp.eq.s32.totalorder %s18, 1
    %p183 = scmp.ne.s32.totalorder %s178, %s180
    %p184 = scmp.eq.s32.totalorder %s18, 0
    %p185 = por %p183, %p184
    %p186 = scmp.ne.s32.totalorder %s178, %s180
    %p187 = scmp.eq.s32.totalorder %s23, 1
    %p188 = por %p186, %p187
    %p189 = scmp.ne.s32.totalorder %s180, %s181
    %p190 = scmp.eq.s32.totalorder %s23, 0
    %p191 = por %p189, %p190
    %p192 = scmp.ne.s32.totalorder %s180, %s181
    %p193 = scmp.eq.s32.totalorder %s24, 1
    %p194 = por %p192, %p193
    %p196 = scmp.ne.s32.totalorder %s181, %s195
    %p197 = scmp.eq.s32.totalorder %s24, 0
    %p198 = por %p196, %p197
    %s200 = sadd.s32 %s199, 1
    %p203 = scmp.eq.s32.totalorder %s18, 1
    %p204 = scmp.ne.s32.totalorder %s199, %s201
    %p205 = scmp.eq.s32.totalorder %s18, 0
    %p206 = por %p204, %p205
    %p207 = scmp.ne.s32.totalorder %s199, %s201
    %p208 = scmp.eq.s32.totalorder %s23, 1
    %p209 = por %p207, %p208
    %p210 = scmp.ne.s32.totalorder %s201, %s202
    %p211 = scmp.eq.s32.totalorder %s23, 0
    %p212 = por %p210, %p211
    %p213 = scmp.ne.s32.totalorder %s201, %s202
    %p214 = scmp.eq.s32.totalorder %s24, 1
    %p215 = por %p213, %p214
    %p217 = scmp.ne.s32.totalorder %s202, %s216
    %p218 = scmp.eq.s32.totalorder %s24, 0
    %p219 = por %p217, %p218
    %s220 = ssub.s32 %s25, %s37
    %s221 = ssub.s32 %s26, %s33
    %s222 = sor.u32 %s220, %s221
    %p223 = scmp.eq.s32.totalorder %s222, 0
    %s225 = sadd.s32 %s224, 1
    %s226 = scalar_select %p223, %s224, %s225
    %p229 = pneg %p223
    %p230 = scmp.eq.s32.totalorder %s18, 1
    %p231 = por %p229, %p230
    %p232 = scmp.ne.s32.totalorder %s224, %s227
    %p233 = scmp.eq.s32.totalorder %s18, 0
    %p234 = por %p232, %p233
    %p235 = scmp.ne.s32.totalorder %s224, %s227
    %p236 = scmp.eq.s32.totalorder %s23, 1
    %p237 = por %p235, %p236
    %p238 = scmp.ne.s32.totalorder %s227, %s228
    %p239 = scmp.eq.s32.totalorder %s23, 0
    %p240 = por %p238, %p239
    %p241 = scmp.ne.s32.totalorder %s227, %s228
    %p242 = scmp.eq.s32.totalorder %s24, 1
    %p243 = por %p241, %p242
    %p245 = scmp.ne.s32.totalorder %s228, %s244
    %p246 = scmp.eq.s32.totalorder %s24, 0
    %p247 = por %p245, %p246
    %s248 = ssub.s32 %s25, %s37
    %s249 = ssub.s32 %s26, %s33
    %s250 = sor.u32 %s248, %s249
    %p251 = scmp.eq.s32.totalorder %s250, 0
    %s253 = sadd.s32 %s252, 1
    %s254 = scalar_select %p251, %s252, %s253
    %p257 = pneg %p251
    %p258 = scmp.eq.s32.totalorder %s18, 1
    %p259 = por %p257, %p258
    %p260 = scmp.ne.s32.totalorder %s252, %s255
    %p261 = scmp.eq.s32.totalorder %s18, 0
    %p262 = por %p260, %p261
    %p263 = scmp.ne.s32.totalorder %s252, %s255
    %p264 = scmp.eq.s32.totalorder %s23, 1
    %p265 = por %p263, %p264
    %p266 = scmp.ne.s32.totalorder %s255, %s256
    %p267 = scmp.eq.s32.totalorder %s23, 0
    %p268 = por %p266, %p267
    %p269 = scmp.ne.s32.totalorder %s255, %s256
    %p270 = scmp.eq.s32.totalorder %s24, 1
    %p271 = por %p269, %p270
    %p273 = scmp.ne.s32.totalorder %s256, %s272
    %p274 = scmp.eq.s32.totalorder %s24, 0
    %p275 = por %p273, %p274
    %s276 = ssub.s32 %s25, %s37
    %s277 = ssub.s32 %s26, %s33
    %s278 = sor.u32 %s276, %s277
    %p279 = scmp.eq.s32.totalorder %s278, 0
    %s281 = sadd.s32 %s280, 1
    %s282 = scalar_select %p279, %s280, %s281
    %p285 = pneg %p279
    %p286 = scmp.eq.s32.totalorder %s18, 1
    %p287 = por %p285, %p286
    %p288 = scmp.ne.s32.totalorder %s280, %s283
    %p289 = scmp.eq.s32.totalorder %s18, 0
    %p290 = por %p288, %p289
    %p291 = scmp.ne.s32.totalorder %s280, %s283
    %p292 = scmp.eq.s32.totalorder %s23, 1
    %p293 = por %p291, %p292
    %p294 = scmp.ne.s32.totalorder %s283, %s284
    %p295 = scmp.eq.s32.totalorder %s23, 0
    %p296 = por %p294, %p295
    %p297 = scmp.ne.s32.totalorder %s283, %s284
    %p298 = scmp.eq.s32.totalorder %s24, 1
    %p299 = por %p297, %p298
    %p301 = scmp.ne.s32.totalorder %s284, %s300
    %p302 = scmp.eq.s32.totalorder %s24, 0
    %p303 = por %p301, %p302
    %s304 = ssub.s32 %s25, %s37
    %s305 = ssub.s32 %s26, %s33
    %s306 = sor.u32 %s304, %s305
    %p307 = scmp.eq.s32.totalorder %s306, 0
    %s309 = sadd.s32 %s308, 1
    %s310 = scalar_select %p307, %s308, %s309
    %p313 = pneg %p307
    %p314 = scmp.eq.s32.totalorder %s18, 1
    %p315 = por %p313, %p314
    %p316 = scmp.ne.s32.totalorder %s308, %s311
    %p317 = scmp.eq.s32.totalorder %s18, 0
    %p318 = por %p316, %p317
    %p319 = scmp.ne.s32.totalorder %s308, %s311
    %p320 = scmp.eq.s32.totalorder %s23, 1
    %p321 = por %p319, %p320
    %p322 = scmp.ne.s32.totalorder %s311, %s312
    %p323 = scmp.eq.s32.totalorder %s23, 0
    %p324 = por %p322, %p323
    %p325 = scmp.ne.s32.totalorder %s311, %s312
    %p326 = scmp.eq.s32.totalorder %s24, 1
    %p327 = por %p325, %p326
    %p329 = scmp.ne.s32.totalorder %s312, %s328
    %p330 = scmp.eq.s32.totalorder %s24, 0
    %p331 = por %p329, %p330
    %p332 = scmp.le.s32.totalorder 1, %s18
    %p333 = scmp.lt.s32.totalorder %s18, 3
    %p334 = pnand %p332, %p333
    %p335 = pneg %p334
    // Predicated region
    $region9: #{attention_pair_bias.3} parent=5 // pred_check
      _
    $region10: #{attention_pair_bias.3} parent=5 // pred_check_branch
      %337 = sbr.rel (%p334) target = $region12
    $region11: #{attention_pair_bias.3} parent=5 // pred_region
      %s338 = ssub.s32 %s18, 1
      // Predicated region
      $region13: #{attention_pair_bias.3} parent=11 // pred_check
        %p339 = pneg %p107
      $region14: #{attention_pair_bias.3} parent=11 // pred_check_branch
        %341 = sbr.rel (%p339) target = $region16
      $region15: #{attention_pair_bias.3} parent=11 // pred_region
        _
      $region16: #{attention_pair_bias.3} parent=11 // pred_fallthru
        _
      // Predicated region
      $region17: #{attention_pair_bias.3} parent=11 // pred_check
        %p342 = pneg %p128
      $region18: #{attention_pair_bias.3} parent=11 // pred_check_branch
        %344 = sbr.rel (%p342) target = $region20
      $region19: #{attention_pair_bias.3} parent=11 // pred_region
        _
      $region20: #{attention_pair_bias.3} parent=11 // pred_fallthru
        _
      // Predicated region
      $region21: #{attention_pair_bias.3} parent=11 // pred_check
        %p345 = pneg %p149
      $region22: #{attention_pair_bias.3} parent=11 // pred_check_branch
        %347 = sbr.rel (%p345) target = $region24
      $region23: #{attention_pair_bias.3} parent=11 // pred_region
        _
      $region24: #{attention_pair_bias.3} parent=11 // pred_fallthru
        _
      // Predicated region
      $region25: #{attention_pair_bias.3} parent=11 // pred_check
        %p348 = pneg %p170
      $region26: #{attention_pair_bias.3} parent=11 // pred_check_branch
        %350 = sbr.rel (%p348) target = $region28
      $region27: #{attention_pair_bias.3} parent=11 // pred_region
        _
      $region28: #{attention_pair_bias.3} parent=11 // pred_fallthru
        _
      // Predicated region
      $region29: #{attention_pair_bias.3} parent=11 // pred_check
        %p351 = pneg %p191
      $region30: #{attention_pair_bias.3} parent=11 // pred_check_branch
        %353 = sbr.rel (%p351) target = $region32
      $region31: #{attention_pair_bias.3} parent=11 // pred_region
        _
      $region32: #{attention_pair_bias.3} parent=11 // pred_fallthru
        _
      // Predicated region
      $region33: #{attention_pair_bias.3} parent=11 // pred_check
        %p354 = pneg %p212
      $region34: #{attention_pair_bias.3} parent=11 // pred_check_branch
        %356 = sbr.rel (%p354) target = $region36
      $region35: #{attention_pair_bias.3} parent=11 // pred_region
        _
      $region36: #{attention_pair_bias.3} parent=11 // pred_fallthru
        _
    $region12: #{attention_pair_bias.3} parent=5 // pred_fallthru
      _
    %p357 = scmp.lt.s32.totalorder %s18, 2
    // Predicated region
    $region37: #{attention_pair_bias.3} parent=5 // pred_check
      %p358 = pneg %p357
    $region38: #{attention_pair_bias.3} parent=5 // pred_check_branch
      %360 = sbr.rel (%p358) target = $region40
    $region39: #{attention_pair_bias.3} parent=5 // pred_region
      // Predicated region
      $region41: #{attention_pair_bias.3} parent=39 // pred_check
        %p361 = pneg %p52
      $region42: #{attention_pair_bias.3} parent=39 // pred_check_branch
        %363 = sbr.rel (%p361) target = $region44
      $region43: #{attention_pair_bias.3} parent=39 // pred_region
        %s364 = smul.u32 2, %s26
        %p365 = scmp.lt.s32.totalorder %s25, 1
        %s366 = scalar_select %p365, %s25, 1
        %p367 = scmp.lt.s32.totalorder %s364, 1
        %s368 = scalar_select %p367, %s364, 1
        %s369 = smul.addr %s366, 2
        %s370 = sadd.s32 %s368, %s369
        %s371 = smul.addr %s370, 8
        %s372 = scalar_lea.vmem %s0, %s371
        %s373 = smul.u32 2, %s26
      $region44: #{attention_pair_bias.3} parent=39 // pred_fallthru
        _
      // Predicated region
      $region45: #{attention_pair_bias.3} parent=39 // pred_check
        %p374 = pneg %p80
      $region46: #{attention_pair_bias.3} parent=39 // pred_check_branch
        %376 = sbr.rel (%p374) target = $region48
      $region47: #{attention_pair_bias.3} parent=39 // pred_region
        %s377 = smul.u32 2, %s26
        %p378 = scmp.lt.s32.totalorder %s25, 1
        %s379 = scalar_select %p378, %s25, 1
        %p380 = scmp.lt.s32.totalorder %s377, 1
        %s381 = scalar_select %p380, %s377, 1
        %s382 = smul.addr %s379, 2
        %s383 = sadd.s32 %s381, %s382
        %s384 = smul.addr %s383, 8
        %s385 = scalar_lea.vmem %s1, %s384
        %s386 = smul.u32 2, %s26
      $region48: #{attention_pair_bias.3} parent=39 // pred_fallthru
        _
    $region40: #{attention_pair_bias.3} parent=5 // pred_fallthru
      _
    %p387 = scmp.le.s32.totalorder 1, %s18
    %p388 = scmp.lt.s32.totalorder %s18, 3
    %p389 = pnand %p387, %p388
    %p390 = pneg %p389
    // Predicated region
    $region49: #{attention_pair_bias.3} parent=5 // pred_check
      _
    $region50: #{attention_pair_bias.3} parent=5 // pred_check_branch
      %392 = sbr.rel (%p389) target = $region52
    $region51: #{attention_pair_bias.3} parent=5 // pred_region
      %s393 = ssub.s32 %s18, 1
      %s394 = smul.u32 2, %s28
      %p395 = scmp.lt.s32.totalorder %s27, 1
      %s396 = scalar_select %p395, %s27, 1
      %p397 = scmp.lt.s32.totalorder %s394, 1
      %s398 = scalar_select %p397, %s394, 1
      %s399 = smul.addr %s396, 2
      %s400 = sadd.s32 %s398, %s399
      %s401 = smul.addr %s400, 8
      %s402 = scalar_lea.vmem %s0, %s401
      %p403 = pneg %p58
      %p404 = pneg %p55
      %s405 = smul.u32 2, %s28
      %p406 = scmp.lt.s32.totalorder %s27, 1
      %s407 = scalar_select %p406, %s27, 1
      %p408 = scmp.lt.s32.totalorder %s405, 1
      %s409 = scalar_select %p408, %s405, 1
      %s410 = smul.addr %s407, 2
      %s411 = sadd.s32 %s409, %s410
      %s412 = smul.addr %s411, 8
      %s413 = scalar_lea.vmem %s1, %s412
      %p414 = pneg %p86
      %p415 = pneg %p83
      %p416 = pneg %p107
      %p417 = pneg %p104
      %p418 = pneg %p128
      %p419 = pneg %p125
      %p420 = pneg %p149
      %p421 = pneg %p146
      %p422 = pneg %p170
      %p423 = pneg %p167
      %p424 = pneg %p191
      %p425 = pneg %p188
      %p426 = pneg %p212
      %p427 = pneg %p209
      %p428 = pneg %p240
      %p429 = pneg %p237
      %s430 = smul.u32 2, %s28
      %p431 = scmp.lt.s32.totalorder %s27, 1
      %s432 = scalar_select %p431, %s27, 1
      %p433 = scmp.lt.s32.totalorder %s430, 1
      %s434 = scalar_select %p433, %s430, 1
      %s435 = smul.addr %s432, 8
      %s436 = sadd.s32 %s434, %s435
      %s437 = smul.addr %s436, 8
      %s438 = scalar_lea.vmem %s8, %s437
      %p439 = pneg %p268
      %p440 = pneg %p265
      %s441 = smul.u32 2, %s28
      %p442 = scmp.lt.s32.totalorder %s27, 1
      %s443 = scalar_select %p442, %s27, 1
      %p444 = scmp.lt.s32.totalorder %s441, 1
      %s445 = scalar_select %p444, %s441, 1
      %s446 = smul.addr %s443, 8
      %s447 = sadd.s32 %s445, %s446
      %s448 = smul.addr %s447, 8
      %s449 = scalar_lea.vmem %s9, %s448
      %p450 = pneg %p296
      %p451 = pneg %p293
      %s452 = smul.u32 2, %s28
      %p453 = scmp.lt.s32.totalorder %s27, 1
      %s454 = scalar_select %p453, %s27, 1
      %p455 = scmp.lt.s32.totalorder %s452, 1
      %s456 = scalar_select %p455, %s452, 1
      %s457 = smul.addr %s454, 8
      %s458 = sadd.s32 %s456, %s457
      %s459 = smul.addr %s458, 8
      %s460 = scalar_lea.vmem %s10, %s459
      %p461 = pneg %p324
      %p462 = pneg %p321
      %s463 = smul.u32 2, %s28
      %p464 = scmp.lt.s32.totalorder %s27, 1
      %s465 = scalar_select %p464, %s27, 1
      %p466 = scmp.lt.s32.totalorder %s463, 1
      %s467 = scalar_select %p466, %s463, 1
      %s468 = smul.addr %s465, 2
      %s469 = sadd.s32 %s467, %s468
      %s470 = smul.addr %s469, 8
      %s471 = scalar_lea.vmem %s11, %s470
      %s472 = smul.u32 2, %s28
      %p473 = scmp.lt.s32.totalorder %s27, 1
      %s474 = scalar_select %p473, %s27, 1
      %p475 = scmp.lt.s32.totalorder %s472, 1
      %s476 = scalar_select %p475, %s472, 1
      %s477 = smul.addr %s474, 2
      %s478 = sadd.s32 %s476, %s477
      %s479 = smul.addr %s478, 8
      %s480 = scalar_lea.vmem %s0, %s479
      %s481 = smul.u32 2, %s28
      %s482 = smul.u32 2, %s28
      %p483 = scmp.lt.s32.totalorder %s27, 1
      %s484 = scalar_select %p483, %s27, 1
      %p485 = scmp.lt.s32.totalorder %s482, 1
      %s486 = scalar_select %p485, %s482, 1
      %s487 = smul.addr %s484, 2
      %s488 = sadd.s32 %s486, %s487
      %s489 = smul.addr %s488, 8
      %s490 = scalar_lea.vmem %s1, %s489
      %s491 = smul.u32 2, %s28
      %s492 = smul.u32 2, %s28
      %p493 = scmp.lt.s32.totalorder %s27, 1
      %s494 = scalar_select %p493, %s27, 1
      %p495 = scmp.lt.s32.totalorder %s492, 1
      %s496 = scalar_select %p495, %s492, 1
      %s497 = smul.addr %s494, 8
      %s498 = sadd.s32 %s496, %s497
      %s499 = smul.addr %s498, 8
      %s500 = scalar_lea.vmem %s8, %s499
      %s501 = smul.u32 2, %s28
      %s502 = smul.u32 2, %s28
      %p503 = scmp.lt.s32.totalorder %s27, 1
      %s504 = scalar_select %p503, %s27, 1
      %p505 = scmp.lt.s32.totalorder %s502, 1
      %s506 = scalar_select %p505, %s502, 1
      %s507 = smul.addr %s504, 8
      %s508 = sadd.s32 %s506, %s507
      %s509 = smul.addr %s508, 8
      %s510 = scalar_lea.vmem %s9, %s509
      %s511 = smul.u32 2, %s28
      %s512 = smul.u32 2, %s28
      %p513 = scmp.lt.s32.totalorder %s27, 1
      %s514 = scalar_select %p513, %s27, 1
      %p515 = scmp.lt.s32.totalorder %s512, 1
      %s516 = scalar_select %p515, %s512, 1
      %s517 = smul.addr %s514, 8
      %s518 = sadd.s32 %s516, %s517
      %s519 = smul.addr %s518, 8
      %s520 = scalar_lea.vmem %s10, %s519
      %s521 = smul.u32 2, %s28
      %s522 = smul.u32 2, %s28
      %p523 = scmp.lt.s32.totalorder %s27, 1
      %s524 = scalar_select %p523, %s27, 1
      %p525 = scmp.lt.s32.totalorder %s522, 1
      %s526 = scalar_select %p525, %s522, 1
      %s527 = smul.addr %s524, 2
      %s528 = sadd.s32 %s526, %s527
      %s529 = smul.addr %s528, 8
      %s530 = scalar_lea.vmem %s11, %s529
      %s531 = smul.u32 2, %s28
      %v532 = vld [vmem:[%s480] sm:$0xff]
      %v533 = vld [vmem:[%s480 + $0x8] sm:$0xff]
      %v534 = vld [vmem:[%s490] sm:$0xff]
      %v535 = vld [vmem:[%s490 + $0x8] sm:$0xff]
      %v536 = vld [vmem:[%s2] sm:$0x1]
      %v537 = vld [vmem:[%s3] sm:$0xff]
      %v538 = vld [vmem:[%s3 + $0x8] sm:$0xff]
      %v539 = vld [vmem:[%s4] sm:$0x1]
      %v540 = vld [vmem:[%s5] sm:$0xff]
      %v541 = vld [vmem:[%s5 + $0x8] sm:$0xff]
      %vm542 = vcmask 261120
      %v543 = vsel %vm542, %v532, 0.0
      %544 = vadd.xlane.f32.xlu0 %v543
      %v545 = vpop.xlane.xlu0 %544
      %v546 = vsel %vm542, %v533, 0.0
      %547 = vadd.xlane.f32.xlu0 %v546
      %v548 = vpop.xlane.xlu0 %547
      %v549 = vrcp.pop 32.0
      %v550 = vmul.f32 32.0, %v549
      %v551 = vsub.f32 1.0, %v550
      %v552 = vmul.f32 %v549, %v551
      %v553 = vadd.f32 %v549, %v552
      %vm554 = vweird.f32 %v549
      %v555 = vsel %vm554, %v549, %v553
      %v556 = vmul.f32 %v545, %v555
      %v557 = vmul.f32 %v548, %v555
      %v558 = vsub.f32 %v532, %v556
      %v559 = vsub.f32 %v533, %v557
      %v560 = vmul.f32 %v558, %v558
      %v561 = vmul.f32 %v559, %v559
      %v562 = vsel %vm542, %v560, 0.0
      %563 = vadd.xlane.f32.xlu0 %v562
      %v564 = vpop.xlane.xlu0 %563
      %v565 = vsel %vm542, %v561, 0.0
      %566 = vadd.xlane.f32.xlu0 %v565
      %v567 = vpop.xlane.xlu0 %566
      %v568 = vmul.f32 %v564, %v555
      %v569 = vmul.f32 %v567, %v555
      %v570 = vadd.f32 %v568, 1e-05
      %v571 = vadd.f32 %v569, 1e-05
      %v572 = vrsqrt.pop %v570
      %v573 = vmul.f32 %v572, %v570
      %v574 = vmul.f32 %v573, %v572
      %v575 = vmul.f32 0.5, %v574
      %v576 = vsub.f32 1.5, %v575
      %v577 = vmul.f32 %v572, %v576
      %vm578 = vweird.f32 %v570
      %vm579 = vweird.f32 %v572
      %vm580 = vmor %vm578, %vm579
      %v581 = vsel %vm580, %v572, %v577
      %v582 = vrsqrt.pop %v571
      %v583 = vmul.f32 %v582, %v571
      %v584 = vmul.f32 %v583, %v582
      %v585 = vmul.f32 0.5, %v584
      %v586 = vsub.f32 1.5, %v585
      %v587 = vmul.f32 %v582, %v586
      %vm588 = vweird.f32 %v571
      %vm589 = vweird.f32 %v582
      %vm590 = vmor %vm588, %vm589
      %v591 = vsel %vm590, %v582, %v587
      %v592 = vmul.f32 %v558, %v581
      %v593 = vmul.f32 %v559, %v591
      %vm594 = vcmask 130048
      %v595 = vsel %vm594, %v534, 0.0
      %596 = vadd.xlane.f32.xlu0 %v595
      %v597 = vpop.xlane.xlu0 %596
      %v598 = vsel %vm594, %v535, 0.0
      %599 = vadd.xlane.f32.xlu0 %v598
      %v600 = vpop.xlane.xlu0 %599
      %v601 = vrcp.pop 16.0
      %v602 = vmul.f32 16.0, %v601
      %v603 = vsub.f32 1.0, %v602
      %v604 = vmul.f32 %v601, %v603
      %v605 = vadd.f32 %v601, %v604
      %vm606 = vweird.f32 %v601
      %v607 = vsel %vm606, %v601, %v605
      %v608 = vmul.f32 %v597, %v607
      %v609 = vmul.f32 %v600, %v607
      %v610 = vsub.f32 %v534, %v608
      %v611 = vsub.f32 %v535, %v609
      %v612 = vmul.f32 %v610, %v610
      %v613 = vmul.f32 %v611, %v611
      %v614 = vsel %vm594, %v612, 0.0
      %615 = vadd.xlane.f32.xlu0 %v614
      %v616 = vpop.xlane.xlu0 %615
      %v617 = vsel %vm594, %v613, 0.0
      %618 = vadd.xlane.f32.xlu0 %v617
      %v619 = vpop.xlane.xlu0 %618
      %v620 = vmul.f32 %v616, %v607
      %v621 = vmul.f32 %v619, %v607
      %v622 = vadd.f32 %v620, 1e-05
      %v623 = vadd.f32 %v621, 1e-05
      %v624 = vrsqrt.pop %v622
      %v625 = vmul.f32 %v624, %v622
      %v626 = vmul.f32 %v625, %v624
      %v627 = vmul.f32 0.5, %v626
      %v628 = vsub.f32 1.5, %v627
      %v629 = vmul.f32 %v624, %v628
      %vm630 = vweird.f32 %v622
      %vm631 = vweird.f32 %v624
      %vm632 = vmor %vm630, %vm631
      %v633 = vsel %vm632, %v624, %v629
      %v634 = vrsqrt.pop %v623
      %v635 = vmul.f32 %v634, %v623
      %v636 = vmul.f32 %v635, %v634
      %v637 = vmul.f32 0.5, %v636
      %v638 = vsub.f32 1.5, %v637
      %v639 = vmul.f32 %v634, %v638
      %vm640 = vweird.f32 %v623
      %vm641 = vweird.f32 %v634
      %vm642 = vmor %vm640, %vm641
      %v643 = vsel %vm642, %v634, %v639
      %v644 = vmul.f32 %v610, %v633
      %v645 = vmul.f32 %v611, %v643
      %v647 = vperm.slane %v536, 0
      %v649 = vmul.f32 %v644, %v647
      %v650 = vmul.f32 %v645, %v647
      %v652 = vperm.slane %v539, 0
      %v655 = vsel %vm594, %v649, 0
      %v658 = vsel %vm594, %v650, 0
      %660 = vmatpush.msra.mxu0 0.0
      %661 = vmatpush.msra.mxu0 0.0
      %662 = vmatpush.msra.mxu0 0.0
      %663 = vmatpush.msra.mxu0 0.0
      %664 = vmatpush.msra.mxu0 0.0
      %665 = vmatpush.msra.mxu0 0.0
      %666 = vmatpush.msra.mxu0 0.0
      %667 = vmatpush.msra.mxu0 0.0
      %668 = vmatpush.msra.mxu0 0.0
      %669 = vmatpush.msra.mxu0 0.0
      %670 = vmatpush.msra.mxu0 0.0
      %671 = vmatpush.msra.mxu0 0.0
      %672 = vmatpush.msra.mxu0 0.0
      %673 = vmatpush.msra.mxu0 0.0
      %674 = vmatpush.msra.mxu0 %v538
      %675 = vmatpush.msra.mxu0 %v537
      %676 = vmatmul.f32.gmra.mxu0 %v655
      %v677 = vpop.f32.mrf.mxu0
      %v678 = vadd.f32 %v652, %v677
      %679 = vmatmul.f32.gmra.mxu0 %v658
      %v680 = vpop.f32.mrf.mxu0
      %v681 = vadd.f32 %v652, %v680
      %682 = vdwg.mxu0
      %v683 = vxor.u32 %v678, 2147483648
      %v684 = vxor.u32 %v681, 2147483648
      %v685 = vmul.f32 %v683, 1.442695
      %v686 = vpow.pop %v685
      %v687 = vmul.f32 %v684, 1.442695
      %v688 = vpow.pop %v687
      %v689 = vadd.f32 %v686, 1.0
      %v690 = vadd.f32 %v688, 1.0
      %v691 = vrcp.pop %v689
      %v692 = vmul.f32 %v689, %v691
      %v693 = vsub.f32 1.0, %v692
      %v694 = vmul.f32 %v691, %v693
      %v695 = vadd.f32 %v691, %v694
      %vm696 = vweird.f32 %v689
      %vm697 = vweird.f32 %v691
      %vm698 = vmor %vm696, %vm697
      %v699 = vsel %vm698, %v691, %v695
      %v700 = vand.u32 2147483647, %v689
      %vm701 = vcmp.eq.f32.partialorder %v700, 8.507059e+37
      %v702 = vand.u32 %v689, 2147483648
      %v703 = vor.u32 1.1754944e-38, %v702
      %v704 = vsel %vm701, %v703, %v699
      %v705 = vmul.f32 1.0, %v704
      %v706 = vrcp.pop %v690
      %v707 = vmul.f32 %v690, %v706
      %v708 = vsub.f32 1.0, %v707
      %v709 = vmul.f32 %v706, %v708
      %v710 = vadd.f32 %v706, %v709
      %vm711 = vweird.f32 %v690
      %vm712 = vweird.f32 %v706
      %vm713 = vmor %vm711, %vm712
      %v714 = vsel %vm713, %v706, %v710
      %v715 = vand.u32 2147483647, %v690
      %vm716 = vcmp.eq.f32.partialorder %v715, 8.507059e+37
      %v717 = vand.u32 %v690, 2147483648
      %v718 = vor.u32 1.1754944e-38, %v717
      %v719 = vsel %vm716, %v718, %v714
      %v720 = vmul.f32 1.0, %v719
      %721 = vmatpush.msra.mxu0 0.0
      %722 = vmatpush.msra.mxu0 0.0
      %723 = vmatpush.msra.mxu0 0.0
      %724 = vmatpush.msra.mxu0 0.0
      %725 = vmatpush.msra.mxu0 0.0
      %726 = vmatpush.msra.mxu0 0.0
      %727 = vmatpush.msra.mxu0 0.0
      %728 = vmatpush.msra.mxu0 0.0
      %729 = vmatpush.msra.mxu0 0.0
      %730 = vmatpush.msra.mxu0 0.0
      %731 = vmatpush.msra.mxu0 0.0
      %732 = vmatpush.msra.mxu0 0.0
      %733 = vmatpush.msra.mxu0 0.0
      %734 = vmatpush.msra.mxu0 0.0
      %735 = vmatpush.msra.mxu0 %v541
      %736 = vmatpush.msra.mxu0 %v540
      %737 = vmatmul.f32.gmra.mxu0 %v655
      %v738 = vpop.f32.mrf.mxu0
      %v739 = vadd.f32 0.0, %v738
      %740 = vmatmul.f32.gmra.mxu0 %v658
      %v741 = vpop.f32.mrf.mxu0
      %v742 = vadd.f32 0.0, %v741
      %743 = vdwg.mxu0
      %v744 = vmul.f32 %v592, %v705
      %v745 = vmul.f32 %v593, %v720
      %v746 = vadd.f32 %v744, %v739
      %v747 = vadd.f32 %v745, %v742
      %v748 = vld [vmem:[%s6] sm:$0xff]
      %v749 = vld [vmem:[%s6 + $0x8] sm:$0xff]
      %v750 = vld [vmem:[%s6 + $0x10] sm:$0xff]
      %v751 = vld [vmem:[%s6 + $0x18] sm:$0xff]
      %v753 = vsel %vm542, %v746, 0
      %v756 = vsel %vm542, %v747, 0
      %758 = vmatpush.msra.mxu0 0.0
      %759 = vmatpush.msra.mxu0 0.0
      %760 = vmatpush.msra.mxu0 0.0
      %761 = vmatpush.msra.mxu0 0.0
      %762 = vmatpush.msra.mxu0 0.0
      %763 = vmatpush.msra.mxu0 0.0
      %764 = vmatpush.msra.mxu0 0.0
      %765 = vmatpush.msra.mxu0 0.0
      %766 = vmatpush.msra.mxu0 0.0
      %767 = vmatpush.msra.mxu0 0.0
      %768 = vmatpush.msra.mxu0 0.0
      %769 = vmatpush.msra.mxu0 0.0
      %770 = vmatpush.msra.mxu0 %v751
      %771 = vmatpush.msra.mxu0 %v750
      %772 = vmatpush.msra.mxu0 %v749
      %773 = vmatpush.msra.mxu0 %v748
      %774 = vmatmul.f32.gmra.mxu0 %v753
      %v775 = vpop.f32.mrf.mxu0
      %v776 = vadd.f32 0.0, %v775
      %777 = vmatmul.f32.gmra.mxu0 %v756
      %v778 = vpop.f32.mrf.mxu0
      %v779 = vadd.f32 0.0, %v778
      %780 = vdwg.mxu0
      %v781 = vld [vmem:[%s7] sm:$0x1]
      %v783 = vperm.slane %v781, 0
      %v785 = vadd.f32 %v776, %v783
      %v786 = vadd.f32 %v779, %v783
      %v787 = vmul.f32 %v785, 0.35355338
      %v788 = vmul.f32 %v786, 0.35355338
      %v789 = vxor.u32 %v776, 2147483648
      %v790 = vxor.u32 %v779, 2147483648
      %v791 = vmul.f32 %v789, 1.442695
      %v792 = vpow.pop %v791
      %v793 = vmul.f32 %v790, 1.442695
      %v794 = vpow.pop %v793
      %v795 = vadd.f32 %v792, 1.0
      %v796 = vadd.f32 %v794, 1.0
      %v797 = vrcp.pop %v795
      %v798 = vmul.f32 %v795, %v797
      %v799 = vsub.f32 1.0, %v798
      %v800 = vmul.f32 %v797, %v799
      %v801 = vadd.f32 %v797, %v800
      %vm802 = vweird.f32 %v795
      %vm803 = vweird.f32 %v797
      %vm804 = vmor %vm802, %vm803
      %v805 = vsel %vm804, %v797, %v801
      %v806 = vand.u32 2147483647, %v795
      %vm807 = vcmp.eq.f32.partialorder %v806, 8.507059e+37
      %v808 = vand.u32 %v795, 2147483648
      %v809 = vor.u32 1.1754944e-38, %v808
      %v810 = vsel %vm807, %v809, %v805
      %v811 = vmul.f32 1.0, %v810
      %v812 = vrcp.pop %v796
      %v813 = vmul.f32 %v796, %v812
      %v814 = vsub.f32 1.0, %v813
      %v815 = vmul.f32 %v812, %v814
      %v816 = vadd.f32 %v812, %v815
      %vm817 = vweird.f32 %v796
      %vm818 = vweird.f32 %v812
      %vm819 = vmor %vm817, %vm818
      %v820 = vsel %vm819, %v812, %v816
      %v821 = vand.u32 2147483647, %v796
      %vm822 = vcmp.eq.f32.partialorder %v821, 8.507059e+37
      %v823 = vand.u32 %v796, 2147483648
      %v824 = vor.u32 1.1754944e-38, %v823
      %v825 = vsel %vm822, %v824, %v820
      %v826 = vmul.f32 1.0, %v825
      %829 = vrot.lane.b32.xlu0 %v811, 32
      %v830 = vpop.permute.xlu0 %829
      %831 = vrot.lane.b32.xlu0 %v826, 32
      %v832 = vpop.permute.xlu0 %831
      %835 = vst.msk [vmem:[%s530] sm:$0xff] %vm542, %v830
      %836 = vst.msk [vmem:[%s530 + $0x8] sm:$0xff] %vm542, %v832
      %vm837 = vcmask 64512
      %838 = vst.msk [vmem:[%s500] sm:$0xff] %vm837, %v787
      %839 = vst.msk [vmem:[%s500 + $0x8] sm:$0xff] %vm837, %v788
      %842 = vrot.lane.b32.xlu0 %v776, 96
      %v843 = vpop.permute.xlu0 %842
      %844 = vrot.lane.b32.xlu0 %v779, 96
      %v845 = vpop.permute.xlu0 %844
      %848 = vst.msk [vmem:[%s510] sm:$0xff] %vm837, %v843
      %849 = vst.msk [vmem:[%s510 + $0x8] sm:$0xff] %vm837, %v845
      %850 = vrot.lane.b32.xlu0 %v776, 64
      %v851 = vpop.permute.xlu0 %850
      %852 = vrot.lane.b32.xlu0 %v779, 64
      %v853 = vpop.permute.xlu0 %852
      %856 = vst.msk [vmem:[%s520] sm:$0xff] %vm837, %v851
      %857 = vst.msk [vmem:[%s520 + $0x8] sm:$0xff] %vm837, %v853
      %860 = vrot.lane.b32.xlu0 %v787, 120
      %v861 = vpop.permute.xlu0 %860
      %862 = vrot.lane.b32.xlu0 %v788, 120
      %v863 = vpop.permute.xlu0 %862
      %s866 = scalar_lea.vmem %s500, 16
      %867 = vst.msk [vmem:[%s866] sm:$0xff] %vm837, %v861
      %868 = vst.msk [vmem:[%s866 + $0x8] sm:$0xff] %vm837, %v863
      %869 = vrot.lane.b32.xlu0 %v776, 88
      %v870 = vpop.permute.xlu0 %869
      %871 = vrot.lane.b32.xlu0 %v779, 88
      %v872 = vpop.permute.xlu0 %871
      %s875 = scalar_lea.vmem %s510, 16
      %876 = vst.msk [vmem:[%s875] sm:$0xff] %vm837, %v870
      %877 = vst.msk [vmem:[%s875 + $0x8] sm:$0xff] %vm837, %v872
      %878 = vrot.lane.b32.xlu0 %v776, 56
      %v879 = vpop.permute.xlu0 %878
      %880 = vrot.lane.b32.xlu0 %v779, 56
      %v881 = vpop.permute.xlu0 %880
      %s884 = scalar_lea.vmem %s520, 16
      %885 = vst.msk [vmem:[%s884] sm:$0xff] %vm837, %v879
      %886 = vst.msk [vmem:[%s884 + $0x8] sm:$0xff] %vm837, %v881
      %887 = vrot.lane.b32.xlu0 %v787, 112
      %v888 = vpop.permute.xlu0 %887
      %889 = vrot.lane.b32.xlu0 %v788, 112
      %v890 = vpop.permute.xlu0 %889
      %s893 = scalar_lea.vmem %s500, 32
      %894 = vst.msk [vmem:[%s893] sm:$0xff] %vm837, %v888
      %895 = vst.msk [vmem:[%s893 + $0x8] sm:$0xff] %vm837, %v890
      %896 = vrot.lane.b32.xlu0 %v776, 80
      %v897 = vpop.permute.xlu0 %896
      %898 = vrot.lane.b32.xlu0 %v779, 80
      %v899 = vpop.permute.xlu0 %898
      %s902 = scalar_lea.vmem %s510, 32
      %903 = vst.msk [vmem:[%s902] sm:$0xff] %vm837, %v897
      %904 = vst.msk [vmem:[%s902 + $0x8] sm:$0xff] %vm837, %v899
      %905 = vrot.lane.b32.xlu0 %v776, 48
      %v906 = vpop.permute.xlu0 %905
      %907 = vrot.lane.b32.xlu0 %v779, 48
      %v908 = vpop.permute.xlu0 %907
      %s911 = scalar_lea.vmem %s520, 32
      %912 = vst.msk [vmem:[%s911] sm:$0xff] %vm837, %v906
      %913 = vst.msk [vmem:[%s911 + $0x8] sm:$0xff] %vm837, %v908
      %914 = vrot.lane.b32.xlu0 %v787, 104
      %v915 = vpop.permute.xlu0 %914
      %916 = vrot.lane.b32.xlu0 %v788, 104
      %v917 = vpop.permute.xlu0 %916
      %s920 = scalar_lea.vmem %s500, 48
      %921 = vst.msk [vmem:[%s920] sm:$0xff] %vm837, %v915
      %922 = vst.msk [vmem:[%s920 + $0x8] sm:$0xff] %vm837, %v917
      %923 = vrot.lane.b32.xlu0 %v776, 72
      %v924 = vpop.permute.xlu0 %923
      %925 = vrot.lane.b32.xlu0 %v779, 72
      %v926 = vpop.permute.xlu0 %925
      %s929 = scalar_lea.vmem %s510, 48
      %930 = vst.msk [vmem:[%s929] sm:$0xff] %vm837, %v924
      %931 = vst.msk [vmem:[%s929 + $0x8] sm:$0xff] %vm837, %v926
      %932 = vrot.lane.b32.xlu0 %v776, 40
      %v933 = vpop.permute.xlu0 %932
      %934 = vrot.lane.b32.xlu0 %v779, 40
      %v935 = vpop.permute.xlu0 %934
      %s938 = scalar_lea.vmem %s520, 48
      %939 = vst.msk [vmem:[%s938] sm:$0xff] %vm837, %v933
      %940 = vst.msk [vmem:[%s938 + $0x8] sm:$0xff] %vm837, %v935
      %s941 = smul.u32 2, %s28
      %p942 = scmp.lt.s32.totalorder %s27, 1
      %s943 = scalar_select %p942, %s27, 1
      %p944 = scmp.lt.s32.totalorder %s941, 1
      %s945 = scalar_select %p944, %s941, 1
      %s946 = smul.addr %s943, 8
      %s947 = sadd.s32 %s945, %s946
      %s948 = smul.addr %s947, 8
      %s949 = scalar_lea.vmem %s8, %s948
      %s950 = smul.u32 2, %s28
      %p951 = scmp.lt.s32.totalorder %s27, 1
      %s952 = scalar_select %p951, %s27, 1
      %p953 = scmp.lt.s32.totalorder %s950, 1
      %s954 = scalar_select %p953, %s950, 1
      %s955 = smul.addr %s952, 8
      %s956 = sadd.s32 %s954, %s955
      %s957 = smul.addr %s956, 8
      %s958 = scalar_lea.vmem %s9, %s957
      %s959 = smul.u32 2, %s28
      %p960 = scmp.lt.s32.totalorder %s27, 1
      %s961 = scalar_select %p960, %s27, 1
      %p962 = scmp.lt.s32.totalorder %s959, 1
      %s963 = scalar_select %p962, %s959, 1
      %s964 = smul.addr %s961, 8
      %s965 = sadd.s32 %s963, %s964
      %s966 = smul.addr %s965, 8
      %s967 = scalar_lea.vmem %s10, %s966
      %s968 = smul.u32 2, %s28
      %p969 = scmp.lt.s32.totalorder %s27, 1
      %s970 = scalar_select %p969, %s27, 1
      %p971 = scmp.lt.s32.totalorder %s968, 1
      %s972 = scalar_select %p971, %s968, 1
      %s973 = smul.addr %s970, 2
      %s974 = sadd.s32 %s972, %s973
      %s975 = smul.addr %s974, 8
      %s976 = scalar_lea.vmem %s11, %s975
      // Predicated region
      $region53: #{attention_pair_bias.3} parent=51 // pred_check
        %p977 = pneg %p237
      $region54: #{attention_pair_bias.3} parent=51 // pred_check_branch
        %979 = sbr.rel (%p977) target = $region56
      $region55: #{attention_pair_bias.3} parent=51 // pred_region
        %s980 = smul.u32 2, %s28
      $region56: #{attention_pair_bias.3} parent=51 // pred_fallthru
        _
      // Predicated region
      $region57: #{attention_pair_bias.3} parent=51 // pred_check
        %p981 = pneg %p265
      $region58: #{attention_pair_bias.3} parent=51 // pred_check_branch
        %983 = sbr.rel (%p981) target = $region60
      $region59: #{attention_pair_bias.3} parent=51 // pred_region
        %s984 = smul.u32 2, %s28
      $region60: #{attention_pair_bias.3} parent=51 // pred_fallthru
        _
      // Predicated region
      $region61: #{attention_pair_bias.3} parent=51 // pred_check
        %p985 = pneg %p293
      $region62: #{attention_pair_bias.3} parent=51 // pred_check_branch
        %987 = sbr.rel (%p985) target = $region64
      $region63: #{attention_pair_bias.3} parent=51 // pred_region
        %s988 = smul.u32 2, %s28
      $region64: #{attention_pair_bias.3} parent=51 // pred_fallthru
        _
      // Predicated region
      $region65: #{attention_pair_bias.3} parent=51 // pred_check
        %p989 = pneg %p321
      $region66: #{attention_pair_bias.3} parent=51 // pred_check_branch
        %991 = sbr.rel (%p989) target = $region68
      $region67: #{attention_pair_bias.3} parent=51 // pred_region
        %s992 = smul.u32 2, %s28
      $region68: #{attention_pair_bias.3} parent=51 // pred_fallthru
        _
    $region52: #{attention_pair_bias.3} parent=5 // pred_fallthru
      _
    %p993 = scmp.le.s32.totalorder 2, %s18
    // Predicated region
    $region69: #{attention_pair_bias.3} parent=5 // pred_check
      %p994 = pneg %p993
    $region70: #{attention_pair_bias.3} parent=5 // pred_check_branch
      %996 = sbr.rel (%p994) target = $region72
    $region71: #{attention_pair_bias.3} parent=5 // pred_region
      %s997 = ssub.s32 %s18, 2
      // Predicated region
      $region73: #{attention_pair_bias.3} parent=71 // pred_check
        %p998 = pneg %p243
      $region74: #{attention_pair_bias.3} parent=71 // pred_check_branch
        %1000 = sbr.rel (%p998) target = $region76
      $region75: #{attention_pair_bias.3} parent=71 // pred_region
        %s1001 = smul.u32 2, %s30
        %p1002 = scmp.lt.s32.totalorder %s29, 1
        %s1003 = scalar_select %p1002, %s29, 1
        %p1004 = scmp.lt.s32.totalorder %s1001, 1
        %s1005 = scalar_select %p1004, %s1001, 1
        %s1006 = smul.addr %s1003, 8
        %s1007 = sadd.s32 %s1005, %s1006
        %s1008 = smul.addr %s1007, 8
        %s1009 = scalar_lea.vmem %s8, %s1008
      $region76: #{attention_pair_bias.3} parent=71 // pred_fallthru
        _
      // Predicated region
      $region77: #{attention_pair_bias.3} parent=71 // pred_check
        %p1010 = pneg %p271
      $region78: #{attention_pair_bias.3} parent=71 // pred_check_branch
        %1012 = sbr.rel (%p1010) target = $region80
      $region79: #{attention_pair_bias.3} parent=71 // pred_region
        %s1013 = smul.u32 2, %s30
        %p1014 = scmp.lt.s32.totalorder %s29, 1
        %s1015 = scalar_select %p1014, %s29, 1
        %p1016 = scmp.lt.s32.totalorder %s1013, 1
        %s1017 = scalar_select %p1016, %s1013, 1
        %s1018 = smul.addr %s1015, 8
        %s1019 = sadd.s32 %s1017, %s1018
        %s1020 = smul.addr %s1019, 8
        %s1021 = scalar_lea.vmem %s9, %s1020
      $region80: #{attention_pair_bias.3} parent=71 // pred_fallthru
        _
      // Predicated region
      $region81: #{attention_pair_bias.3} parent=71 // pred_check
        %p1022 = pneg %p299
      $region82: #{attention_pair_bias.3} parent=71 // pred_check_branch
        %1024 = sbr.rel (%p1022) target = $region84
      $region83: #{attention_pair_bias.3} parent=71 // pred_region
        %s1025 = smul.u32 2, %s30
        %p1026 = scmp.lt.s32.totalorder %s29, 1
        %s1027 = scalar_select %p1026, %s29, 1
        %p1028 = scmp.lt.s32.totalorder %s1025, 1
        %s1029 = scalar_select %p1028, %s1025, 1
        %s1030 = smul.addr %s1027, 8
        %s1031 = sadd.s32 %s1029, %s1030
        %s1032 = smul.addr %s1031, 8
        %s1033 = scalar_lea.vmem %s10, %s1032
      $region84: #{attention_pair_bias.3} parent=71 // pred_fallthru
        _
      // Predicated region
      $region85: #{attention_pair_bias.3} parent=71 // pred_check
        %p1034 = pneg %p327
      $region86: #{attention_pair_bias.3} parent=71 // pred_check_branch
        %1036 = sbr.rel (%p1034) target = $region88
      $region87: #{attention_pair_bias.3} parent=71 // pred_region
        %s1037 = smul.u32 2, %s30
        %p1038 = scmp.lt.s32.totalorder %s29, 1
        %s1039 = scalar_select %p1038, %s29, 1
        %p1040 = scmp.lt.s32.totalorder %s1037, 1
        %s1041 = scalar_select %p1040, %s1037, 1
        %s1042 = smul.addr %s1039, 2
        %s1043 = sadd.s32 %s1041, %s1042
        %s1044 = smul.addr %s1043, 8
        %s1045 = scalar_lea.vmem %s11, %s1044
      $region88: #{attention_pair_bias.3} parent=71 // pred_fallthru
        _
    $region72: #{attention_pair_bias.3} parent=5 // pred_fallthru
      _
  $region6: #{attention_pair_bias.3} parent=0 // loop_footer
    %s22 = sadd.s32 1, %s18
  $region7: #{attention_pair_bias.3} parent=0 // loop_footer_branch
    %17 = sbr.rel target = $region3
  $region8: #{attention_pair_bias.3} parent=0 // loop_exit
    _

// kernel: attention_pair_bias.4
$region0: #{attention_pair_bias.4}
  #allocation0 [shape = 'u32[]', space=smem, size = 0x4, offset = 0x4, fixed_abs, tag = 'smem constant byte address 0x4 - core index']
  #allocation1 [shape = 'u32[72,128]{1,0:T(1,128)}', space=vmem, size = 0x9000, scoped, tag = 'internal scratch']
  %s0 = inlined_call_operand.vmem [shape: f32[2,256,8], index: 0, kind: input, shape index: {}]
  %s1 = inlined_call_operand.vmem [shape: f32[1,8], index: 1, kind: input, shape index: {}]
  %s2 = inlined_call_operand.vmem [shape: f32[1,8], index: 2, kind: input, shape index: {}]
  %s3 = inlined_call_operand.vmem [shape: f32[4,8], index: 3, kind: input, shape index: {}]
  %s4 = inlined_call_operand.vmem [shape: f32[2,4,256], index: 4, kind: output, shape index: {}]
  %s5 = sld [smem:[#allocation0]]
  $region49: #{attention_pair_bias.4} parent=0
    _
  %s7 = ssub.s32 1, %s5
  %s8 = scalar_select 0, %s7, %s5
  loop: start=0, step=1, limit=4
  $region2: #{attention_pair_bias.4} parent=0 // loop_pre_header
    _
  $region3: #{attention_pair_bias.4} parent=0 // loop_header
    %s10 = sphi 0, %s14
    %p11 = scmp.ge.s32.totalorder %s10, 4
    %s17 = sphi 0, %s29
    %s18 = sphi 0, %s25
    %s19 = sphi 0, %s17
    %s20 = sphi 0, %s18
    %s21 = sphi 0, %s19
    %s22 = sphi 0, %s20
    %s34 = sphi 0, %s36
    %s37 = sphi 0, %s34
    %s38 = sphi 0, %s37
    %s54 = sphi 0, %s38
    %s58 = sphi 0, %s58
    %s60 = sphi 0, %s58
    %s61 = sphi 0, %s60
    %s75 = sphi 0, %s61
    %s79 = sphi 0, %s79
    %s81 = sphi 0, %s79
    %s82 = sphi 0, %s81
    %s96 = sphi 0, %s82
    %s100 = sphi 0, %s100
    %s102 = sphi 0, %s100
    %s103 = sphi 0, %s102
    %s117 = sphi 0, %s103
    %s125 = sphi 0, %s127
    %s128 = sphi 0, %s125
    %s129 = sphi 0, %s128
    %s145 = sphi 0, %s129
  $region4: #{attention_pair_bias.4} parent=0 // loop_header_branch
    %13 = sbr.rel (%p11) target = $region8
  $region5: #{attention_pair_bias.4} parent=0 // loop_body
    %s15 = ssub.s32 %s10, 1
    %s16 = ssub.s32 %s10, 2
    %s23 = sadd.s32 1, %s18
    %p24 = scmp.ge.s32.totalorder %s23, 1
    %s25 = scalar_select %p24, 0, %s23
    %s26 = sadd.s32 1, %s17
    %s27 = scalar_select %p24, %s26, %s17
    %p28 = scmp.ge.s32.totalorder %s27, 2
    %s29 = scalar_select %p28, 0, %s27
    %s30 = ssub.s32 %s17, %s29
    %s31 = ssub.s32 %s18, %s25
    %s32 = sor.u32 %s30, %s31
    %p33 = scmp.eq.s32.totalorder %s32, 0
    %s35 = sadd.s32 %s34, 1
    %s36 = scalar_select %p33, %s34, %s35
    %p39 = pneg %p33
    %p40 = scmp.eq.s32.totalorder %s10, 1
    %p41 = por %p39, %p40
    %p42 = scmp.ne.s32.totalorder %s34, %s37
    %p43 = scmp.eq.s32.totalorder %s10, 0
    %p44 = por %p42, %p43
    %p45 = scmp.ne.s32.totalorder %s34, %s37
    %p46 = scmp.eq.s32.totalorder %s15, 1
    %p47 = por %p45, %p46
    %p48 = scmp.ne.s32.totalorder %s37, %s38
    %p49 = scmp.eq.s32.totalorder %s15, 0
    %p50 = por %p48, %p49
    %p51 = scmp.ne.s32.totalorder %s37, %s38
    %p52 = scmp.eq.s32.totalorder %s16, 1
    %p53 = por %p51, %p52
    %p55 = scmp.ne.s32.totalorder %s38, %s54
    %p56 = scmp.eq.s32.totalorder %s16, 0
    %p57 = por %p55, %p56
    %s59 = sadd.s32 %s58, 1
    %p62 = scmp.eq.s32.totalorder %s10, 1
    %p63 = scmp.ne.s32.totalorder %s58, %s60
    %p64 = scmp.eq.s32.totalorder %s10, 0
    %p65 = por %p63, %p64
    %p66 = scmp.ne.s32.totalorder %s58, %s60
    %p67 = scmp.eq.s32.totalorder %s15, 1
    %p68 = por %p66, %p67
    %p69 = scmp.ne.s32.totalorder %s60, %s61
    %p70 = scmp.eq.s32.totalorder %s15, 0
    %p71 = por %p69, %p70
    %p72 = scmp.ne.s32.totalorder %s60, %s61
    %p73 = scmp.eq.s32.totalorder %s16, 1
    %p74 = por %p72, %p73
    %p76 = scmp.ne.s32.totalorder %s61, %s75
    %p77 = scmp.eq.s32.totalorder %s16, 0
    %p78 = por %p76, %p77
    %s80 = sadd.s32 %s79, 1
    %p83 = scmp.eq.s32.totalorder %s10, 1
    %p84 = scmp.ne.s32.totalorder %s79, %s81
    %p85 = scmp.eq.s32.totalorder %s10, 0
    %p86 = por %p84, %p85
    %p87 = scmp.ne.s32.totalorder %s79, %s81
    %p88 = scmp.eq.s32.totalorder %s15, 1
    %p89 = por %p87, %p88
    %p90 = scmp.ne.s32.totalorder %s81, %s82
    %p91 = scmp.eq.s32.totalorder %s15, 0
    %p92 = por %p90, %p91
    %p93 = scmp.ne.s32.totalorder %s81, %s82
    %p94 = scmp.eq.s32.totalorder %s16, 1
    %p95 = por %p93, %p94
    %p97 = scmp.ne.s32.totalorder %s82, %s96
    %p98 = scmp.eq.s32.totalorder %s16, 0
    %p99 = por %p97, %p98
    %s101 = sadd.s32 %s100, 1
    %p104 = scmp.eq.s32.totalorder %s10, 1
    %p105 = scmp.ne.s32.totalorder %s100, %s102
    %p106 = scmp.eq.s32.totalorder %s10, 0
    %p107 = por %p105, %p106
    %p108 = scmp.ne.s32.totalorder %s100, %s102
    %p109 = scmp.eq.s32.totalorder %s15, 1
    %p110 = por %p108, %p109
    %p111 = scmp.ne.s32.totalorder %s102, %s103
    %p112 = scmp.eq.s32.totalorder %s15, 0
    %p113 = por %p111, %p112
    %p114 = scmp.ne.s32.totalorder %s102, %s103
    %p115 = scmp.eq.s32.totalorder %s16, 1
    %p116 = por %p114, %p115
    %p118 = scmp.ne.s32.totalorder %s103, %s117
    %p119 = scmp.eq.s32.totalorder %s16, 0
    %p120 = por %p118, %p119
    %s121 = ssub.s32 %s17, %s29
    %s122 = ssub.s32 %s18, %s25
    %s123 = sor.u32 %s121, %s122
    %p124 = scmp.eq.s32.totalorder %s123, 0
    %s126 = sadd.s32 %s125, 1
    %s127 = scalar_select %p124, %s125, %s126
    %p130 = pneg %p124
    %p131 = scmp.eq.s32.totalorder %s10, 1
    %p132 = por %p130, %p131
    %p133 = scmp.ne.s32.totalorder %s125, %s128
    %p134 = scmp.eq.s32.totalorder %s10, 0
    %p135 = por %p133, %p134
    %p136 = scmp.ne.s32.totalorder %s125, %s128
    %p137 = scmp.eq.s32.totalorder %s15, 1
    %p138 = por %p136, %p137
    %p139 = scmp.ne.s32.totalorder %s128, %s129
    %p140 = scmp.eq.s32.totalorder %s15, 0
    %p141 = por %p139, %p140
    %p142 = scmp.ne.s32.totalorder %s128, %s129
    %p143 = scmp.eq.s32.totalorder %s16, 1
    %p144 = por %p142, %p143
    %p146 = scmp.ne.s32.totalorder %s129, %s145
    %p147 = scmp.eq.s32.totalorder %s16, 0
    %p148 = por %p146, %p147
    %p149 = scmp.le.s32.totalorder 1, %s10
    %p150 = scmp.lt.s32.totalorder %s10, 3
    %p151 = pnand %p149, %p150
    %p152 = pneg %p151
    // Predicated region
    $region9: #{attention_pair_bias.4} parent=5 // pred_check
      _
    $region10: #{attention_pair_bias.4} parent=5 // pred_check_branch
      %154 = sbr.rel (%p151) target = $region12
    $region11: #{attention_pair_bias.4} parent=5 // pred_region
      %s155 = ssub.s32 %s10, 1
      // Predicated region
      $region13: #{attention_pair_bias.4} parent=11 // pred_check
        %p156 = pneg %p71
      $region14: #{attention_pair_bias.4} parent=11 // pred_check_branch
        %158 = sbr.rel (%p156) target = $region16
      $region15: #{attention_pair_bias.4} parent=11 // pred_region
        _
      $region16: #{attention_pair_bias.4} parent=11 // pred_fallthru
        _
      // Predicated region
      $region17: #{attention_pair_bias.4} parent=11 // pred_check
        %p159 = pneg %p92
      $region18: #{attention_pair_bias.4} parent=11 // pred_check_branch
        %161 = sbr.rel (%p159) target = $region20
      $region19: #{attention_pair_bias.4} parent=11 // pred_region
        _
      $region20: #{attention_pair_bias.4} parent=11 // pred_fallthru
        _
      // Predicated region
      $region21: #{attention_pair_bias.4} parent=11 // pred_check
        %p162 = pneg %p113
      $region22: #{attention_pair_bias.4} parent=11 // pred_check_branch
        %164 = sbr.rel (%p162) target = $region24
      $region23: #{attention_pair_bias.4} parent=11 // pred_region
        _
      $region24: #{attention_pair_bias.4} parent=11 // pred_fallthru
        _
    $region12: #{attention_pair_bias.4} parent=5 // pred_fallthru
      _
    %p165 = scmp.lt.s32.totalorder %s10, 2
    // Predicated region
    $region25: #{attention_pair_bias.4} parent=5 // pred_check
      %p166 = pneg %p165
    $region26: #{attention_pair_bias.4} parent=5 // pred_check_branch
      %168 = sbr.rel (%p166) target = $region28
    $region27: #{attention_pair_bias.4} parent=5 // pred_region
      // Predicated region
      $region29: #{attention_pair_bias.4} parent=27 // pred_check
        %p169 = pneg %p44
      $region30: #{attention_pair_bias.4} parent=27 // pred_check_branch
        %171 = sbr.rel (%p169) target = $region32
      $region31: #{attention_pair_bias.4} parent=27 // pred_region
        %s172 = smul.u32 32, %s18
        %p173 = scmp.lt.s32.totalorder %s17, 1
        %s174 = scalar_select %p173, %s17, 1
        %p175 = scmp.lt.s32.totalorder %s172, 31
        %s176 = scalar_select %p175, %s172, 31
        %s177 = smul.addr %s174, 32
        %s178 = sadd.s32 %s176, %s177
        %s179 = smul.addr %s178, 8
        %s180 = scalar_lea.vmem %s0, %s179
        %s181 = smul.u32 32, %s18
      $region32: #{attention_pair_bias.4} parent=27 // pred_fallthru
        _
    $region28: #{attention_pair_bias.4} parent=5 // pred_fallthru
      _
    %p182 = scmp.le.s32.totalorder 1, %s10
    %p183 = scmp.lt.s32.totalorder %s10, 3
    %p184 = pnand %p182, %p183
    %p185 = pneg %p184
    // Predicated region
    $region33: #{attention_pair_bias.4} parent=5 // pred_check
      _
    $region34: #{attention_pair_bias.4} parent=5 // pred_check_branch
      %187 = sbr.rel (%p184) target = $region36
    $region35: #{attention_pair_bias.4} parent=5 // pred_region
      %s188 = ssub.s32 %s10, 1
      %s189 = smul.u32 32, %s20
      %p190 = scmp.lt.s32.totalorder %s19, 1
      %s191 = scalar_select %p190, %s19, 1
      %p192 = scmp.lt.s32.totalorder %s189, 31
      %s193 = scalar_select %p192, %s189, 31
      %s194 = smul.addr %s191, 32
      %s195 = sadd.s32 %s193, %s194
      %s196 = smul.addr %s195, 8
      %s197 = scalar_lea.vmem %s0, %s196
      %p198 = pneg %p50
      %p199 = pneg %p47
      %p200 = pneg %p71
      %p201 = pneg %p68
      %p202 = pneg %p92
      %p203 = pneg %p89
      %p204 = pneg %p113
      %p205 = pneg %p110
      %p206 = pneg %p141
      %p207 = pneg %p138
      %s208 = smul.u32 2, %s20
      %p209 = scmp.lt.s32.totalorder %s19, 1
      %s210 = scalar_select %p209, %s19, 1
      %p211 = scmp.lt.s32.totalorder %s208, 1
      %s212 = scalar_select %p211, %s208, 1
      %s213 = smul.addr %s210, 2
      %s214 = sadd.s32 %s212, %s213
      %s215 = smul.addr %s214, 4
      %s216 = scalar_lea.vmem %s4, %s215
      %s217 = smul.u32 32, %s20
      %p218 = scmp.lt.s32.totalorder %s19, 1
      %s219 = scalar_select %p218, %s19, 1
      %p220 = scmp.lt.s32.totalorder %s217, 31
      %s221 = scalar_select %p220, %s217, 31
      %s222 = smul.addr %s219, 32
      %s223 = sadd.s32 %s221, %s222
      %s224 = smul.addr %s223, 8
      %s225 = scalar_lea.vmem %s0, %s224
      %s226 = smul.u32 32, %s20
      %s227 = smul.u32 2, %s20
      %p228 = scmp.lt.s32.totalorder %s19, 1
      %s229 = scalar_select %p228, %s19, 1
      %p230 = scmp.lt.s32.totalorder %s227, 1
      %s231 = scalar_select %p230, %s227, 1
      %s232 = smul.addr %s229, 2
      %s233 = sadd.s32 %s231, %s232
      %s234 = smul.addr %s233, 4
      %s235 = scalar_lea.vmem %s4, %s234
      %s236 = smul.u32 2, %s20
      %v237 = vld [vmem:[%s225] sm:$0xff]
      %v238 = vld [vmem:[%s225 + $0x8] sm:$0xff]
      %v239 = vld [vmem:[%s225 + $0x10] sm:$0xff]
      %v240 = vld [vmem:[%s225 + $0x18] sm:$0xff]
      %v241 = vld [vmem:[%s225 + $0x20] sm:$0xff]
      %v242 = vld [vmem:[%s225 + $0x28] sm:$0xff]
      %v243 = vld [vmem:[%s225 + $0x30] sm:$0xff]
      %v244 = vld [vmem:[%s225 + $0x38] sm:$0xff]
      %v245 = vld [vmem:[%s225 + $0x40] sm:$0xff]
      %v246 = vld [vmem:[%s225 + $0x48] sm:$0xff]
      %v247 = vld [vmem:[%s225 + $0x50] sm:$0xff]
      %v248 = vld [vmem:[%s225 + $0x58] sm:$0xff]
      %v249 = vld [vmem:[%s225 + $0x60] sm:$0xff]
      %v250 = vld [vmem:[%s225 + $0x68] sm:$0xff]
      %v251 = vld [vmem:[%s225 + $0x70] sm:$0xff]
      %v252 = vld [vmem:[%s225 + $0x78] sm:$0xff]
      %v253 = vld [vmem:[%s225 + $0x80] sm:$0xff]
      %v254 = vld [vmem:[%s225 + $0x88] sm:$0xff]
      %v255 = vld [vmem:[%s225 + $0x90] sm:$0xff]
      %v256 = vld [vmem:[%s225 + $0x98] sm:$0xff]
      %v257 = vld [vmem:[%s225 + $0xa0] sm:$0xff]
      %v258 = vld [vmem:[%s225 + $0xa8] sm:$0xff]
      %v259 = vld [vmem:[%s225 + $0xb0] sm:$0xff]
      %v260 = vld [vmem:[%s225 + $0xb8] sm:$0xff]
      %v261 = vld [vmem:[%s225 + $0xc0] sm:$0xff]
      %v262 = vld [vmem:[%s225 + $0xc8] sm:$0xff]
      %v263 = vld [vmem:[%s225 + $0xd0] sm:$0xff]
      %v264 = vld [vmem:[%s225 + $0xd8] sm:$0xff]
      %v265 = vld [vmem:[%s225 + $0xe0] sm:$0xff]
      %v266 = vld [vmem:[%s225 + $0xe8] sm:$0xff]
      %v267 = vld [vmem:[%s225 + $0xf0] sm:$0xff]
      %v268 = vld [vmem:[%s225 + $0xf8] sm:$0xff]
      %vm269 = vcmask 64512
      %v270 = vsel %vm269, %v237, 0.0
      %271 = vadd.xlane.f32.xlu0 %v270
      %v272 = vpop.xlane.xlu0 %271
      %v273 = vsel %vm269, %v238, 0.0
      %274 = vadd.xlane.f32.xlu0 %v273
      %v275 = vpop.xlane.xlu0 %274
      %v276 = vsel %vm269, %v239, 0.0
      %277 = vadd.xlane.f32.xlu0 %v276
      %v278 = vpop.xlane.xlu0 %277
      %v279 = vsel %vm269, %v240, 0.0
      %280 = vadd.xlane.f32.xlu0 %v279
      %v281 = vpop.xlane.xlu0 %280
      %v282 = vsel %vm269, %v241, 0.0
      %283 = vadd.xlane.f32.xlu0 %v282
      %v284 = vpop.xlane.xlu0 %283
      %v285 = vsel %vm269, %v242, 0.0
      %286 = vadd.xlane.f32.xlu0 %v285
      %v287 = vpop.xlane.xlu0 %286
      %v288 = vsel %vm269, %v243, 0.0
      %289 = vadd.xlane.f32.xlu0 %v288
      %v290 = vpop.xlane.xlu0 %289
      %v291 = vsel %vm269, %v244, 0.0
      %292 = vadd.xlane.f32.xlu0 %v291
      %v293 = vpop.xlane.xlu0 %292
      %v294 = vsel %vm269, %v245, 0.0
      %295 = vadd.xlane.f32.xlu0 %v294
      %v296 = vpop.xlane.xlu0 %295
      %v297 = vsel %vm269, %v246, 0.0
      %298 = vadd.xlane.f32.xlu0 %v297
      %v299 = vpop.xlane.xlu0 %298
      %v300 = vsel %vm269, %v247, 0.0
      %301 = vadd.xlane.f32.xlu0 %v300
      %v302 = vpop.xlane.xlu0 %301
      %v303 = vsel %vm269, %v248, 0.0
      %304 = vadd.xlane.f32.xlu0 %v303
      %v305 = vpop.xlane.xlu0 %304
      %v306 = vsel %vm269, %v249, 0.0
      %307 = vadd.xlane.f32.xlu0 %v306
      %v308 = vpop.xlane.xlu0 %307
      %v309 = vsel %vm269, %v250, 0.0
      %310 = vadd.xlane.f32.xlu0 %v309
      %v311 = vpop.xlane.xlu0 %310
      %v312 = vsel %vm269, %v251, 0.0
      %313 = vadd.xlane.f32.xlu0 %v312
      %v314 = vpop.xlane.xlu0 %313
      %v315 = vsel %vm269, %v252, 0.0
      %316 = vadd.xlane.f32.xlu0 %v315
      %v317 = vpop.xlane.xlu0 %316
      %v318 = vsel %vm269, %v253, 0.0
      %319 = vadd.xlane.f32.xlu0 %v318
      %v320 = vpop.xlane.xlu0 %319
      %v321 = vsel %vm269, %v254, 0.0
      %322 = vadd.xlane.f32.xlu0 %v321
      %v323 = vpop.xlane.xlu0 %322
      %v324 = vsel %vm269, %v255, 0.0
      %325 = vadd.xlane.f32.xlu0 %v324
      %v326 = vpop.xlane.xlu0 %325
      %v327 = vsel %vm269, %v256, 0.0
      %328 = vadd.xlane.f32.xlu0 %v327
      %v329 = vpop.xlane.xlu0 %328
      %v330 = vsel %vm269, %v257, 0.0
      %331 = vadd.xlane.f32.xlu0 %v330
      %v332 = vpop.xlane.xlu0 %331
      %v333 = vsel %vm269, %v258, 0.0
      %334 = vadd.xlane.f32.xlu0 %v333
      %v335 = vpop.xlane.xlu0 %334
      %v336 = vsel %vm269, %v259, 0.0
      %337 = vadd.xlane.f32.xlu0 %v336
      %v338 = vpop.xlane.xlu0 %337
      %v339 = vsel %vm269, %v260, 0.0
      %340 = vadd.xlane.f32.xlu0 %v339
      %v341 = vpop.xlane.xlu0 %340
      %v342 = vsel %vm269, %v261, 0.0
      %343 = vadd.xlane.f32.xlu0 %v342
      %v344 = vpop.xlane.xlu0 %343
      %v345 = vsel %vm269, %v262, 0.0
      %346 = vadd.xlane.f32.xlu0 %v345
      %v347 = vpop.xlane.xlu0 %346
      %v348 = vsel %vm269, %v263, 0.0
      %349 = vadd.xlane.f32.xlu0 %v348
      %v350 = vpop.xlane.xlu0 %349
      %v351 = vsel %vm269, %v264, 0.0
      %352 = vadd.xlane.f32.xlu0 %v351
      %v353 = vpop.xlane.xlu0 %352
      %v354 = vsel %vm269, %v265, 0.0
      %355 = vadd.xlane.f32.xlu0 %v354
      %v356 = vpop.xlane.xlu0 %355
      %v357 = vsel %vm269, %v266, 0.0
      %358 = vadd.xlane.f32.xlu0 %v357
      %v359 = vpop.xlane.xlu0 %358
      %v360 = vsel %vm269, %v267, 0.0
      %361 = vadd.xlane.f32.xlu0 %v360
      %v362 = vpop.xlane.xlu0 %361
      %v363 = vsel %vm269, %v268, 0.0
      %364 = vadd.xlane.f32.xlu0 %v363
      %v365 = vpop.xlane.xlu0 %364
      %v366 = vrcp.pop 8.0
      %v367 = vmul.f32 8.0, %v366
      %v368 = vsub.f32 1.0, %v367
      %v369 = vmul.f32 %v366, %v368
      %v370 = vadd.f32 %v366, %v369
      %vm371 = vweird.f32 %v366
      %v372 = vsel %vm371, %v366, %v370
      %v373 = vmul.f32 %v272, %v372
      %v374 = vmul.f32 %v275, %v372
      %v375 = vmul.f32 %v278, %v372
      %v376 = vmul.f32 %v281, %v372
      %v377 = vmul.f32 %v284, %v372
      %v378 = vmul.f32 %v287, %v372
      %v379 = vmul.f32 %v290, %v372
      %v380 = vmul.f32 %v293, %v372
      %v381 = vmul.f32 %v296, %v372
      %v382 = vmul.f32 %v299, %v372
      %v383 = vmul.f32 %v302, %v372
      %v384 = vmul.f32 %v305, %v372
      %v385 = vmul.f32 %v308, %v372
      %v386 = vmul.f32 %v311, %v372
      %v387 = vmul.f32 %v314, %v372
      %v388 = vmul.f32 %v317, %v372
      %v389 = vmul.f32 %v320, %v372
      %v390 = vmul.f32 %v323, %v372
      %v391 = vmul.f32 %v326, %v372
      %v392 = vmul.f32 %v329, %v372
      %v393 = vmul.f32 %v332, %v372
      %v394 = vmul.f32 %v335, %v372
      %v395 = vmul.f32 %v338, %v372
      %v396 = vmul.f32 %v341, %v372
      %v397 = vmul.f32 %v344, %v372
      %v398 = vmul.f32 %v347, %v372
      %v399 = vmul.f32 %v350, %v372
      %v400 = vmul.f32 %v353, %v372
      %v401 = vmul.f32 %v356, %v372
      %v402 = vmul.f32 %v359, %v372
      %v403 = vmul.f32 %v362, %v372
      %v404 = vmul.f32 %v365, %v372
      %v405 = vsub.f32 %v237, %v373
      %v406 = vsub.f32 %v238, %v374
      %v407 = vsub.f32 %v239, %v375
      %v408 = vsub.f32 %v240, %v376
      %v409 = vsub.f32 %v241, %v377
      %v410 = vsub.f32 %v242, %v378
      %v411 = vsub.f32 %v243, %v379
      %v412 = vsub.f32 %v244, %v380
      %v413 = vsub.f32 %v245, %v381
      %v414 = vsub.f32 %v246, %v382
      %v415 = vsub.f32 %v247, %v383
      %v416 = vsub.f32 %v248, %v384
      %v417 = vsub.f32 %v249, %v385
      %v418 = vsub.f32 %v250, %v386
      %v419 = vsub.f32 %v251, %v387
      %v420 = vsub.f32 %v252, %v388
      %v421 = vsub.f32 %v253, %v389
      %v422 = vsub.f32 %v254, %v390
      %v423 = vsub.f32 %v255, %v391
      %v424 = vsub.f32 %v256, %v392
      %v425 = vsub.f32 %v257, %v393
      %v426 = vsub.f32 %v258, %v394
      %v427 = vsub.f32 %v259, %v395
      %v428 = vsub.f32 %v260, %v396
      %v429 = vsub.f32 %v261, %v397
      %v430 = vsub.f32 %v262, %v398
      %v431 = vsub.f32 %v263, %v399
      %v432 = vsub.f32 %v264, %v400
      %v433 = vsub.f32 %v265, %v401
      %v434 = vsub.f32 %v266, %v402
      %v435 = vsub.f32 %v267, %v403
      %v436 = vsub.f32 %v268, %v404
      %v437 = vmul.f32 %v405, %v405
      %v438 = vmul.f32 %v406, %v406
      %v439 = vmul.f32 %v407, %v407
      %v440 = vmul.f32 %v408, %v408
      %v441 = vmul.f32 %v409, %v409
      %v442 = vmul.f32 %v410, %v410
      %v443 = vmul.f32 %v411, %v411
      %v444 = vmul.f32 %v412, %v412
      %v445 = vmul.f32 %v413, %v413
      %v446 = vmul.f32 %v414, %v414
      %v447 = vmul.f32 %v415, %v415
      %v448 = vmul.f32 %v416, %v416
      %v449 = vmul.f32 %v417, %v417
      %v450 = vmul.f32 %v418, %v418
      %v451 = vmul.f32 %v419, %v419
      %v452 = vmul.f32 %v420, %v420
      %v453 = vmul.f32 %v421, %v421
      %v454 = vmul.f32 %v422, %v422
      %v455 = vmul.f32 %v423, %v423
      %v456 = vmul.f32 %v424, %v424
      %v457 = vmul.f32 %v425, %v425
      %v458 = vmul.f32 %v426, %v426
      %v459 = vmul.f32 %v427, %v427
      %v460 = vmul.f32 %v428, %v428
      %v461 = vmul.f32 %v429, %v429
      %v462 = vmul.f32 %v430, %v430
      %v463 = vmul.f32 %v431, %v431
      %v464 = vmul.f32 %v432, %v432
      %v465 = vmul.f32 %v433, %v433
      %v466 = vmul.f32 %v434, %v434
      %v467 = vmul.f32 %v435, %v435
      %v468 = vmul.f32 %v436, %v436
      %v469 = vsel %vm269, %v437, 0.0
      %470 = vadd.xlane.f32.xlu0 %v469
      %v471 = vpop.xlane.xlu0 %470
      %v472 = vsel %vm269, %v438, 0.0
      %473 = vadd.xlane.f32.xlu0 %v472
      %v474 = vpop.xlane.xlu0 %473
      %v475 = vsel %vm269, %v439, 0.0
      %476 = vadd.xlane.f32.xlu0 %v475
      %v477 = vpop.xlane.xlu0 %476
      %v478 = vsel %vm269, %v440, 0.0
      %479 = vadd.xlane.f32.xlu0 %v478
      %v480 = vpop.xlane.xlu0 %479
      %v481 = vsel %vm269, %v441, 0.0
      %482 = vadd.xlane.f32.xlu0 %v481
      %v483 = vpop.xlane.xlu0 %482
      %v484 = vsel %vm269, %v442, 0.0
      %485 = vadd.xlane.f32.xlu0 %v484
      %v486 = vpop.xlane.xlu0 %485
      %v487 = vsel %vm269, %v443, 0.0
      %488 = vadd.xlane.f32.xlu0 %v487
      %v489 = vpop.xlane.xlu0 %488
      %v490 = vsel %vm269, %v444, 0.0
      %491 = vadd.xlane.f32.xlu0 %v490
      %v492 = vpop.xlane.xlu0 %491
      %v493 = vsel %vm269, %v445, 0.0
      %494 = vadd.xlane.f32.xlu0 %v493
      %v495 = vpop.xlane.xlu0 %494
      %v496 = vsel %vm269, %v446, 0.0
      %497 = vadd.xlane.f32.xlu0 %v496
      %v498 = vpop.xlane.xlu0 %497
      %v499 = vsel %vm269, %v447, 0.0
      %500 = vadd.xlane.f32.xlu0 %v499
      %v501 = vpop.xlane.xlu0 %500
      %v502 = vsel %vm269, %v448, 0.0
      %503 = vadd.xlane.f32.xlu0 %v502
      %v504 = vpop.xlane.xlu0 %503
      %v505 = vsel %vm269, %v449, 0.0
      %506 = vadd.xlane.f32.xlu0 %v505
      %v507 = vpop.xlane.xlu0 %506
      %v508 = vsel %vm269, %v450, 0.0
      %509 = vadd.xlane.f32.xlu0 %v508
      %v510 = vpop.xlane.xlu0 %509
      %v511 = vsel %vm269, %v451, 0.0
      %512 = vadd.xlane.f32.xlu0 %v511
      %v513 = vpop.xlane.xlu0 %512
      %v514 = vsel %vm269, %v452, 0.0
      %515 = vadd.xlane.f32.xlu0 %v514
      %v516 = vpop.xlane.xlu0 %515
      %v517 = vsel %vm269, %v453, 0.0
      %518 = vadd.xlane.f32.xlu0 %v517
      %v519 = vpop.xlane.xlu0 %518
      %v520 = vsel %vm269, %v454, 0.0
      %521 = vadd.xlane.f32.xlu0 %v520
      %v522 = vpop.xlane.xlu0 %521
      %v523 = vsel %vm269, %v455, 0.0
      %524 = vadd.xlane.f32.xlu0 %v523
      %v525 = vpop.xlane.xlu0 %524
      %v526 = vsel %vm269, %v456, 0.0
      %527 = vadd.xlane.f32.xlu0 %v526
      %v528 = vpop.xlane.xlu0 %527
      %v529 = vsel %vm269, %v457, 0.0
      %530 = vadd.xlane.f32.xlu0 %v529
      %v531 = vpop.xlane.xlu0 %530
      %v532 = vsel %vm269, %v458, 0.0
      %533 = vadd.xlane.f32.xlu0 %v532
      %v534 = vpop.xlane.xlu0 %533
      %v535 = vsel %vm269, %v459, 0.0
      %536 = vadd.xlane.f32.xlu0 %v535
      %v537 = vpop.xlane.xlu0 %536
      %v538 = vsel %vm269, %v460, 0.0
      %539 = vadd.xlane.f32.xlu0 %v538
      %v540 = vpop.xlane.xlu0 %539
      %v541 = vsel %vm269, %v461, 0.0
      %542 = vadd.xlane.f32.xlu0 %v541
      %v543 = vpop.xlane.xlu0 %542
      %v544 = vsel %vm269, %v462, 0.0
      %545 = vadd.xlane.f32.xlu0 %v544
      %v546 = vpop.xlane.xlu0 %545
      %v547 = vsel %vm269, %v463, 0.0
      %548 = vadd.xlane.f32.xlu0 %v547
      %v549 = vpop.xlane.xlu0 %548
      %v550 = vsel %vm269, %v464, 0.0
      %551 = vadd.xlane.f32.xlu0 %v550
      %v552 = vpop.xlane.xlu0 %551
      %v553 = vsel %vm269, %v465, 0.0
      %554 = vadd.xlane.f32.xlu0 %v553
      %v555 = vpop.xlane.xlu0 %554
      %v556 = vsel %vm269, %v466, 0.0
      %557 = vadd.xlane.f32.xlu0 %v556
      %v558 = vpop.xlane.xlu0 %557
      %v559 = vsel %vm269, %v467, 0.0
      %560 = vadd.xlane.f32.xlu0 %v559
      %v561 = vpop.xlane.xlu0 %560
      %v562 = vsel %vm269, %v468, 0.0
      %563 = vadd.xlane.f32.xlu0 %v562
      %v564 = vpop.xlane.xlu0 %563
      %v565 = vmul.f32 %v471, %v372
      %v566 = vmul.f32 %v474, %v372
      %v567 = vmul.f32 %v477, %v372
      %v568 = vmul.f32 %v480, %v372
      %v569 = vmul.f32 %v483, %v372
      %v570 = vmul.f32 %v486, %v372
      %v571 = vmul.f32 %v489, %v372
      %v572 = vmul.f32 %v492, %v372
      %v573 = vmul.f32 %v495, %v372
      %v574 = vmul.f32 %v498, %v372
      %v575 = vmul.f32 %v501, %v372
      %v576 = vmul.f32 %v504, %v372
      %v577 = vmul.f32 %v507, %v372
      %v578 = vmul.f32 %v510, %v372
      %v579 = vmul.f32 %v513, %v372
      %v580 = vmul.f32 %v516, %v372
      %v581 = vmul.f32 %v519, %v372
      %v582 = vmul.f32 %v522, %v372
      %v583 = vmul.f32 %v525, %v372
      %v584 = vmul.f32 %v528, %v372
      %v585 = vmul.f32 %v531, %v372
      %v586 = vmul.f32 %v534, %v372
      %v587 = vmul.f32 %v537, %v372
      %v588 = vmul.f32 %v540, %v372
      %v589 = vmul.f32 %v543, %v372
      %v590 = vmul.f32 %v546, %v372
      %v591 = vmul.f32 %v549, %v372
      %v592 = vmul.f32 %v552, %v372
      %v593 = vmul.f32 %v555, %v372
      %v594 = vmul.f32 %v558, %v372
      %v595 = vmul.f32 %v561, %v372
      %v596 = vmul.f32 %v564, %v372
      %v597 = vadd.f32 %v565, 1e-05
      %v598 = vadd.f32 %v566, 1e-05
      %v599 = vadd.f32 %v567, 1e-05
      %v600 = vadd.f32 %v568, 1e-05
      %v601 = vadd.f32 %v569, 1e-05
      %v602 = vadd.f32 %v570, 1e-05
      %v603 = vadd.f32 %v571, 1e-05
      %v604 = vadd.f32 %v572, 1e-05
      %v605 = vadd.f32 %v573, 1e-05
      %v606 = vadd.f32 %v574, 1e-05
      %v607 = vadd.f32 %v575, 1e-05
      %v608 = vadd.f32 %v576, 1e-05
      %v609 = vadd.f32 %v577, 1e-05
      %v610 = vadd.f32 %v578, 1e-05
      %v611 = vadd.f32 %v579, 1e-05
      %v612 = vadd.f32 %v580, 1e-05
      %v613 = vadd.f32 %v581, 1e-05
      %v614 = vadd.f32 %v582, 1e-05
      %v615 = vadd.f32 %v583, 1e-05
      %v616 = vadd.f32 %v584, 1e-05
      %v617 = vadd.f32 %v585, 1e-05
      %v618 = vadd.f32 %v586, 1e-05
      %v619 = vadd.f32 %v587, 1e-05
      %v620 = vadd.f32 %v588, 1e-05
      %v621 = vadd.f32 %v589, 1e-05
      %v622 = vadd.f32 %v590, 1e-05
      %v623 = vadd.f32 %v591, 1e-05
      %v624 = vadd.f32 %v592, 1e-05
      %v625 = vadd.f32 %v593, 1e-05
      %v626 = vadd.f32 %v594, 1e-05
      %v627 = vadd.f32 %v595, 1e-05
      %v628 = vadd.f32 %v596, 1e-05
      %v629 = vrsqrt.pop %v597
      %v630 = vmul.f32 %v629, %v597
      %v631 = vmul.f32 %v630, %v629
      %v632 = vmul.f32 0.5, %v631
      %v633 = vsub.f32 1.5, %v632
      %v634 = vmul.f32 %v629, %v633
      %vm635 = vweird.f32 %v597
      %vm636 = vweird.f32 %v629
      %vm637 = vmor %vm635, %vm636
      %v638 = vsel %vm637, %v629, %v634
      %v639 = vrsqrt.pop %v598
      %v640 = vmul.f32 %v639, %v598
      %v641 = vmul.f32 %v640, %v639
      %v642 = vmul.f32 0.5, %v641
      %v643 = vsub.f32 1.5, %v642
      %v644 = vmul.f32 %v639, %v643
      %vm645 = vweird.f32 %v598
      %vm646 = vweird.f32 %v639
      %vm647 = vmor %vm645, %vm646
      %v648 = vsel %vm647, %v639, %v644
      %v649 = vrsqrt.pop %v599
      %v650 = vmul.f32 %v649, %v599
      %v651 = vmul.f32 %v650, %v649
      %v652 = vmul.f32 0.5, %v651
      %v653 = vsub.f32 1.5, %v652
      %v654 = vmul.f32 %v649, %v653
      %vm655 = vweird.f32 %v599
      %vm656 = vweird.f32 %v649
      %vm657 = vmor %vm655, %vm656
      %v658 = vsel %vm657, %v649, %v654
      %v659 = vrsqrt.pop %v600
      %v660 = vmul.f32 %v659, %v600
      %v661 = vmul.f32 %v660, %v659
      %v662 = vmul.f32 0.5, %v661
      %v663 = vsub.f32 1.5, %v662
      %v664 = vmul.f32 %v659, %v663
      %vm665 = vweird.f32 %v600
      %vm666 = vweird.f32 %v659
      %vm667 = vmor %vm665, %vm666
      %v668 = vsel %vm667, %v659, %v664
      %v669 = vrsqrt.pop %v601
      %v670 = vmul.f32 %v669, %v601
      %v671 = vmul.f32 %v670, %v669
      %v672 = vmul.f32 0.5, %v671
      %v673 = vsub.f32 1.5, %v672
      %v674 = vmul.f32 %v669, %v673
      %vm675 = vweird.f32 %v601
      %vm676 = vweird.f32 %v669
      %vm677 = vmor %vm675, %vm676
      %v678 = vsel %vm677, %v669, %v674
      %v679 = vrsqrt.pop %v602
      %v680 = vmul.f32 %v679, %v602
      %v681 = vmul.f32 %v680, %v679
      %v682 = vmul.f32 0.5, %v681
      %v683 = vsub.f32 1.5, %v682
      %v684 = vmul.f32 %v679, %v683
      %vm685 = vweird.f32 %v602
      %vm686 = vweird.f32 %v679
      %vm687 = vmor %vm685, %vm686
      %v688 = vsel %vm687, %v679, %v684
      %v689 = vrsqrt.pop %v603
      %v690 = vmul.f32 %v689, %v603
      %v691 = vmul.f32 %v690, %v689
      %v692 = vmul.f32 0.5, %v691
      %v693 = vsub.f32 1.5, %v692
      %v694 = vmul.f32 %v689, %v693
      %vm695 = vweird.f32 %v603
      %vm696 = vweird.f32 %v689
      %vm697 = vmor %vm695, %vm696
      %v698 = vsel %vm697, %v689, %v694
      %v699 = vrsqrt.pop %v604
      %v700 = vmul.f32 %v699, %v604
      %v701 = vmul.f32 %v700, %v699
      %v702 = vmul.f32 0.5, %v701
      %v703 = vsub.f32 1.5, %v702
      %v704 = vmul.f32 %v699, %v703
      %vm705 = vweird.f32 %v604
      %vm706 = vweird.f32 %v699
      %vm707 = vmor %vm705, %vm706
      %v708 = vsel %vm707, %v699, %v704
      %v709 = vrsqrt.pop %v605
      %v710 = vmul.f32 %v709, %v605
      %v711 = vmul.f32 %v710, %v709
      %v712 = vmul.f32 0.5, %v711
      %v713 = vsub.f32 1.5, %v712
      %v714 = vmul.f32 %v709, %v713
      %vm715 = vweird.f32 %v605
      %vm716 = vweird.f32 %v709
      %vm717 = vmor %vm715, %vm716
      %v718 = vsel %vm717, %v709, %v714
      %v719 = vrsqrt.pop %v606
      %v720 = vmul.f32 %v719, %v606
      %v721 = vmul.f32 %v720, %v719
      %v722 = vmul.f32 0.5, %v721
      %v723 = vsub.f32 1.5, %v722
      %v724 = vmul.f32 %v719, %v723
      %vm725 = vweird.f32 %v606
      %vm726 = vweird.f32 %v719
      %vm727 = vmor %vm725, %vm726
      %v728 = vsel %vm727, %v719, %v724
      %v729 = vrsqrt.pop %v607
      %v730 = vmul.f32 %v729, %v607
      %v731 = vmul.f32 %v730, %v729
      %v732 = vmul.f32 0.5, %v731
      %v733 = vsub.f32 1.5, %v732
      %v734 = vmul.f32 %v729, %v733
      %vm735 = vweird.f32 %v607
      %vm736 = vweird.f32 %v729
      %vm737 = vmor %vm735, %vm736
      %v738 = vsel %vm737, %v729, %v734
      %v739 = vrsqrt.pop %v608
      %v740 = vmul.f32 %v739, %v608
      %v741 = vmul.f32 %v740, %v739
      %v742 = vmul.f32 0.5, %v741
      %v743 = vsub.f32 1.5, %v742
      %v744 = vmul.f32 %v739, %v743
      %vm745 = vweird.f32 %v608
      %vm746 = vweird.f32 %v739
      %vm747 = vmor %vm745, %vm746
      %v748 = vsel %vm747, %v739, %v744
      %v749 = vrsqrt.pop %v609
      %v750 = vmul.f32 %v749, %v609
      %v751 = vmul.f32 %v750, %v749
      %v752 = vmul.f32 0.5, %v751
      %v753 = vsub.f32 1.5, %v752
      %v754 = vmul.f32 %v749, %v753
      %vm755 = vweird.f32 %v609
      %vm756 = vweird.f32 %v749
      %vm757 = vmor %vm755, %vm756
      %v758 = vsel %vm757, %v749, %v754
      %v759 = vrsqrt.pop %v610
      %v760 = vmul.f32 %v759, %v610
      %v761 = vmul.f32 %v760, %v759
      %v762 = vmul.f32 0.5, %v761
      %v763 = vsub.f32 1.5, %v762
      %v764 = vmul.f32 %v759, %v763
      %vm765 = vweird.f32 %v610
      %vm766 = vweird.f32 %v759
      %vm767 = vmor %vm765, %vm766
      %v768 = vsel %vm767, %v759, %v764
      %v769 = vrsqrt.pop %v611
      %v770 = vmul.f32 %v769, %v611
      %v771 = vmul.f32 %v770, %v769
      %v772 = vmul.f32 0.5, %v771
      %v773 = vsub.f32 1.5, %v772
      %v774 = vmul.f32 %v769, %v773
      %vm775 = vweird.f32 %v611
      %vm776 = vweird.f32 %v769
      %vm777 = vmor %vm775, %vm776
      %v778 = vsel %vm777, %v769, %v774
      %v779 = vrsqrt.pop %v612
      %v780 = vmul.f32 %v779, %v612
      %v781 = vmul.f32 %v780, %v779
      %v782 = vmul.f32 0.5, %v781
      %v783 = vsub.f32 1.5, %v782
      %v784 = vmul.f32 %v779, %v783
      %vm785 = vweird.f32 %v612
      %vm786 = vweird.f32 %v779
      %vm787 = vmor %vm785, %vm786
      %v788 = vsel %vm787, %v779, %v784
      %v789 = vrsqrt.pop %v613
      %v790 = vmul.f32 %v789, %v613
      %v791 = vmul.f32 %v790, %v789
      %v792 = vmul.f32 0.5, %v791
      %v793 = vsub.f32 1.5, %v792
      %v794 = vmul.f32 %v789, %v793
      %vm795 = vweird.f32 %v613
      %vm796 = vweird.f32 %v789
      %vm797 = vmor %vm795, %vm796
      %v798 = vsel %vm797, %v789, %v794
      %v799 = vrsqrt.pop %v614
      %v800 = vmul.f32 %v799, %v614
      %v801 = vmul.f32 %v800, %v799
      %v802 = vmul.f32 0.5, %v801
      %v803 = vsub.f32 1.5, %v802
      %v804 = vmul.f32 %v799, %v803
      %vm805 = vweird.f32 %v614
      %vm806 = vweird.f32 %v799
      %vm807 = vmor %vm805, %vm806
      %v808 = vsel %vm807, %v799, %v804
      %v809 = vrsqrt.pop %v615
      %v810 = vmul.f32 %v809, %v615
      %v811 = vmul.f32 %v810, %v809
      %v812 = vmul.f32 0.5, %v811
      %v813 = vsub.f32 1.5, %v812
      %v814 = vmul.f32 %v809, %v813
      %vm815 = vweird.f32 %v615
      %vm816 = vweird.f32 %v809
      %vm817 = vmor %vm815, %vm816
      %v818 = vsel %vm817, %v809, %v814
      %v819 = vrsqrt.pop %v616
      %v820 = vmul.f32 %v819, %v616
      %v821 = vmul.f32 %v820, %v819
      %v822 = vmul.f32 0.5, %v821
      %v823 = vsub.f32 1.5, %v822
      %v824 = vmul.f32 %v819, %v823
      %vm825 = vweird.f32 %v616
      %vm826 = vweird.f32 %v819
      %vm827 = vmor %vm825, %vm826
      %v828 = vsel %vm827, %v819, %v824
      %v829 = vrsqrt.pop %v617
      %v830 = vmul.f32 %v829, %v617
      %v831 = vmul.f32 %v830, %v829
      %v832 = vmul.f32 0.5, %v831
      %v833 = vsub.f32 1.5, %v832
      %v834 = vmul.f32 %v829, %v833
      %vm835 = vweird.f32 %v617
      %vm836 = vweird.f32 %v829
      %vm837 = vmor %vm835, %vm836
      %v838 = vsel %vm837, %v829, %v834
      %v839 = vrsqrt.pop %v618
      %v840 = vmul.f32 %v839, %v618
      %v841 = vmul.f32 %v840, %v839
      %v842 = vmul.f32 0.5, %v841
      %v843 = vsub.f32 1.5, %v842
      %v844 = vmul.f32 %v839, %v843
      %vm845 = vweird.f32 %v618
      %vm846 = vweird.f32 %v839
      %vm847 = vmor %vm845, %vm846
      %v848 = vsel %vm847, %v839, %v844
      %v849 = vrsqrt.pop %v619
      %v850 = vmul.f32 %v849, %v619
      %v851 = vmul.f32 %v850, %v849
      %v852 = vmul.f32 0.5, %v851
      %v853 = vsub.f32 1.5, %v852
      %v854 = vmul.f32 %v849, %v853
      %vm855 = vweird.f32 %v619
      %vm856 = vweird.f32 %v849
      %vm857 = vmor %vm855, %vm856
      %v858 = vsel %vm857, %v849, %v854
      %v859 = vrsqrt.pop %v620
      %v860 = vmul.f32 %v859, %v620
      %v861 = vmul.f32 %v860, %v859
      %v862 = vmul.f32 0.5, %v861
      %v863 = vsub.f32 1.5, %v862
      %v864 = vmul.f32 %v859, %v863
      %vm865 = vweird.f32 %v620
      %vm866 = vweird.f32 %v859
      %vm867 = vmor %vm865, %vm866
      %v868 = vsel %vm867, %v859, %v864
      %v869 = vrsqrt.pop %v621
      %v870 = vmul.f32 %v869, %v621
      %v871 = vmul.f32 %v870, %v869
      %v872 = vmul.f32 0.5, %v871
      %v873 = vsub.f32 1.5, %v872
      %v874 = vmul.f32 %v869, %v873
      %vm875 = vweird.f32 %v621
      %vm876 = vweird.f32 %v869
      %vm877 = vmor %vm875, %vm876
      %v878 = vsel %vm877, %v869, %v874
      %v879 = vrsqrt.pop %v622
      %v880 = vmul.f32 %v879, %v622
      %v881 = vmul.f32 %v880, %v879
      %v882 = vmul.f32 0.5, %v881
      %v883 = vsub.f32 1.5, %v882
      %v884 = vmul.f32 %v879, %v883
      %vm885 = vweird.f32 %v622
      %vm886 = vweird.f32 %v879
      %vm887 = vmor %vm885, %vm886
      %v888 = vsel %vm887, %v879, %v884
      %v889 = vrsqrt.pop %v623
      %v890 = vmul.f32 %v889, %v623
      %v891 = vmul.f32 %v890, %v889
      %v892 = vmul.f32 0.5, %v891
      %v893 = vsub.f32 1.5, %v892
      %v894 = vmul.f32 %v889, %v893
      %vm895 = vweird.f32 %v623
      %vm896 = vweird.f32 %v889
      %vm897 = vmor %vm895, %vm896
      %v898 = vsel %vm897, %v889, %v894
      %v899 = vrsqrt.pop %v624
      %v900 = vmul.f32 %v899, %v624
      %v901 = vmul.f32 %v900, %v899
      %v902 = vmul.f32 0.5, %v901
      %v903 = vsub.f32 1.5, %v902
      %v904 = vmul.f32 %v899, %v903
      %vm905 = vweird.f32 %v624
      %vm906 = vweird.f32 %v899
      %vm907 = vmor %vm905, %vm906
      %v908 = vsel %vm907, %v899, %v904
      %v909 = vrsqrt.pop %v625
      %v910 = vmul.f32 %v909, %v625
      %v911 = vmul.f32 %v910, %v909
      %v912 = vmul.f32 0.5, %v911
      %v913 = vsub.f32 1.5, %v912
      %v914 = vmul.f32 %v909, %v913
      %vm915 = vweird.f32 %v625
      %vm916 = vweird.f32 %v909
      %vm917 = vmor %vm915, %vm916
      %v918 = vsel %vm917, %v909, %v914
      %v919 = vrsqrt.pop %v626
      %v920 = vmul.f32 %v919, %v626
      %v921 = vmul.f32 %v920, %v919
      %v922 = vmul.f32 0.5, %v921
      %v923 = vsub.f32 1.5, %v922
      %v924 = vmul.f32 %v919, %v923
      %vm925 = vweird.f32 %v626
      %vm926 = vweird.f32 %v919
      %vm927 = vmor %vm925, %vm926
      %v928 = vsel %vm927, %v919, %v924
      %v929 = vrsqrt.pop %v627
      %v930 = vmul.f32 %v929, %v627
      %v931 = vmul.f32 %v930, %v929
      %v932 = vmul.f32 0.5, %v931
      %v933 = vsub.f32 1.5, %v932
      %v934 = vmul.f32 %v929, %v933
      %vm935 = vweird.f32 %v627
      %vm936 = vweird.f32 %v929
      %vm937 = vmor %vm935, %vm936
      %v938 = vsel %vm937, %v929, %v934
      %v939 = vrsqrt.pop %v628
      %v940 = vmul.f32 %v939, %v628
      %v941 = vmul.f32 %v940, %v939
      %v942 = vmul.f32 0.5, %v941
      %v943 = vsub.f32 1.5, %v942
      %v944 = vmul.f32 %v939, %v943
      %vm945 = vweird.f32 %v628
      %vm946 = vweird.f32 %v939
      %vm947 = vmor %vm945, %vm946
      %v948 = vsel %vm947, %v939, %v944
      %v949 = vmul.f32 %v405, %v638
      %v950 = vmul.f32 %v406, %v648
      %v951 = vmul.f32 %v407, %v658
      %v952 = vmul.f32 %v408, %v668
      %v953 = vmul.f32 %v409, %v678
      %v954 = vmul.f32 %v410, %v688
      %v955 = vmul.f32 %v411, %v698
      %v956 = vmul.f32 %v412, %v708
      %v957 = vmul.f32 %v413, %v718
      %v958 = vmul.f32 %v414, %v728
      %v959 = vmul.f32 %v415, %v738
      %v960 = vmul.f32 %v416, %v748
      %v961 = vmul.f32 %v417, %v758
      %v962 = vmul.f32 %v418, %v768
      %v963 = vmul.f32 %v419, %v778
      %v964 = vmul.f32 %v420, %v788
      %v965 = vmul.f32 %v421, %v798
      %v966 = vmul.f32 %v422, %v808
      %v967 = vmul.f32 %v423, %v818
      %v968 = vmul.f32 %v424, %v828
      %v969 = vmul.f32 %v425, %v838
      %v970 = vmul.f32 %v426, %v848
      %v971 = vmul.f32 %v427, %v858
      %v972 = vmul.f32 %v428, %v868
      %v973 = vmul.f32 %v429, %v878
      %v974 = vmul.f32 %v430, %v888
      %v975 = vmul.f32 %v431, %v898
      %v976 = vmul.f32 %v432, %v908
      %v977 = vmul.f32 %v433, %v918
      %v978 = vmul.f32 %v434, %v928
      %v979 = vmul.f32 %v435, %v938
      %v980 = vmul.f32 %v436, %v948
      %v981 = vld [vmem:[%s1] sm:$0x1]
      %v983 = vperm.slane %v981, 0
      %v985 = vmul.f32 %v949, %v983
      %v986 = vmul.f32 %v950, %v983
      %v987 = vmul.f32 %v951, %v983
      %v988 = vmul.f32 %v952, %v983
      %v989 = vmul.f32 %v953, %v983
      %v990 = vmul.f32 %v954, %v983
      %v991 = vmul.f32 %v955, %v983
      %v992 = vmul.f32 %v956, %v983
      %v993 = vmul.f32 %v957, %v983
      %v994 = vmul.f32 %v958, %v983
      %v995 = vmul.f32 %v959, %v983
      %v996 = vmul.f32 %v960, %v983
      %v997 = vmul.f32 %v961, %v983
      %v998 = vmul.f32 %v962, %v983
      %v999 = vmul.f32 %v963, %v983
      %v1000 = vmul.f32 %v964, %v983
      %v1001 = vmul.f32 %v965, %v983
      %v1002 = vmul.f32 %v966, %v983
      %v1003 = vmul.f32 %v967, %v983
      %v1004 = vmul.f32 %v968, %v983
      %v1005 = vmul.f32 %v969, %v983
      %v1006 = vmul.f32 %v970, %v983
      %v1007 = vmul.f32 %v971, %v983
      %v1008 = vmul.f32 %v972, %v983
      %v1009 = vmul.f32 %v973, %v983
      %v1010 = vmul.f32 %v974, %v983
      %v1011 = vmul.f32 %v975, %v983
      %v1012 = vmul.f32 %v976, %v983
      %v1013 = vmul.f32 %v977, %v983
      %v1014 = vmul.f32 %v978, %v983
      %v1015 = vmul.f32 %v979, %v983
      %v1016 = vmul.f32 %v980, %v983
      %v1017 = vld [vmem:[%s2] sm:$0x1]
      %v1019 = vperm.slane %v1017, 0
      %v1021 = vadd.f32 %v985, %v1019
      %v1022 = vadd.f32 %v986, %v1019
      %v1023 = vadd.f32 %v987, %v1019
      %v1024 = vadd.f32 %v988, %v1019
      %v1025 = vadd.f32 %v989, %v1019
      %v1026 = vadd.f32 %v990, %v1019
      %v1027 = vadd.f32 %v991, %v1019
      %v1028 = vadd.f32 %v992, %v1019
      %v1029 = vadd.f32 %v993, %v1019
      %v1030 = vadd.f32 %v994, %v1019
      %v1031 = vadd.f32 %v995, %v1019
      %v1032 = vadd.f32 %v996, %v1019
      %v1033 = vadd.f32 %v997, %v1019
      %v1034 = vadd.f32 %v998, %v1019
      %v1035 = vadd.f32 %v999, %v1019
      %v1036 = vadd.f32 %v1000, %v1019
      %v1037 = vadd.f32 %v1001, %v1019
      %v1038 = vadd.f32 %v1002, %v1019
      %v1039 = vadd.f32 %v1003, %v1019
      %v1040 = vadd.f32 %v1004, %v1019
      %v1041 = vadd.f32 %v1005, %v1019
      %v1042 = vadd.f32 %v1006, %v1019
      %v1043 = vadd.f32 %v1007, %v1019
      %v1044 = vadd.f32 %v1008, %v1019
      %v1045 = vadd.f32 %v1009, %v1019
      %v1046 = vadd.f32 %v1010, %v1019
      %v1047 = vadd.f32 %v1011, %v1019
      %v1048 = vadd.f32 %v1012, %v1019
      %v1049 = vadd.f32 %v1013, %v1019
      %v1050 = vadd.f32 %v1014, %v1019
      %v1051 = vadd.f32 %v1015, %v1019
      %v1052 = vadd.f32 %v1016, %v1019
      %v1053 = vld [vmem:[%s3] sm:$0xf]
      %v1055 = vsel %vm269, %v1053, 0
      %v1058 = vsel %vm269, %v1021, 0
      %v1061 = vsel %vm269, %v1022, 0
      %v1064 = vsel %vm269, %v1023, 0
      %v1067 = vsel %vm269, %v1024, 0
      %v1070 = vsel %vm269, %v1025, 0
      %v1073 = vsel %vm269, %v1026, 0
      %v1076 = vsel %vm269, %v1027, 0
      %v1079 = vsel %vm269, %v1028, 0
      %v1082 = vsel %vm269, %v1029, 0
      %v1085 = vsel %vm269, %v1030, 0
      %v1088 = vsel %vm269, %v1031, 0
      %v1091 = vsel %vm269, %v1032, 0
      %v1094 = vsel %vm269, %v1033, 0
      %v1097 = vsel %vm269, %v1034, 0
      %v1100 = vsel %vm269, %v1035, 0
      %v1103 = vsel %vm269, %v1036, 0
      %v1106 = vsel %vm269, %v1037, 0
      %v1109 = vsel %vm269, %v1038, 0
      %v1112 = vsel %vm269, %v1039, 0
      %v1115 = vsel %vm269, %v1040, 0
      %v1118 = vsel %vm269, %v1041, 0
      %v1121 = vsel %vm269, %v1042, 0
      %v1124 = vsel %vm269, %v1043, 0
      %v1127 = vsel %vm269, %v1044, 0
      %v1130 = vsel %vm269, %v1045, 0
      %v1133 = vsel %vm269, %v1046, 0
      %v1136 = vsel %vm269, %v1047, 0
      %v1139 = vsel %vm269, %v1048, 0
      %v1142 = vsel %vm269, %v1049, 0
      %v1145 = vsel %vm269, %v1050, 0
      %v1148 = vsel %vm269, %v1051, 0
      %v1151 = vsel %vm269, %v1052, 0
      %1153 = vmatpush.xpose.msra.mxu0 %v1103
      %1154 = vmatpush.xpose.msra.mxu0 %v1100
      %1155 = vmatpush.xpose.msra.mxu0 %v1097
      %1156 = vmatpush.xpose.msra.mxu0 %v1094
      %1157 = vmatpush.xpose.msra.mxu0 %v1091
      %1158 = vmatpush.xpose.msra.mxu0 %v1088
      %1159 = vmatpush.xpose.msra.mxu0 %v1085
      %1160 = vmatpush.xpose.msra.mxu0 %v1082
      %1161 = vmatpush.xpose.msra.mxu0 %v1079
      %1162 = vmatpush.xpose.msra.mxu0 %v1076
      %1163 = vmatpush.xpose.msra.mxu0 %v1073
      %1164 = vmatpush.xpose.msra.mxu0 %v1070
      %1165 = vmatpush.xpose.msra.mxu0 %v1067
      %1166 = vmatpush.xpose.msra.mxu0 %v1064
      %1167 = vmatpush.xpose.msra.mxu0 %v1061
      %1168 = vmatpush.xpose.msra.mxu0 %v1058
      %1169 = vmatmul.f32.gmra.mxu0 %v1055
      %v1170 = vpop.f32.mrf.mxu0
      %v1171 = vadd.f32 0.0, %v1170
      %1172 = vdwg.mxu0
      %1173 = vmatpush.xpose.msra.mxu0 %v1151
      %1174 = vmatpush.xpose.msra.mxu0 %v1148
      %1175 = vmatpush.xpose.msra.mxu0 %v1145
      %1176 = vmatpush.xpose.msra.mxu0 %v1142
      %1177 = vmatpush.xpose.msra.mxu0 %v1139
      %1178 = vmatpush.xpose.msra.mxu0 %v1136
      %1179 = vmatpush.xpose.msra.mxu0 %v1133
      %1180 = vmatpush.xpose.msra.mxu0 %v1130
      %1181 = vmatpush.xpose.msra.mxu0 %v1127
      %1182 = vmatpush.xpose.msra.mxu0 %v1124
      %1183 = vmatpush.xpose.msra.mxu0 %v1121
      %1184 = vmatpush.xpose.msra.mxu0 %v1118
      %1185 = vmatpush.xpose.msra.mxu0 %v1115
      %1186 = vmatpush.xpose.msra.mxu0 %v1112
      %1187 = vmatpush.xpose.msra.mxu0 %v1109
      %1188 = vmatpush.xpose.msra.mxu0 %v1106
      %1189 = vmatmul.f32.gmra.mxu0 %v1055
      %v1190 = vpop.f32.mrf.mxu0
      %v1191 = vadd.f32 0.0, %v1190
      %1192 = vdwg.mxu0
      %v1195 = vrot.slane %v1191, 4
      %vm1196 = vcmask 1043456
      %v1197 = vsel %vm1196, %v1171, %v1195
      %1199 = vst [vmem:[%s235] sm:$0xff] %v1197
      %s1200 = smul.u32 2, %s20
      %p1201 = scmp.lt.s32.totalorder %s19, 1
      %s1202 = scalar_select %p1201, %s19, 1
      %p1203 = scmp.lt.s32.totalorder %s1200, 1
      %s1204 = scalar_select %p1203, %s1200, 1
      %s1205 = smul.addr %s1202, 2
      %s1206 = sadd.s32 %s1204, %s1205
      %s1207 = smul.addr %s1206, 4
      %s1208 = scalar_lea.vmem %s4, %s1207
      // Predicated region
      $region37: #{attention_pair_bias.4} parent=35 // pred_check
        %p1209 = pneg %p138
      $region38: #{attention_pair_bias.4} parent=35 // pred_check_branch
        %1211 = sbr.rel (%p1209) target = $region40
      $region39: #{attention_pair_bias.4} parent=35 // pred_region
        %s1212 = smul.u32 2, %s20
      $region40: #{attention_pair_bias.4} parent=35 // pred_fallthru
        _
    $region36: #{attention_pair_bias.4} parent=5 // pred_fallthru
      _
    %p1213 = scmp.le.s32.totalorder 2, %s10
    // Predicated region
    $region41: #{attention_pair_bias.4} parent=5 // pred_check
      %p1214 = pneg %p1213
    $region42: #{attention_pair_bias.4} parent=5 // pred_check_branch
      %1216 = sbr.rel (%p1214) target = $region44
    $region43: #{attention_pair_bias.4} parent=5 // pred_region
      %s1217 = ssub.s32 %s10, 2
      // Predicated region
      $region45: #{attention_pair_bias.4} parent=43 // pred_check
        %p1218 = pneg %p144
      $region46: #{attention_pair_bias.4} parent=43 // pred_check_branch
        %1220 = sbr.rel (%p1218) target = $region48
      $region47: #{attention_pair_bias.4} parent=43 // pred_region
        %s1221 = smul.u32 2, %s22
        %p1222 = scmp.lt.s32.totalorder %s21, 1
        %s1223 = scalar_select %p1222, %s21, 1
        %p1224 = scmp.lt.s32.totalorder %s1221, 1
        %s1225 = scalar_select %p1224, %s1221, 1
        %s1226 = smul.addr %s1223, 2
        %s1227 = sadd.s32 %s1225, %s1226
        %s1228 = smul.addr %s1227, 4
        %s1229 = scalar_lea.vmem %s4, %s1228
      $region48: #{attention_pair_bias.4} parent=43 // pred_fallthru
        _
    $region44: #{attention_pair_bias.4} parent=5 // pred_fallthru
      _
  $region6: #{attention_pair_bias.4} parent=0 // loop_footer
    %s14 = sadd.s32 1, %s10
  $region7: #{attention_pair_bias.4} parent=0 // loop_footer_branch
    %9 = sbr.rel target = $region3
  $region8: #{attention_pair_bias.4} parent=0 // loop_exit
    _

// kernel: attention_pair_bias.5
$region0: #{attention_pair_bias.5}
  #allocation0 [shape = 'u32[]', space=smem, size = 0x4, offset = 0x4, fixed_abs, tag = 'smem constant byte address 0x4 - core index']
  #allocation1 [shape = 'u32[72,128]{1,0:T(1,128)}', space=vmem, size = 0x9000, scoped, tag = 'internal scratch']
  #allocation2 [shape = 'f32[4,16,1]{2,1,0:T(8,128)}', space=vmem, size = 0x8000, scoped, tag = 'scratch operand']
  #allocation3 [shape = 'f32[4,16,1]{2,1,0:T(8,128)}', space=vmem, size = 0x8000, scoped, tag = 'scratch operand']
  #allocation4 [shape = 'f32[4,16,8]{2,1,0:T(8,128)}', space=vmem, size = 0x8000, scoped, tag = 'scratch operand']
  %s0 = inlined_call_operand.vmem [shape: f32[2,4,16,8], index: 0, kind: input, shape index: {}]
  %s1 = inlined_call_operand.vmem [shape: f32[2,4,16,8], index: 1, kind: input, shape index: {}]
  %s2 = inlined_call_operand.vmem [shape: f32[2,4,16,8], index: 2, kind: input, shape index: {}]
  %s3 = inlined_call_operand.vmem [shape: f32[2,16,32], index: 3, kind: input, shape index: {}]
  %s4 = inlined_call_operand.vmem [shape: f32[2,4,16,16], index: 4, kind: input, shape index: {}]
  %s5 = inlined_call_operand.vmem [shape: f32[2,1,16], index: 5, kind: input, shape index: {}]
  %s6 = inlined_call_operand.vmem [shape: f32[2,16,1], index: 6, kind: input, shape index: {}]
  %s7 = inlined_call_operand.vmem [shape: f32[2,16,16], index: 7, kind: input, shape index: {}]
  %s8 = inlined_call_operand.vmem [shape: f32[32,32], index: 8, kind: input, shape index: {}]
  %s9 = inlined_call_operand.vmem [shape: f32[16,32], index: 9, kind: input, shape index: {}]
  %s10 = inlined_call_operand.vmem [shape: f32[1,32], index: 10, kind: input, shape index: {}]
  %s11 = inlined_call_operand.hbm [shape: f32[2,16,32], index: 11, kind: output, shape index: {}]
  %s12 = sld [smem:[#allocation0]]
  $region85: #{attention_pair_bias.5} parent=0
    _
  %s14 = ssub.s32 1, %s12
  %s15 = scalar_select 0, %s14, %s12
  $region1: #{attention_pair_bias.5} parent=0
    #allocation5 [shape = 'u8[16384]{0}', space=vmem, size = 0x4000, scoped, tag = 'output window, operand 0']
    #allocation6 [shape = 's32[2]{0}', space=sflag, size = 0x8, scoped, tag = 'scoped memory for attention_pair_bias.5']
    %16 = vsyncpa [#allocation6], 0
    %s17 = scalar_lea.sflag [#allocation6], 1
    %18 = vsyncpa %s17, 0
    loop: start=0, step=1, limit=4
    $region2: #{attention_pair_bias.5} parent=1 // loop_pre_header
      _
    $region3: #{attention_pair_bias.5} parent=1 // loop_header
      %s20 = sphi 0, %s24
      %p21 = scmp.ge.s32.totalorder %s20, 4
      %s27 = sphi 0, %s46
      %s28 = sphi 0, %s42
      %s29 = sphi 0, %s38
      %s30 = sphi 0, %s27
      %s31 = sphi 0, %s28
      %s32 = sphi 0, %s29
      %s33 = sphi 0, %s30
      %s34 = sphi 0, %s31
      %s35 = sphi 0, %s32
      %s51 = sphi 0, %s53
      %s54 = sphi 0, %s51
      %s55 = sphi 0, %s54
      %s71 = sphi 0, %s55
      %s79 = sphi 0, %s81
      %s82 = sphi 0, %s79
      %s83 = sphi 0, %s82
      %s99 = sphi 0, %s83
      %s107 = sphi 0, %s109
      %s110 = sphi 0, %s107
      %s111 = sphi 0, %s110
      %s127 = sphi 0, %s111
      %s135 = sphi 0, %s137
      %s138 = sphi 0, %s135
      %s139 = sphi 0, %s138
      %s155 = sphi 0, %s139
      %s165 = sphi 0, %s167
      %s168 = sphi 0, %s165
      %s169 = sphi 0, %s168
      %s185 = sphi 0, %s169
      %s193 = sphi 0, %s195
      %s196 = sphi 0, %s193
      %s197 = sphi 0, %s196
      %s213 = sphi 0, %s197
      %s221 = sphi 0, %s223
      %s224 = sphi 0, %s221
      %s225 = sphi 0, %s224
      %s241 = sphi 0, %s225
      %s249 = sphi 0, %s251
      %s252 = sphi 0, %s249
      %s253 = sphi 0, %s252
      %s269 = sphi 0, %s253
      %s273 = sphi 0, %s273
      %s275 = sphi 0, %s273
      %s276 = sphi 0, %s275
      %s290 = sphi 0, %s276
      %s294 = sphi 0, %s294
      %s296 = sphi 0, %s294
      %s297 = sphi 0, %s296
      %s311 = sphi 0, %s297
      %s315 = sphi 0, %s315
      %s317 = sphi 0, %s315
      %s318 = sphi 0, %s317
      %s332 = sphi 0, %s318
      %s340 = sphi 0, %s342
      %s343 = sphi 0, %s340
      %s344 = sphi 0, %s343
      %s360 = sphi 0, %s344
    $region4: #{attention_pair_bias.5} parent=1 // loop_header_branch
      %23 = sbr.rel (%p21) target = $region8
    $region5: #{attention_pair_bias.5} parent=1 // loop_body
      %s25 = ssub.s32 %s20, 1
      %s26 = ssub.s32 %s20, 2
      %s36 = sadd.s32 1, %s29
      %p37 = scmp.ge.s32.totalorder %s36, 1
      %s38 = scalar_select %p37, 0, %s36
      %s39 = sadd.s32 1, %s28
      %s40 = scalar_select %p37, %s39, %s28
      %p41 = scmp.ge.s32.totalorder %s40, 1
      %s42 = scalar_select %p41, 0, %s40
      %s43 = sadd.s32 1, %s27
      %s44 = scalar_select %p41, %s43, %s27
      %p45 = scmp.ge.s32.totalorder %s44, 2
      %s46 = scalar_select %p45, 0, %s44
      %s47 = ssub.s32 %s27, %s46
      %s48 = ssub.s32 %s28, %s42
      %s49 = sor.u32 %s47, %s48
      %p50 = scmp.eq.s32.totalorder %s49, 0
      %s52 = sadd.s32 %s51, 1
      %s53 = scalar_select %p50, %s51, %s52
      %p56 = pneg %p50
      %p57 = scmp.eq.s32.totalorder %s20, 1
      %p58 = por %p56, %p57
      %p59 = scmp.ne.s32.totalorder %s51, %s54
      %p60 = scmp.eq.s32.totalorder %s20, 0
      %p61 = por %p59, %p60
      %p62 = scmp.ne.s32.totalorder %s51, %s54
      %p63 = scmp.eq.s32.totalorder %s25, 1
      %p64 = por %p62, %p63
      %p65 = scmp.ne.s32.totalorder %s54, %s55
      %p66 = scmp.eq.s32.totalorder %s25, 0
      %p67 = por %p65, %p66
      %p68 = scmp.ne.s32.totalorder %s54, %s55
      %p69 = scmp.eq.s32.totalorder %s26, 1
      %p70 = por %p68, %p69
      %p72 = scmp.ne.s32.totalorder %s55, %s71
      %p73 = scmp.eq.s32.totalorder %s26, 0
      %p74 = por %p72, %p73
      %s75 = ssub.s32 %s27, %s46
      %s76 = ssub.s32 %s29, %s38
      %s77 = sor.u32 %s75, %s76
      %p78 = scmp.eq.s32.totalorder %s77, 0
      %s80 = sadd.s32 %s79, 1
      %s81 = scalar_select %p78, %s79, %s80
      %p84 = pneg %p78
      %p85 = scmp.eq.s32.totalorder %s20, 1
      %p86 = por %p84, %p85
      %p87 = scmp.ne.s32.totalorder %s79, %s82
      %p88 = scmp.eq.s32.totalorder %s20, 0
      %p89 = por %p87, %p88
      %p90 = scmp.ne.s32.totalorder %s79, %s82
      %p91 = scmp.eq.s32.totalorder %s25, 1
      %p92 = por %p90, %p91
      %p93 = scmp.ne.s32.totalorder %s82, %s83
      %p94 = scmp.eq.s32.totalorder %s25, 0
      %p95 = por %p93, %p94
      %p96 = scmp.ne.s32.totalorder %s82, %s83
      %p97 = scmp.eq.s32.totalorder %s26, 1
      %p98 = por %p96, %p97
      %p100 = scmp.ne.s32.totalorder %s83, %s99
      %p101 = scmp.eq.s32.totalorder %s26, 0
      %p102 = por %p100, %p101
      %s103 = ssub.s32 %s27, %s46
      %s104 = ssub.s32 %s29, %s38
      %s105 = sor.u32 %s103, %s104
      %p106 = scmp.eq.s32.totalorder %s105, 0
      %s108 = sadd.s32 %s107, 1
      %s109 = scalar_select %p106, %s107, %s108
      %p112 = pneg %p106
      %p113 = scmp.eq.s32.totalorder %s20, 1
      %p114 = por %p112, %p113
      %p115 = scmp.ne.s32.totalorder %s107, %s110
      %p116 = scmp.eq.s32.totalorder %s20, 0
      %p117 = por %p115, %p116
      %p118 = scmp.ne.s32.totalorder %s107, %s110
      %p119 = scmp.eq.s32.totalorder %s25, 1
      %p120 = por %p118, %p119
      %p121 = scmp.ne.s32.totalorder %s110, %s111
      %p122 = scmp.eq.s32.totalorder %s25, 0
      %p123 = por %p121, %p122
      %p124 = scmp.ne.s32.totalorder %s110, %s111
      %p125 = scmp.eq.s32.totalorder %s26, 1
      %p126 = por %p124, %p125
      %p128 = scmp.ne.s32.totalorder %s111, %s127
      %p129 = scmp.eq.s32.totalorder %s26, 0
      %p130 = por %p128, %p129
      %s131 = ssub.s32 %s27, %s46
      %s132 = ssub.s32 %s28, %s42
      %s133 = sor.u32 %s131, %s132
      %p134 = scmp.eq.s32.totalorder %s133, 0
      %s136 = sadd.s32 %s135, 1
      %s137 = scalar_select %p134, %s135, %s136
      %p140 = pneg %p134
      %p141 = scmp.eq.s32.totalorder %s20, 1
      %p142 = por %p140, %p141
      %p143 = scmp.ne.s32.totalorder %s135, %s138
      %p144 = scmp.eq.s32.totalorder %s20, 0
      %p145 = por %p143, %p144
      %p146 = scmp.ne.s32.totalorder %s135, %s138
      %p147 = scmp.eq.s32.totalorder %s25, 1
      %p148 = por %p146, %p147
      %p149 = scmp.ne.s32.totalorder %s138, %s139
      %p150 = scmp.eq.s32.totalorder %s25, 0
      %p151 = por %p149, %p150
      %p152 = scmp.ne.s32.totalorder %s138, %s139
      %p153 = scmp.eq.s32.totalorder %s26, 1
      %p154 = por %p152, %p153
      %p156 = scmp.ne.s32.totalorder %s139, %s155
      %p157 = scmp.eq.s32.totalorder %s26, 0
      %p158 = por %p156, %p157
      %s159 = ssub.s32 %s27, %s46
      %s160 = ssub.s32 %s28, %s42
      %s161 = sor.u32 %s159, %s160
      %s162 = ssub.s32 %s29, %s38
      %s163 = sor.u32 %s161, %s162
      %p164 = scmp.eq.s32.totalorder %s163, 0
      %s166 = sadd.s32 %s165, 1
      %s167 = scalar_select %p164, %s165, %s166
      %p170 = pneg %p164
      %p171 = scmp.eq.s32.totalorder %s20, 1
      %p172 = por %p170, %p171
      %p173 = scmp.ne.s32.totalorder %s165, %s168
      %p174 = scmp.eq.s32.totalorder %s20, 0
      %p175 = por %p173, %p174
      %p176 = scmp.ne.s32.totalorder %s165, %s168
      %p177 = scmp.eq.s32.totalorder %s25, 1
      %p178 = por %p176, %p177
      %p179 = scmp.ne.s32.totalorder %s168, %s169
      %p180 = scmp.eq.s32.totalorder %s25, 0
      %p181 = por %p179, %p180
      %p182 = scmp.ne.s32.totalorder %s168, %s169
      %p183 = scmp.eq.s32.totalorder %s26, 1
      %p184 = por %p182, %p183
      %p186 = scmp.ne.s32.totalorder %s169, %s185
      %p187 = scmp.eq.s32.totalorder %s26, 0
      %p188 = por %p186, %p187
      %s189 = ssub.s32 %s27, %s46
      %s190 = ssub.s32 %s29, %s38
      %s191 = sor.u32 %s189, %s190
      %p192 = scmp.eq.s32.totalorder %s191, 0
      %s194 = sadd.s32 %s193, 1
      %s195 = scalar_select %p192, %s193, %s194
      %p198 = pneg %p192
      %p199 = scmp.eq.s32.totalorder %s20, 1
      %p200 = por %p198, %p199
      %p201 = scmp.ne.s32.totalorder %s193, %s196
      %p202 = scmp.eq.s32.totalorder %s20, 0
      %p203 = por %p201, %p202
      %p204 = scmp.ne.s32.totalorder %s193, %s196
      %p205 = scmp.eq.s32.totalorder %s25, 1
      %p206 = por %p204, %p205
      %p207 = scmp.ne.s32.totalorder %s196, %s197
      %p208 = scmp.eq.s32.totalorder %s25, 0
      %p209 = por %p207, %p208
      %p210 = scmp.ne.s32.totalorder %s196, %s197
      %p211 = scmp.eq.s32.totalorder %s26, 1
      %p212 = por %p210, %p211
      %p214 = scmp.ne.s32.totalorder %s197, %s213
      %p215 = scmp.eq.s32.totalorder %s26, 0
      %p216 = por %p214, %p215
      %s217 = ssub.s32 %s27, %s46
      %s218 = ssub.s32 %s28, %s42
      %s219 = sor.u32 %s217, %s218
      %p220 = scmp.eq.s32.totalorder %s219, 0
      %s222 = sadd.s32 %s221, 1
      %s223 = scalar_select %p220, %s221, %s222
      %p226 = pneg %p220
      %p227 = scmp.eq.s32.totalorder %s20, 1
      %p228 = por %p226, %p227
      %p229 = scmp.ne.s32.totalorder %s221, %s224
      %p230 = scmp.eq.s32.totalorder %s20, 0
      %p231 = por %p229, %p230
      %p232 = scmp.ne.s32.totalorder %s221, %s224
      %p233 = scmp.eq.s32.totalorder %s25, 1
      %p234 = por %p232, %p233
      %p235 = scmp.ne.s32.totalorder %s224, %s225
      %p236 = scmp.eq.s32.totalorder %s25, 0
      %p237 = por %p235, %p236
      %p238 = scmp.ne.s32.totalorder %s224, %s225
      %p239 = scmp.eq.s32.totalorder %s26, 1
      %p240 = por %p238, %p239
      %p242 = scmp.ne.s32.totalorder %s225, %s241
      %p243 = scmp.eq.s32.totalorder %s26, 0
      %p244 = por %p242, %p243
      %s245 = ssub.s32 %s27, %s46
      %s246 = ssub.s32 %s28, %s42
      %s247 = sor.u32 %s245, %s246
      %p248 = scmp.eq.s32.totalorder %s247, 0
      %s250 = sadd.s32 %s249, 1
      %s251 = scalar_select %p248, %s249, %s250
      %p254 = pneg %p248
      %p255 = scmp.eq.s32.totalorder %s20, 1
      %p256 = por %p254, %p255
      %p257 = scmp.ne.s32.totalorder %s249, %s252
      %p258 = scmp.eq.s32.totalorder %s20, 0
      %p259 = por %p257, %p258
      %p260 = scmp.ne.s32.totalorder %s249, %s252
      %p261 = scmp.eq.s32.totalorder %s25, 1
      %p262 = por %p260, %p261
      %p263 = scmp.ne.s32.totalorder %s252, %s253
      %p264 = scmp.eq.s32.totalorder %s25, 0
      %p265 = por %p263, %p264
      %p266 = scmp.ne.s32.totalorder %s252, %s253
      %p267 = scmp.eq.s32.totalorder %s26, 1
      %p268 = por %p266, %p267
      %p270 = scmp.ne.s32.totalorder %s253, %s269
      %p271 = scmp.eq.s32.totalorder %s26, 0
      %p272 = por %p270, %p271
      %s274 = sadd.s32 %s273, 1
      %p277 = scmp.eq.s32.totalorder %s20, 1
      %p278 = scmp.ne.s32.totalorder %s273, %s275
      %p279 = scmp.eq.s32.totalorder %s20, 0
      %p280 = por %p278, %p279
      %p281 = scmp.ne.s32.totalorder %s273, %s275
      %p282 = scmp.eq.s32.totalorder %s25, 1
      %p283 = por %p281, %p282
      %p284 = scmp.ne.s32.totalorder %s275, %s276
      %p285 = scmp.eq.s32.totalorder %s25, 0
      %p286 = por %p284, %p285
      %p287 = scmp.ne.s32.totalorder %s275, %s276
      %p288 = scmp.eq.s32.totalorder %s26, 1
      %p289 = por %p287, %p288
      %p291 = scmp.ne.s32.totalorder %s276, %s290
      %p292 = scmp.eq.s32.totalorder %s26, 0
      %p293 = por %p291, %p292
      %s295 = sadd.s32 %s294, 1
      %p298 = scmp.eq.s32.totalorder %s20, 1
      %p299 = scmp.ne.s32.totalorder %s294, %s296
      %p300 = scmp.eq.s32.totalorder %s20, 0
      %p301 = por %p299, %p300
      %p302 = scmp.ne.s32.totalorder %s294, %s296
      %p303 = scmp.eq.s32.totalorder %s25, 1
      %p304 = por %p302, %p303
      %p305 = scmp.ne.s32.totalorder %s296, %s297
      %p306 = scmp.eq.s32.totalorder %s25, 0
      %p307 = por %p305, %p306
      %p308 = scmp.ne.s32.totalorder %s296, %s297
      %p309 = scmp.eq.s32.totalorder %s26, 1
      %p310 = por %p308, %p309
      %p312 = scmp.ne.s32.totalorder %s297, %s311
      %p313 = scmp.eq.s32.totalorder %s26, 0
      %p314 = por %p312, %p313
      %s316 = sadd.s32 %s315, 1
      %p319 = scmp.eq.s32.totalorder %s20, 1
      %p320 = scmp.ne.s32.totalorder %s315, %s317
      %p321 = scmp.eq.s32.totalorder %s20, 0
      %p322 = por %p320, %p321
      %p323 = scmp.ne.s32.totalorder %s315, %s317
      %p324 = scmp.eq.s32.totalorder %s25, 1
      %p325 = por %p323, %p324
      %p326 = scmp.ne.s32.totalorder %s317, %s318
      %p327 = scmp.eq.s32.totalorder %s25, 0
      %p328 = por %p326, %p327
      %p329 = scmp.ne.s32.totalorder %s317, %s318
      %p330 = scmp.eq.s32.totalorder %s26, 1
      %p331 = por %p329, %p330
      %p333 = scmp.ne.s32.totalorder %s318, %s332
      %p334 = scmp.eq.s32.totalorder %s26, 0
      %p335 = por %p333, %p334
      %s336 = ssub.s32 %s27, %s46
      %s337 = ssub.s32 %s28, %s42
      %s338 = sor.u32 %s336, %s337
      %p339 = scmp.eq.s32.totalorder %s338, 0
      %s341 = sadd.s32 %s340, 1
      %s342 = scalar_select %p339, %s340, %s341
      %p345 = pneg %p339
      %p346 = scmp.eq.s32.totalorder %s20, 1
      %p347 = por %p345, %p346
      %p348 = scmp.ne.s32.totalorder %s340, %s343
      %p349 = scmp.eq.s32.totalorder %s20, 0
      %p350 = por %p348, %p349
      %p351 = scmp.ne.s32.totalorder %s340, %s343
      %p352 = scmp.eq.s32.totalorder %s25, 1
      %p353 = por %p351, %p352
      %p354 = scmp.ne.s32.totalorder %s343, %s344
      %p355 = scmp.eq.s32.totalorder %s25, 0
      %p356 = por %p354, %p355
      %p357 = scmp.ne.s32.totalorder %s343, %s344
      %p358 = scmp.eq.s32.totalorder %s26, 1
      %p359 = por %p357, %p358
      %p361 = scmp.ne.s32.totalorder %s344, %s360
      %p362 = scmp.eq.s32.totalorder %s26, 0
      %p363 = por %p361, %p362
      %p364 = scmp.le.s32.totalorder 1, %s20
      %p365 = scmp.lt.s32.totalorder %s20, 3
      %p366 = pnand %p364, %p365
      %p367 = pneg %p366
      // Predicated region
      $region9: #{attention_pair_bias.5} parent=5 // pred_check
        _
      $region10: #{attention_pair_bias.5} parent=5 // pred_check_branch
        %369 = sbr.rel (%p366) target = $region12
      $region11: #{attention_pair_bias.5} parent=5 // pred_region
        %s370 = ssub.s32 %s20, 1
        // Predicated region
        $region13: #{attention_pair_bias.5} parent=11 // pred_check
          %p371 = pneg %p286
        $region14: #{attention_pair_bias.5} parent=11 // pred_check_branch
          %373 = sbr.rel (%p371) target = $region16
        $region15: #{attention_pair_bias.5} parent=11 // pred_region
          _
        $region16: #{attention_pair_bias.5} parent=11 // pred_fallthru
          _
        // Predicated region
        $region17: #{attention_pair_bias.5} parent=11 // pred_check
          %p374 = pneg %p307
        $region18: #{attention_pair_bias.5} parent=11 // pred_check_branch
          %376 = sbr.rel (%p374) target = $region20
        $region19: #{attention_pair_bias.5} parent=11 // pred_region
          _
        $region20: #{attention_pair_bias.5} parent=11 // pred_fallthru
          _
        // Predicated region
        $region21: #{attention_pair_bias.5} parent=11 // pred_check
          %p377 = pneg %p328
        $region22: #{attention_pair_bias.5} parent=11 // pred_check_branch
          %379 = sbr.rel (%p377) target = $region24
        $region23: #{attention_pair_bias.5} parent=11 // pred_region
          _
        $region24: #{attention_pair_bias.5} parent=11 // pred_fallthru
          _
      $region12: #{attention_pair_bias.5} parent=5 // pred_fallthru
        _
      %p380 = scmp.lt.s32.totalorder %s20, 2
      // Predicated region
      $region25: #{attention_pair_bias.5} parent=5 // pred_check
        %p381 = pneg %p380
      $region26: #{attention_pair_bias.5} parent=5 // pred_check_branch
        %383 = sbr.rel (%p381) target = $region28
      $region27: #{attention_pair_bias.5} parent=5 // pred_region
        // Predicated region
        $region29: #{attention_pair_bias.5} parent=27 // pred_check
          %p384 = pneg %p61
        $region30: #{attention_pair_bias.5} parent=27 // pred_check_branch
          %386 = sbr.rel (%p384) target = $region32
        $region31: #{attention_pair_bias.5} parent=27 // pred_region
          %s387 = smul.u32 2, %s28
          %p388 = scmp.lt.s32.totalorder %s27, 1
          %s389 = scalar_select %p388, %s27, 1
          %p390 = scmp.lt.s32.totalorder %s387, 1
          %s391 = scalar_select %p390, %s387, 1
          %s392 = smul.addr %s389, 8
          %s393 = sadd.s32 %s391, %s392
          %s394 = smul.addr %s393, 8
          %s395 = scalar_lea.vmem %s0, %s394
          %s396 = smul.u32 2, %s28
        $region32: #{attention_pair_bias.5} parent=27 // pred_fallthru
          _
        // Predicated region
        $region33: #{attention_pair_bias.5} parent=27 // pred_check
          %p397 = pneg %p89
        $region34: #{attention_pair_bias.5} parent=27 // pred_check_branch
          %399 = sbr.rel (%p397) target = $region36
        $region35: #{attention_pair_bias.5} parent=27 // pred_region
          %s400 = smul.u32 2, %s29
          %p401 = scmp.lt.s32.totalorder %s27, 1
          %s402 = scalar_select %p401, %s27, 1
          %p403 = scmp.lt.s32.totalorder %s400, 1
          %s404 = scalar_select %p403, %s400, 1
          %s405 = smul.addr %s402, 8
          %s406 = sadd.s32 %s404, %s405
          %s407 = smul.addr %s406, 8
          %s408 = scalar_lea.vmem %s1, %s407
          %s409 = smul.u32 2, %s29
        $region36: #{attention_pair_bias.5} parent=27 // pred_fallthru
          _
        // Predicated region
        $region37: #{attention_pair_bias.5} parent=27 // pred_check
          %p410 = pneg %p117
        $region38: #{attention_pair_bias.5} parent=27 // pred_check_branch
          %412 = sbr.rel (%p410) target = $region40
        $region39: #{attention_pair_bias.5} parent=27 // pred_region
          %s413 = smul.u32 2, %s29
          %p414 = scmp.lt.s32.totalorder %s27, 1
          %s415 = scalar_select %p414, %s27, 1
          %p416 = scmp.lt.s32.totalorder %s413, 1
          %s417 = scalar_select %p416, %s413, 1
          %s418 = smul.addr %s415, 8
          %s419 = sadd.s32 %s417, %s418
          %s420 = smul.addr %s419, 8
          %s421 = scalar_lea.vmem %s2, %s420
          %s422 = smul.u32 2, %s29
        $region40: #{attention_pair_bias.5} parent=27 // pred_fallthru
          _
        // Predicated region
        $region41: #{attention_pair_bias.5} parent=27 // pred_check
          %p423 = pneg %p145
        $region42: #{attention_pair_bias.5} parent=27 // pred_check_branch
          %425 = sbr.rel (%p423) target = $region44
        $region43: #{attention_pair_bias.5} parent=27 // pred_region
          %s426 = smul.u32 2, %s28
          %p427 = scmp.lt.s32.totalorder %s27, 1
          %s428 = scalar_select %p427, %s27, 1
          %p429 = scmp.lt.s32.totalorder %s426, 1
          %s430 = scalar_select %p429, %s426, 1
          %s431 = smul.addr %s428, 2
          %s432 = sadd.s32 %s430, %s431
          %s433 = smul.addr %s432, 8
          %s434 = scalar_lea.vmem %s3, %s433
          %s435 = smul.u32 2, %s28
        $region44: #{attention_pair_bias.5} parent=27 // pred_fallthru
          _
        // Predicated region
        $region45: #{attention_pair_bias.5} parent=27 // pred_check
          %p436 = pneg %p175
        $region46: #{attention_pair_bias.5} parent=27 // pred_check_branch
          %438 = sbr.rel (%p436) target = $region48
        $region47: #{attention_pair_bias.5} parent=27 // pred_region
          %s439 = smul.u32 2, %s28
          %p440 = scmp.lt.s32.totalorder %s27, 1
          %s441 = scalar_select %p440, %s27, 1
          %p442 = scmp.lt.s32.totalorder %s439, 1
          %s443 = scalar_select %p442, %s439, 1
          %p444 = scmp.lt.s32.totalorder %s29, 0
          %s445 = scalar_select %p444, %s29, 0
          %s446 = sadd.s32 %s445, %s443
          %s447 = smul.addr %s441, 8
          %s448 = sadd.s32 %s446, %s447
          %s449 = smul.addr %s448, 8
          %s450 = scalar_lea.vmem %s4, %s449
          %s451 = smul.u32 2, %s28
        $region48: #{attention_pair_bias.5} parent=27 // pred_fallthru
          _
        // Predicated region
        $region49: #{attention_pair_bias.5} parent=27 // pred_check
          %p452 = pneg %p203
        $region50: #{attention_pair_bias.5} parent=27 // pred_check_branch
          %454 = sbr.rel (%p452) target = $region52
        $region51: #{attention_pair_bias.5} parent=27 // pred_region
          %p455 = scmp.lt.s32.totalorder %s27, 1
          %s456 = scalar_select %p455, %s27, 1
          %p457 = scmp.lt.s32.totalorder %s29, 0
          %s458 = scalar_select %p457, %s29, 0
          %s459 = sadd.s32 %s458, %s456
          %s460 = scalar_lea.vmem %s5, %s459
        $region52: #{attention_pair_bias.5} parent=27 // pred_fallthru
          _
        // Predicated region
        $region53: #{attention_pair_bias.5} parent=27 // pred_check
          %p461 = pneg %p231
        $region54: #{attention_pair_bias.5} parent=27 // pred_check_branch
          %463 = sbr.rel (%p461) target = $region56
        $region55: #{attention_pair_bias.5} parent=27 // pred_region
          %s464 = smul.u32 2, %s28
          %p465 = scmp.lt.s32.totalorder %s27, 1
          %s466 = scalar_select %p465, %s27, 1
          %p467 = scmp.lt.s32.totalorder %s464, 1
          %s468 = scalar_select %p467, %s464, 1
          %s469 = smul.addr %s466, 2
          %s470 = sadd.s32 %s468, %s469
          %s471 = smul.addr %s470, 8
          %s472 = scalar_lea.vmem %s6, %s471
          %s473 = smul.u32 2, %s28
        $region56: #{attention_pair_bias.5} parent=27 // pred_fallthru
          _
        // Predicated region
        $region57: #{attention_pair_bias.5} parent=27 // pred_check
          %p474 = pneg %p259
        $region58: #{attention_pair_bias.5} parent=27 // pred_check_branch
          %476 = sbr.rel (%p474) target = $region60
        $region59: #{attention_pair_bias.5} parent=27 // pred_region
          %s477 = smul.u32 2, %s28
          %p478 = scmp.lt.s32.totalorder %s27, 1
          %s479 = scalar_select %p478, %s27, 1
          %p480 = scmp.lt.s32.totalorder %s477, 1
          %s481 = scalar_select %p480, %s477, 1
          %s482 = smul.addr %s479, 2
          %s483 = sadd.s32 %s481, %s482
          %s484 = smul.addr %s483, 8
          %s485 = scalar_lea.vmem %s7, %s484
          %s486 = smul.u32 2, %s28
        $region60: #{attention_pair_bias.5} parent=27 // pred_fallthru
          _
      $region28: #{attention_pair_bias.5} parent=5 // pred_fallthru
        _
      %p487 = scmp.le.s32.totalorder 1, %s20
      %p488 = scmp.lt.s32.totalorder %s20, 3
      %p489 = pnand %p487, %p488
      %p490 = pneg %p489
      // Predicated region
      $region61: #{attention_pair_bias.5} parent=5 // pred_check
        _
      $region62: #{attention_pair_bias.5} parent=5 // pred_check_branch
        %492 = sbr.rel (%p489) target = $region64
      $region63: #{attention_pair_bias.5} parent=5 // pred_region
        %s493 = ssub.s32 %s20, 1
        %s494 = smul.u32 2, %s31
        %p495 = scmp.lt.s32.totalorder %s30, 1
        %s496 = scalar_select %p495, %s30, 1
        %p497 = scmp.lt.s32.totalorder %s494, 1
        %s498 = scalar_select %p497, %s494, 1
        %s499 = smul.addr %s496, 8
        %s500 = sadd.s32 %s498, %s499
        %s501 = smul.addr %s500, 8
        %s502 = scalar_lea.vmem %s0, %s501
        %p503 = pneg %p67
        %p504 = pneg %p64
        %s505 = smul.u32 2, %s32
        %p506 = scmp.lt.s32.totalorder %s30, 1
        %s507 = scalar_select %p506, %s30, 1
        %p508 = scmp.lt.s32.totalorder %s505, 1
        %s509 = scalar_select %p508, %s505, 1
        %s510 = smul.addr %s507, 8
        %s511 = sadd.s32 %s509, %s510
        %s512 = smul.addr %s511, 8
        %s513 = scalar_lea.vmem %s1, %s512
        %p514 = pneg %p95
        %p515 = pneg %p92
        %s516 = smul.u32 2, %s32
        %p517 = scmp.lt.s32.totalorder %s30, 1
        %s518 = scalar_select %p517, %s30, 1
        %p519 = scmp.lt.s32.totalorder %s516, 1
        %s520 = scalar_select %p519, %s516, 1
        %s521 = smul.addr %s518, 8
        %s522 = sadd.s32 %s520, %s521
        %s523 = smul.addr %s522, 8
        %s524 = scalar_lea.vmem %s2, %s523
        %p525 = pneg %p123
        %p526 = pneg %p120
        %s527 = smul.u32 2, %s31
        %p528 = scmp.lt.s32.totalorder %s30, 1
        %s529 = scalar_select %p528, %s30, 1
        %p530 = scmp.lt.s32.totalorder %s527, 1
        %s531 = scalar_select %p530, %s527, 1
        %s532 = smul.addr %s529, 2
        %s533 = sadd.s32 %s531, %s532
        %s534 = smul.addr %s533, 8
        %s535 = scalar_lea.vmem %s3, %s534
        %p536 = pneg %p151
        %p537 = pneg %p148
        %s538 = smul.u32 2, %s31
        %p539 = scmp.lt.s32.totalorder %s30, 1
        %s540 = scalar_select %p539, %s30, 1
        %p541 = scmp.lt.s32.totalorder %s538, 1
        %s542 = scalar_select %p541, %s538, 1
        %p543 = scmp.lt.s32.totalorder %s32, 0
        %s544 = scalar_select %p543, %s32, 0
        %s545 = sadd.s32 %s544, %s542
        %s546 = smul.addr %s540, 8
        %s547 = sadd.s32 %s545, %s546
        %s548 = smul.addr %s547, 8
        %s549 = scalar_lea.vmem %s4, %s548
        %p550 = pneg %p181
        %p551 = pneg %p178
        %p552 = scmp.lt.s32.totalorder %s30, 1
        %s553 = scalar_select %p552, %s30, 1
        %p554 = scmp.lt.s32.totalorder %s32, 0
        %s555 = scalar_select %p554, %s32, 0
        %s556 = sadd.s32 %s555, %s553
        %s557 = scalar_lea.vmem %s5, %s556
        %p558 = pneg %p209
        %p559 = pneg %p206
        %s560 = smul.u32 2, %s31
        %p561 = scmp.lt.s32.totalorder %s30, 1
        %s562 = scalar_select %p561, %s30, 1
        %p563 = scmp.lt.s32.totalorder %s560, 1
        %s564 = scalar_select %p563, %s560, 1
        %s565 = smul.addr %s562, 2
        %s566 = sadd.s32 %s564, %s565
        %s567 = smul.addr %s566, 8
        %s568 = scalar_lea.vmem %s6, %s567
        %p569 = pneg %p237
        %p570 = pneg %p234
        %s571 = smul.u32 2, %s31
        %p572 = scmp.lt.s32.totalorder %s30, 1
        %s573 = scalar_select %p572, %s30, 1
        %p574 = scmp.lt.s32.totalorder %s571, 1
        %s575 = scalar_select %p574, %s571, 1
        %s576 = smul.addr %s573, 2
        %s577 = sadd.s32 %s575, %s576
        %s578 = smul.addr %s577, 8
        %s579 = scalar_lea.vmem %s7, %s578
        %p580 = pneg %p265
        %p581 = pneg %p262
        %p582 = pneg %p286
        %p583 = pneg %p283
        %p584 = pneg %p307
        %p585 = pneg %p304
        %p586 = pneg %p328
        %p587 = pneg %p325
        %p588 = pneg %p356
        %p589 = pneg %p353
        %s590 = sand.u32 %s343, 1
        %s591 = scalar_lea.sflag [#allocation6], %s590
        %s592 = sand.u32 %s343, 1
        %s593 = smul.addr %s592, 16
        %s594 = scalar_lea.vmem [#allocation5], %s593
        %s595 = smul.u32 2, %s31
        %p596 = scmp.lt.s32.totalorder %s30, 1
        %s597 = scalar_select %p596, %s30, 1
        %p598 = scmp.lt.s32.totalorder %s595, 1
        %s599 = scalar_select %p598, %s595, 1
        %s600 = smul.addr %s597, 8
        %s601 = sadd.s32 %s599, %s600
        %s602 = smul.addr %s601, 8
        %s603 = scalar_lea.vmem %s0, %s602
        %s604 = smul.u32 2, %s31
        %s605 = smul.u32 2, %s32
        %p606 = scmp.lt.s32.totalorder %s30, 1
        %s607 = scalar_select %p606, %s30, 1
        %p608 = scmp.lt.s32.totalorder %s605, 1
        %s609 = scalar_select %p608, %s605, 1
        %s610 = smul.addr %s607, 8
        %s611 = sadd.s32 %s609, %s610
        %s612 = smul.addr %s611, 8
        %s613 = scalar_lea.vmem %s1, %s612
        %s614 = smul.u32 2, %s32
        %s615 = smul.u32 2, %s32
        %p616 = scmp.lt.s32.totalorder %s30, 1
        %s617 = scalar_select %p616, %s30, 1
        %p618 = scmp.lt.s32.totalorder %s615, 1
        %s619 = scalar_select %p618, %s615, 1
        %s620 = smul.addr %s617, 8
        %s621 = sadd.s32 %s619, %s620
        %s622 = smul.addr %s621, 8
        %s623 = scalar_lea.vmem %s2, %s622
        %s624 = smul.u32 2, %s32
        %s625 = smul.u32 2, %s31
        %p626 = scmp.lt.s32.totalorder %s30, 1
        %s627 = scalar_select %p626, %s30, 1
        %p628 = scmp.lt.s32.totalorder %s625, 1
        %s629 = scalar_select %p628, %s625, 1
        %s630 = smul.addr %s627, 2
        %s631 = sadd.s32 %s629, %s630
        %s632 = smul.addr %s631, 8
        %s633 = scalar_lea.vmem %s3, %s632
        %s634 = smul.u32 2, %s31
        %s635 = smul.u32 2, %s31
        %p636 = scmp.lt.s32.totalorder %s30, 1
        %s637 = scalar_select %p636, %s30, 1
        %p638 = scmp.lt.s32.totalorder %s635, 1
        %s639 = scalar_select %p638, %s635, 1
        %p640 = scmp.lt.s32.totalorder %s32, 0
        %s641 = scalar_select %p640, %s32, 0
        %s642 = sadd.s32 %s641, %s639
        %s643 = smul.addr %s637, 8
        %s644 = sadd.s32 %s642, %s643
        %s645 = smul.addr %s644, 8
        %s646 = scalar_lea.vmem %s4, %s645
        %s647 = smul.u32 2, %s31
        %p648 = scmp.lt.s32.totalorder %s30, 1
        %s649 = scalar_select %p648, %s30, 1
        %p650 = scmp.lt.s32.totalorder %s32, 0
        %s651 = scalar_select %p650, %s32, 0
        %s652 = sadd.s32 %s651, %s649
        %s653 = scalar_lea.vmem %s5, %s652
        %s654 = smul.u32 2, %s31
        %p655 = scmp.lt.s32.totalorder %s30, 1
        %s656 = scalar_select %p655, %s30, 1
        %p657 = scmp.lt.s32.totalorder %s654, 1
        %s658 = scalar_select %p657, %s654, 1
        %s659 = smul.addr %s656, 2
        %s660 = sadd.s32 %s658, %s659
        %s661 = smul.addr %s660, 8
        %s662 = scalar_lea.vmem %s6, %s661
        %s663 = smul.u32 2, %s31
        %s664 = smul.u32 2, %s31
        %p665 = scmp.lt.s32.totalorder %s30, 1
        %s666 = scalar_select %p665, %s30, 1
        %p667 = scmp.lt.s32.totalorder %s664, 1
        %s668 = scalar_select %p667, %s664, 1
        %s669 = smul.addr %s666, 2
        %s670 = sadd.s32 %s668, %s669
        %s671 = smul.addr %s670, 8
        %s672 = scalar_lea.vmem %s7, %s671
        %s673 = smul.u32 2, %s31
        %s674 = smul.u32 2, %s31
        %p675 = scmp.eq.s32.totalorder %s32, 0
        // Predicated region
        $region65: #{attention_pair_bias.5} parent=63 // pred_check
          %p676 = pneg %p675
        $region66: #{attention_pair_bias.5} parent=63 // pred_check_branch
          %678 = sbr.rel (%p676) target = $region68
        $region67: #{attention_pair_bias.5} parent=63 // pred_region
          %vm679 = vcmask 7168
          %680 = vst.msk [vmem:[#allocation2] sm:$0xff] %vm679, -inf
          %681 = vst.msk [vmem:[#allocation2 + $0x8] sm:$0xff] %vm679, -inf
          %682 = vst.msk [vmem:[#allocation2 + $0x10] sm:$0xff] %vm679, -inf
          %683 = vst.msk [vmem:[#allocation2 + $0x18] sm:$0xff] %vm679, -inf
          %684 = vst.msk [vmem:[#allocation2 + $0x20] sm:$0xff] %vm679, -inf
          %685 = vst.msk [vmem:[#allocation2 + $0x28] sm:$0xff] %vm679, -inf
          %686 = vst.msk [vmem:[#allocation2 + $0x30] sm:$0xff] %vm679, -inf
          %687 = vst.msk [vmem:[#allocation2 + $0x38] sm:$0xff] %vm679, -inf
          %688 = vst.msk [vmem:[#allocation3] sm:$0xff] %vm679, 0.0
          %689 = vst.msk [vmem:[#allocation3 + $0x8] sm:$0xff] %vm679, 0.0
          %690 = vst.msk [vmem:[#allocation3 + $0x10] sm:$0xff] %vm679, 0.0
          %691 = vst.msk [vmem:[#allocation3 + $0x18] sm:$0xff] %vm679, 0.0
          %692 = vst.msk [vmem:[#allocation3 + $0x20] sm:$0xff] %vm679, 0.0
          %693 = vst.msk [vmem:[#allocation3 + $0x28] sm:$0xff] %vm679, 0.0
          %694 = vst.msk [vmem:[#allocation3 + $0x30] sm:$0xff] %vm679, 0.0
          %695 = vst.msk [vmem:[#allocation3 + $0x38] sm:$0xff] %vm679, 0.0
          %vm696 = vcmask 64512
          %697 = vst.msk [vmem:[#allocation4] sm:$0xff] %vm696, 0.0
          %698 = vst.msk [vmem:[#allocation4 + $0x8] sm:$0xff] %vm696, 0.0
          %699 = vst.msk [vmem:[#allocation4 + $0x10] sm:$0xff] %vm696, 0.0
          %700 = vst.msk [vmem:[#allocation4 + $0x18] sm:$0xff] %vm696, 0.0
          %701 = vst.msk [vmem:[#allocation4 + $0x20] sm:$0xff] %vm696, 0.0
          %702 = vst.msk [vmem:[#allocation4 + $0x28] sm:$0xff] %vm696, 0.0
          %703 = vst.msk [vmem:[#allocation4 + $0x30] sm:$0xff] %vm696, 0.0
          %704 = vst.msk [vmem:[#allocation4 + $0x38] sm:$0xff] %vm696, 0.0
        $region68: #{attention_pair_bias.5} parent=63 // pred_fallthru
          _
        %v705 = vld [vmem:[%s603] sm:$0xff]
        %v706 = vld [vmem:[%s603 + $0x8] sm:$0xff]
        %v707 = vld [vmem:[%s603 + $0x10] sm:$0xff]
        %v708 = vld [vmem:[%s603 + $0x18] sm:$0xff]
        %v709 = vld [vmem:[%s603 + $0x20] sm:$0xff]
        %v710 = vld [vmem:[%s603 + $0x28] sm:$0xff]
        %v711 = vld [vmem:[%s603 + $0x30] sm:$0xff]
        %v712 = vld [vmem:[%s603 + $0x38] sm:$0xff]
        %v713 = vld [vmem:[%s613] sm:$0xff]
        %v714 = vld [vmem:[%s613 + $0x8] sm:$0xff]
        %v715 = vld [vmem:[%s613 + $0x10] sm:$0xff]
        %v716 = vld [vmem:[%s613 + $0x18] sm:$0xff]
        %v717 = vld [vmem:[%s613 + $0x20] sm:$0xff]
        %v718 = vld [vmem:[%s613 + $0x28] sm:$0xff]
        %v719 = vld [vmem:[%s613 + $0x30] sm:$0xff]
        %v720 = vld [vmem:[%s613 + $0x38] sm:$0xff]
        %v721 = vld [vmem:[%s646] sm:$0xff]
        %v722 = vld [vmem:[%s646 + $0x8] sm:$0xff]
        %v723 = vld [vmem:[%s646 + $0x10] sm:$0xff]
        %v724 = vld [vmem:[%s646 + $0x18] sm:$0xff]
        %v725 = vld [vmem:[%s646 + $0x20] sm:$0xff]
        %v726 = vld [vmem:[%s646 + $0x28] sm:$0xff]
        %v727 = vld [vmem:[%s646 + $0x30] sm:$0xff]
        %v728 = vld [vmem:[%s646 + $0x38] sm:$0xff]
        %vm729 = vcmask 64512
        %v731 = vsel %vm729, %v705, 0
        %v734 = vsel %vm729, %v706, 0
        %v737 = vsel %vm729, %v713, 0
        %v740 = vsel %vm729, %v714, 0
        %742 = vmatpush.xpose.msra.mxu0 0.0
        %743 = vmatpush.xpose.msra.mxu0 0.0
        %744 = vmatpush.xpose.msra.mxu0 0.0
        %745 = vmatpush.xpose.msra.mxu0 0.0
        %746 = vmatpush.xpose.msra.mxu0 0.0
        %747 = vmatpush.xpose.msra.mxu0 0.0
        %748 = vmatpush.xpose.msra.mxu0 0.0
        %749 = vmatpush.xpose.msra.mxu0 0.0
        %750 = vmatpush.xpose.msra.mxu0 0.0
        %751 = vmatpush.xpose.msra.mxu0 0.0
        %752 = vmatpush.xpose.msra.mxu0 0.0
        %753 = vmatpush.xpose.msra.mxu0 0.0
        %754 = vmatpush.xpose.msra.mxu0 0.0
        %755 = vmatpush.xpose.msra.mxu0 0.0
        %756 = vmatpush.xpose.msra.mxu0 %v740
        %757 = vmatpush.xpose.msra.mxu0 %v737
        %758 = vmatmul.f32.gmra.mxu0 %v731
        %v759 = vpop.f32.mrf.mxu0
        %v760 = vadd.f32 %v721, %v759
        %761 = vmatmul.f32.gmra.mxu0 %v734
        %v762 = vpop.f32.mrf.mxu0
        %v763 = vadd.f32 %v722, %v762
        %764 = vdwg.mxu0
        %v766 = vsel %vm729, %v707, 0
        %v769 = vsel %vm729, %v708, 0
        %v772 = vsel %vm729, %v715, 0
        %v775 = vsel %vm729, %v716, 0
        %777 = vmatpush.xpose.msra.mxu0 0.0
        %778 = vmatpush.xpose.msra.mxu0 0.0
        %779 = vmatpush.xpose.msra.mxu0 0.0
        %780 = vmatpush.xpose.msra.mxu0 0.0
        %781 = vmatpush.xpose.msra.mxu0 0.0
        %782 = vmatpush.xpose.msra.mxu0 0.0
        %783 = vmatpush.xpose.msra.mxu0 0.0
        %784 = vmatpush.xpose.msra.mxu0 0.0
        %785 = vmatpush.xpose.msra.mxu0 0.0
        %786 = vmatpush.xpose.msra.mxu0 0.0
        %787 = vmatpush.xpose.msra.mxu0 0.0
        %788 = vmatpush.xpose.msra.mxu0 0.0
        %789 = vmatpush.xpose.msra.mxu0 0.0
        %790 = vmatpush.xpose.msra.mxu0 0.0
        %791 = vmatpush.xpose.msra.mxu0 %v775
        %792 = vmatpush.xpose.msra.mxu0 %v772
        %793 = vmatmul.f32.gmra.mxu0 %v766
        %v794 = vpop.f32.mrf.mxu0
        %v795 = vadd.f32 %v723, %v794
        %796 = vmatmul.f32.gmra.mxu0 %v769
        %v797 = vpop.f32.mrf.mxu0
        %v798 = vadd.f32 %v724, %v797
        %799 = vdwg.mxu0
        %v801 = vsel %vm729, %v709, 0
        %v804 = vsel %vm729, %v710, 0
        %v807 = vsel %vm729, %v717, 0
        %v810 = vsel %vm729, %v718, 0
        %812 = vmatpush.xpose.msra.mxu0 0.0
        %813 = vmatpush.xpose.msra.mxu0 0.0
        %814 = vmatpush.xpose.msra.mxu0 0.0
        %815 = vmatpush.xpose.msra.mxu0 0.0
        %816 = vmatpush.xpose.msra.mxu0 0.0
        %817 = vmatpush.xpose.msra.mxu0 0.0
        %818 = vmatpush.xpose.msra.mxu0 0.0
        %819 = vmatpush.xpose.msra.mxu0 0.0
        %820 = vmatpush.xpose.msra.mxu0 0.0
        %821 = vmatpush.xpose.msra.mxu0 0.0
        %822 = vmatpush.xpose.msra.mxu0 0.0
        %823 = vmatpush.xpose.msra.mxu0 0.0
        %824 = vmatpush.xpose.msra.mxu0 0.0
        %825 = vmatpush.xpose.msra.mxu0 0.0
        %826 = vmatpush.xpose.msra.mxu0 %v810
        %827 = vmatpush.xpose.msra.mxu0 %v807
        %828 = vmatmul.f32.gmra.mxu0 %v801
        %v829 = vpop.f32.mrf.mxu0
        %v830 = vadd.f32 %v725, %v829
        %831 = vmatmul.f32.gmra.mxu0 %v804
        %v832 = vpop.f32.mrf.mxu0
        %v833 = vadd.f32 %v726, %v832
        %834 = vdwg.mxu0
        %v836 = vsel %vm729, %v711, 0
        %v839 = vsel %vm729, %v712, 0
        %v842 = vsel %vm729, %v719, 0
        %v845 = vsel %vm729, %v720, 0
        %847 = vmatpush.xpose.msra.mxu0 0.0
        %848 = vmatpush.xpose.msra.mxu0 0.0
        %849 = vmatpush.xpose.msra.mxu0 0.0
        %850 = vmatpush.xpose.msra.mxu0 0.0
        %851 = vmatpush.xpose.msra.mxu0 0.0
        %852 = vmatpush.xpose.msra.mxu0 0.0
        %853 = vmatpush.xpose.msra.mxu0 0.0
        %854 = vmatpush.xpose.msra.mxu0 0.0
        %855 = vmatpush.xpose.msra.mxu0 0.0
        %856 = vmatpush.xpose.msra.mxu0 0.0
        %857 = vmatpush.xpose.msra.mxu0 0.0
        %858 = vmatpush.xpose.msra.mxu0 0.0
        %859 = vmatpush.xpose.msra.mxu0 0.0
        %860 = vmatpush.xpose.msra.mxu0 0.0
        %861 = vmatpush.xpose.msra.mxu0 %v845
        %862 = vmatpush.xpose.msra.mxu0 %v842
        %863 = vmatmul.f32.gmra.mxu0 %v836
        %v864 = vpop.f32.mrf.mxu0
        %v865 = vadd.f32 %v727, %v864
        %866 = vmatmul.f32.gmra.mxu0 %v839
        %v867 = vpop.f32.mrf.mxu0
        %v868 = vadd.f32 %v728, %v867
        %869 = vdwg.mxu0
        %v870 = vld [vmem:[%s653] sm:$0x1]
        %v871 = vsub.f32 %v870, 1.0
        %v872 = vmul.f32 %v871, 1e+09
        %v874 = vperm.slane %v872, 0
        %v876 = vadd.f32 %v760, %v874
        %v877 = vadd.f32 %v763, %v874
        %v878 = vadd.f32 %v795, %v874
        %v879 = vadd.f32 %v798, %v874
        %v880 = vadd.f32 %v830, %v874
        %v881 = vadd.f32 %v833, %v874
        %v882 = vadd.f32 %v865, %v874
        %v883 = vadd.f32 %v868, %v874
        %v884 = vld [vmem:[#allocation2] sm:$0xff]
        %v885 = vld [vmem:[#allocation2 + $0x8] sm:$0xff]
        %v886 = vld [vmem:[#allocation2 + $0x10] sm:$0xff]
        %v887 = vld [vmem:[#allocation2 + $0x18] sm:$0xff]
        %v888 = vld [vmem:[#allocation2 + $0x20] sm:$0xff]
        %v889 = vld [vmem:[#allocation2 + $0x28] sm:$0xff]
        %v890 = vld [vmem:[#allocation2 + $0x30] sm:$0xff]
        %v891 = vld [vmem:[#allocation2 + $0x38] sm:$0xff]
        %vm892 = vcmask 130048
        %v893 = vsel %vm892, %v876, -inf
        %894 = vmax.xlane.f32.xlu0 %v893
        %v895 = vpop.xlane.xlu0 %894
        %v896 = vsel %vm892, %v877, -inf
        %897 = vmax.xlane.f32.xlu0 %v896
        %v898 = vpop.xlane.xlu0 %897
        %v899 = vsel %vm892, %v878, -inf
        %900 = vmax.xlane.f32.xlu0 %v899
        %v901 = vpop.xlane.xlu0 %900
        %v902 = vsel %vm892, %v879, -inf
        %903 = vmax.xlane.f32.xlu0 %v902
        %v904 = vpop.xlane.xlu0 %903
        %v905 = vsel %vm892, %v880, -inf
        %906 = vmax.xlane.f32.xlu0 %v905
        %v907 = vpop.xlane.xlu0 %906
        %v908 = vsel %vm892, %v881, -inf
        %909 = vmax.xlane.f32.xlu0 %v908
        %v910 = vpop.xlane.xlu0 %909
        %v911 = vsel %vm892, %v882, -inf
        %912 = vmax.xlane.f32.xlu0 %v911
        %v913 = vpop.xlane.xlu0 %912
        %v914 = vsel %vm892, %v883, -inf
        %915 = vmax.xlane.f32.xlu0 %v914
        %v916 = vpop.xlane.xlu0 %915
        %v917 = vmax.f32 %v884, %v895
        %v918 = vmax.f32 %v885, %v898
        %v919 = vmax.f32 %v886, %v901
        %v920 = vmax.f32 %v887, %v904
        %v921 = vmax.f32 %v888, %v907
        %v922 = vmax.f32 %v889, %v910
        %v923 = vmax.f32 %v890, %v913
        %v924 = vmax.f32 %v891, %v916
        %v925 = vsub.f32 %v884, %v917
        %v926 = vsub.f32 %v885, %v918
        %v927 = vsub.f32 %v886, %v919
        %v928 = vsub.f32 %v887, %v920
        %v929 = vsub.f32 %v888, %v921
        %v930 = vsub.f32 %v889, %v922
        %v931 = vsub.f32 %v890, %v923
        %v932 = vsub.f32 %v891, %v924
        %v933 = vmul.f32 %v925, 1.442695
        %v934 = vpow.pop %v933
        %v935 = vmul.f32 %v926, 1.442695
        %v936 = vpow.pop %v935
        %v937 = vmul.f32 %v927, 1.442695
        %v938 = vpow.pop %v937
        %v939 = vmul.f32 %v928, 1.442695
        %v940 = vpow.pop %v939
        %v941 = vmul.f32 %v929, 1.442695
        %v942 = vpow.pop %v941
        %v943 = vmul.f32 %v930, 1.442695
        %v944 = vpow.pop %v943
        %v945 = vmul.f32 %v931, 1.442695
        %v946 = vpow.pop %v945
        %v947 = vmul.f32 %v932, 1.442695
        %v948 = vpow.pop %v947
        %950 = vset.pattern.permute.xlu0 0
        %951 = vperm.xlu0 %950, %v917
        %v952 = vpop.permute.xlu0 %951
        %955 = vset.pattern.permute.xlu0 0
        %956 = vperm.xlu0 %955, %v918
        %v957 = vpop.permute.xlu0 %956
        %960 = vset.pattern.permute.xlu0 0
        %961 = vperm.xlu0 %960, %v919
        %v962 = vpop.permute.xlu0 %961
        %965 = vset.pattern.permute.xlu0 0
        %966 = vperm.xlu0 %965, %v920
        %v967 = vpop.permute.xlu0 %966
        %970 = vset.pattern.permute.xlu0 0
        %971 = vperm.xlu0 %970, %v921
        %v972 = vpop.permute.xlu0 %971
        %975 = vset.pattern.permute.xlu0 0
        %976 = vperm.xlu0 %975, %v922
        %v977 = vpop.permute.xlu0 %976
        %980 = vset.pattern.permute.xlu0 0
        %981 = vperm.xlu0 %980, %v923
        %v982 = vpop.permute.xlu0 %981
        %985 = vset.pattern.permute.xlu0 0
        %986 = vperm.xlu0 %985, %v924
        %v987 = vpop.permute.xlu0 %986
        %v989 = vsub.f32 %v876, %v952
        %v990 = vsub.f32 %v877, %v957
        %v991 = vsub.f32 %v878, %v962
        %v992 = vsub.f32 %v879, %v967
        %v993 = vsub.f32 %v880, %v972
        %v994 = vsub.f32 %v881, %v977
        %v995 = vsub.f32 %v882, %v982
        %v996 = vsub.f32 %v883, %v987
        %v997 = vmul.f32 %v989, 1.442695
        %v998 = vpow.pop %v997
        %v999 = vmul.f32 %v990, 1.442695
        %v1000 = vpow.pop %v999
        %v1001 = vmul.f32 %v991, 1.442695
        %v1002 = vpow.pop %v1001
        %v1003 = vmul.f32 %v992, 1.442695
        %v1004 = vpow.pop %v1003
        %v1005 = vmul.f32 %v993, 1.442695
        %v1006 = vpow.pop %v1005
        %v1007 = vmul.f32 %v994, 1.442695
        %v1008 = vpow.pop %v1007
        %v1009 = vmul.f32 %v995, 1.442695
        %v1010 = vpow.pop %v1009
        %v1011 = vmul.f32 %v996, 1.442695
        %v1012 = vpow.pop %v1011
        %v1013 = vld [vmem:[#allocation3] sm:$0xff]
        %v1014 = vld [vmem:[#allocation3 + $0x8] sm:$0xff]
        %v1015 = vld [vmem:[#allocation3 + $0x10] sm:$0xff]
        %v1016 = vld [vmem:[#allocation3 + $0x18] sm:$0xff]
        %v1017 = vld [vmem:[#allocation3 + $0x20] sm:$0xff]
        %v1018 = vld [vmem:[#allocation3 + $0x28] sm:$0xff]
        %v1019 = vld [vmem:[#allocation3 + $0x30] sm:$0xff]
        %v1020 = vld [vmem:[#allocation3 + $0x38] sm:$0xff]
        %v1021 = vmul.f32 %v934, %v1013
        %v1022 = vmul.f32 %v936, %v1014
        %v1023 = vmul.f32 %v938, %v1015
        %v1024 = vmul.f32 %v940, %v1016
        %v1025 = vmul.f32 %v942, %v1017
        %v1026 = vmul.f32 %v944, %v1018
        %v1027 = vmul.f32 %v946, %v1019
        %v1028 = vmul.f32 %v948, %v1020
        %v1029 = vsel %vm892, %v998, 0.0
        %1030 = vadd.xlane.f32.xlu0 %v1029
        %v1031 = vpop.xlane.xlu0 %1030
        %v1032 = vsel %vm892, %v1000, 0.0
        %1033 = vadd.xlane.f32.xlu0 %v1032
        %v1034 = vpop.xlane.xlu0 %1033
        %v1035 = vsel %vm892, %v1002, 0.0
        %1036 = vadd.xlane.f32.xlu0 %v1035
        %v1037 = vpop.xlane.xlu0 %1036
        %v1038 = vsel %vm892, %v1004, 0.0
        %1039 = vadd.xlane.f32.xlu0 %v1038
        %v1040 = vpop.xlane.xlu0 %1039
        %v1041 = vsel %vm892, %v1006, 0.0
        %1042 = vadd.xlane.f32.xlu0 %v1041
        %v1043 = vpop.xlane.xlu0 %1042
        %v1044 = vsel %vm892, %v1008, 0.0
        %1045 = vadd.xlane.f32.xlu0 %v1044
        %v1046 = vpop.xlane.xlu0 %1045
        %v1047 = vsel %vm892, %v1010, 0.0
        %1048 = vadd.xlane.f32.xlu0 %v1047
        %v1049 = vpop.xlane.xlu0 %1048
        %v1050 = vsel %vm892, %v1012, 0.0
        %1051 = vadd.xlane.f32.xlu0 %v1050
        %v1052 = vpop.xlane.xlu0 %1051
        %v1053 = vadd.f32 %v1021, %v1031
        %v1054 = vadd.f32 %v1022, %v1034
        %v1055 = vadd.f32 %v1023, %v1037
        %v1056 = vadd.f32 %v1024, %v1040
        %v1057 = vadd.f32 %v1025, %v1043
        %v1058 = vadd.f32 %v1026, %v1046
        %v1059 = vadd.f32 %v1027, %v1049
        %v1060 = vadd.f32 %v1028, %v1052
        %vm1061 = vcmask 7168
        %1062 = vst.msk [vmem:[#allocation3] sm:$0xff] %vm1061, %v1053
        %1063 = vst.msk [vmem:[#allocation3 + $0x8] sm:$0xff] %vm1061, %v1054
        %1064 = vst.msk [vmem:[#allocation3 + $0x10] sm:$0xff] %vm1061, %v1055
        %1065 = vst.msk [vmem:[#allocation3 + $0x18] sm:$0xff] %vm1061, %v1056
        %1066 = vst.msk [vmem:[#allocation3 + $0x20] sm:$0xff] %vm1061, %v1057
        %1067 = vst.msk [vmem:[#allocation3 + $0x28] sm:$0xff] %vm1061, %v1058
        %1068 = vst.msk [vmem:[#allocation3 + $0x30] sm:$0xff] %vm1061, %v1059
        %1069 = vst.msk [vmem:[#allocation3 + $0x38] sm:$0xff] %vm1061, %v1060
        %v1070 = vld [vmem:[#allocation4] sm:$0xff]
        %v1071 = vld [vmem:[#allocation4 + $0x8] sm:$0xff]
        %v1072 = vld [vmem:[#allocation4 + $0x10] sm:$0xff]
        %v1073 = vld [vmem:[#allocation4 + $0x18] sm:$0xff]
        %v1074 = vld [vmem:[#allocation4 + $0x20] sm:$0xff]
        %v1075 = vld [vmem:[#allocation4 + $0x28] sm:$0xff]
        %v1076 = vld [vmem:[#allocation4 + $0x30] sm:$0xff]
        %v1077 = vld [vmem:[#allocation4 + $0x38] sm:$0xff]
        %1079 = vset.pattern.permute.xlu0 0
        %1080 = vperm.xlu0 %1079, %v934
        %v1081 = vpop.permute.xlu0 %1080
        %1084 = vset.pattern.permute.xlu0 0
        %1085 = vperm.xlu0 %1084, %v936
        %v1086 = vpop.permute.xlu0 %1085
        %1089 = vset.pattern.permute.xlu0 0
        %1090 = vperm.xlu0 %1089, %v938
        %v1091 = vpop.permute.xlu0 %1090
        %1094 = vset.pattern.permute.xlu0 0
        %1095 = vperm.xlu0 %1094, %v940
        %v1096 = vpop.permute.xlu0 %1095
        %1099 = vset.pattern.permute.xlu0 0
        %1100 = vperm.xlu0 %1099, %v942
        %v1101 = vpop.permute.xlu0 %1100
        %1104 = vset.pattern.permute.xlu0 0
        %1105 = vperm.xlu0 %1104, %v944
        %v1106 = vpop.permute.xlu0 %1105
        %1109 = vset.pattern.permute.xlu0 0
        %1110 = vperm.xlu0 %1109, %v946
        %v1111 = vpop.permute.xlu0 %1110
        %1114 = vset.pattern.permute.xlu0 0
        %1115 = vperm.xlu0 %1114, %v948
        %v1116 = vpop.permute.xlu0 %1115
        %v1118 = vmul.f32 %v1081, %v1070
        %v1119 = vmul.f32 %v1086, %v1071
        %v1120 = vmul.f32 %v1091, %v1072
        %v1121 = vmul.f32 %v1096, %v1073
        %v1122 = vmul.f32 %v1101, %v1074
        %v1123 = vmul.f32 %v1106, %v1075
        %v1124 = vmul.f32 %v1111, %v1076
        %v1125 = vmul.f32 %v1116, %v1077
        %v1126 = vld [vmem:[%s623] sm:$0xff]
        %v1127 = vld [vmem:[%s623 + $0x8] sm:$0xff]
        %v1128 = vld [vmem:[%s623 + $0x10] sm:$0xff]
        %v1129 = vld [vmem:[%s623 + $0x18] sm:$0xff]
        %v1130 = vld [vmem:[%s623 + $0x20] sm:$0xff]
        %v1131 = vld [vmem:[%s623 + $0x28] sm:$0xff]
        %v1132 = vld [vmem:[%s623 + $0x30] sm:$0xff]
        %v1133 = vld [vmem:[%s623 + $0x38] sm:$0xff]
        %v1135 = vsel %vm892, %v998, 0
        %v1138 = vsel %vm892, %v1000, 0
        %1140 = vmatpush.msra.mxu0 0.0
        %1141 = vmatpush.msra.mxu0 0.0
        %1142 = vmatpush.msra.mxu0 0.0
        %1143 = vmatpush.msra.mxu0 0.0
        %1144 = vmatpush.msra.mxu0 0.0
        %1145 = vmatpush.msra.mxu0 0.0
        %1146 = vmatpush.msra.mxu0 0.0
        %1147 = vmatpush.msra.mxu0 0.0
        %1148 = vmatpush.msra.mxu0 0.0
        %1149 = vmatpush.msra.mxu0 0.0
        %1150 = vmatpush.msra.mxu0 0.0
        %1151 = vmatpush.msra.mxu0 0.0
        %1152 = vmatpush.msra.mxu0 0.0
        %1153 = vmatpush.msra.mxu0 0.0
        %1154 = vmatpush.msra.mxu0 %v1127
        %1155 = vmatpush.msra.mxu0 %v1126
        %1156 = vmatmul.f32.gmra.mxu0 %v1135
        %v1157 = vpop.f32.mrf.mxu0
        %v1158 = vadd.f32 0.0, %v1157
        %1159 = vmatmul.f32.gmra.mxu0 %v1138
        %v1160 = vpop.f32.mrf.mxu0
        %v1161 = vadd.f32 0.0, %v1160
        %1162 = vdwg.mxu0
        %v1164 = vsel %vm892, %v1002, 0
        %v1167 = vsel %vm892, %v1004, 0
        %1169 = vmatpush.msra.mxu0 0.0
        %1170 = vmatpush.msra.mxu0 0.0
        %1171 = vmatpush.msra.mxu0 0.0
        %1172 = vmatpush.msra.mxu0 0.0
        %1173 = vmatpush.msra.mxu0 0.0
        %1174 = vmatpush.msra.mxu0 0.0
        %1175 = vmatpush.msra.mxu0 0.0
        %1176 = vmatpush.msra.mxu0 0.0
        %1177 = vmatpush.msra.mxu0 0.0
        %1178 = vmatpush.msra.mxu0 0.0
        %1179 = vmatpush.msra.mxu0 0.0
        %1180 = vmatpush.msra.mxu0 0.0
        %1181 = vmatpush.msra.mxu0 0.0
        %1182 = vmatpush.msra.mxu0 0.0
        %1183 = vmatpush.msra.mxu0 %v1129
        %1184 = vmatpush.msra.mxu0 %v1128
        %1185 = vmatmul.f32.gmra.mxu0 %v1164
        %v1186 = vpop.f32.mrf.mxu0
        %v1187 = vadd.f32 0.0, %v1186
        %1188 = vmatmul.f32.gmra.mxu0 %v1167
        %v1189 = vpop.f32.mrf.mxu0
        %v1190 = vadd.f32 0.0, %v1189
        %1191 = vdwg.mxu0
        %v1193 = vsel %vm892, %v1006, 0
        %v1196 = vsel %vm892, %v1008, 0
        %1198 = vmatpush.msra.mxu0 0.0
        %1199 = vmatpush.msra.mxu0 0.0
        %1200 = vmatpush.msra.mxu0 0.0
        %1201 = vmatpush.msra.mxu0 0.0
        %1202 = vmatpush.msra.mxu0 0.0
        %1203 = vmatpush.msra.mxu0 0.0
        %1204 = vmatpush.msra.mxu0 0.0
        %1205 = vmatpush.msra.mxu0 0.0
        %1206 = vmatpush.msra.mxu0 0.0
        %1207 = vmatpush.msra.mxu0 0.0
        %1208 = vmatpush.msra.mxu0 0.0
        %1209 = vmatpush.msra.mxu0 0.0
        %1210 = vmatpush.msra.mxu0 0.0
        %1211 = vmatpush.msra.mxu0 0.0
        %1212 = vmatpush.msra.mxu0 %v1131
        %1213 = vmatpush.msra.mxu0 %v1130
        %1214 = vmatmul.f32.gmra.mxu0 %v1193
        %v1215 = vpop.f32.mrf.mxu0
        %v1216 = vadd.f32 0.0, %v1215
        %1217 = vmatmul.f32.gmra.mxu0 %v1196
        %v1218 = vpop.f32.mrf.mxu0
        %v1219 = vadd.f32 0.0, %v1218
        %1220 = vdwg.mxu0
        %v1222 = vsel %vm892, %v1010, 0
        %v1225 = vsel %vm892, %v1012, 0
        %1227 = vmatpush.msra.mxu0 0.0
        %1228 = vmatpush.msra.mxu0 0.0
        %1229 = vmatpush.msra.mxu0 0.0
        %1230 = vmatpush.msra.mxu0 0.0
        %1231 = vmatpush.msra.mxu0 0.0
        %1232 = vmatpush.msra.mxu0 0.0
        %1233 = vmatpush.msra.mxu0 0.0
        %1234 = vmatpush.msra.mxu0 0.0
        %1235 = vmatpush.msra.mxu0 0.0
        %1236 = vmatpush.msra.mxu0 0.0
        %1237 = vmatpush.msra.mxu0 0.0
        %1238 = vmatpush.msra.mxu0 0.0
        %1239 = vmatpush.msra.mxu0 0.0
        %1240 = vmatpush.msra.mxu0 0.0
        %1241 = vmatpush.msra.mxu0 %v1133
        %1242 = vmatpush.msra.mxu0 %v1132
        %1243 = vmatmul.f32.gmra.mxu0 %v1222
        %v1244 = vpop.f32.mrf.mxu0
        %v1245 = vadd.f32 0.0, %v1244
        %1246 = vmatmul.f32.gmra.mxu0 %v1225
        %v1247 = vpop.f32.mrf.mxu0
        %v1248 = vadd.f32 0.0, %v1247
        %1249 = vdwg.mxu0
        %v1250 = vadd.f32 %v1118, %v1158
        %v1251 = vadd.f32 %v1119, %v1161
        %v1252 = vadd.f32 %v1120, %v1187
        %v1253 = vadd.f32 %v1121, %v1190
        %v1254 = vadd.f32 %v1122, %v1216
        %v1255 = vadd.f32 %v1123, %v1219
        %v1256 = vadd.f32 %v1124, %v1245
        %v1257 = vadd.f32 %v1125, %v1248
        %1258 = vst.msk [vmem:[#allocation4] sm:$0xff] %vm729, %v1250
        %1259 = vst.msk [vmem:[#allocation4 + $0x8] sm:$0xff] %vm729, %v1251
        %1260 = vst.msk [vmem:[#allocation4 + $0x10] sm:$0xff] %vm729, %v1252
        %1261 = vst.msk [vmem:[#allocation4 + $0x18] sm:$0xff] %vm729, %v1253
        %1262 = vst.msk [vmem:[#allocation4 + $0x20] sm:$0xff] %vm729, %v1254
        %1263 = vst.msk [vmem:[#allocation4 + $0x28] sm:$0xff] %vm729, %v1255
        %1264 = vst.msk [vmem:[#allocation4 + $0x30] sm:$0xff] %vm729, %v1256
        %1265 = vst.msk [vmem:[#allocation4 + $0x38] sm:$0xff] %vm729, %v1257
        %1266 = vst.msk [vmem:[#allocation2] sm:$0xff] %vm1061, %v917
        %1267 = vst.msk [vmem:[#allocation2 + $0x8] sm:$0xff] %vm1061, %v918
        %1268 = vst.msk [vmem:[#allocation2 + $0x10] sm:$0xff] %vm1061, %v919
        %1269 = vst.msk [vmem:[#allocation2 + $0x18] sm:$0xff] %vm1061, %v920
        %1270 = vst.msk [vmem:[#allocation2 + $0x20] sm:$0xff] %vm1061, %v921
        %1271 = vst.msk [vmem:[#allocation2 + $0x28] sm:$0xff] %vm1061, %v922
        %1272 = vst.msk [vmem:[#allocation2 + $0x30] sm:$0xff] %vm1061, %v923
        %1273 = vst.msk [vmem:[#allocation2 + $0x38] sm:$0xff] %vm1061, %v924
        // Predicated region
        $region69: #{attention_pair_bias.5} parent=63 // pred_check
          %p1274 = pneg %p675
        $region70: #{attention_pair_bias.5} parent=63 // pred_check_branch
          %1276 = sbr.rel (%p1274) target = $region72
        $region71: #{attention_pair_bias.5} parent=63 // pred_region
          %v1277 = vld [vmem:[#allocation3] sm:$0xff]
          %v1278 = vld [vmem:[#allocation3 + $0x8] sm:$0xff]
          %v1279 = vld [vmem:[#allocation3 + $0x10] sm:$0xff]
          %v1280 = vld [vmem:[#allocation3 + $0x18] sm:$0xff]
          %v1281 = vld [vmem:[#allocation3 + $0x20] sm:$0xff]
          %v1282 = vld [vmem:[#allocation3 + $0x28] sm:$0xff]
          %v1283 = vld [vmem:[#allocation3 + $0x30] sm:$0xff]
          %v1284 = vld [vmem:[#allocation3 + $0x38] sm:$0xff]
          %v1285 = vrcp.pop %v1277
          %v1286 = vmul.f32 %v1277, %v1285
          %v1287 = vsub.f32 1.0, %v1286
          %v1288 = vmul.f32 %v1285, %v1287
          %v1289 = vadd.f32 %v1285, %v1288
          %vm1290 = vweird.f32 %v1277
          %vm1291 = vweird.f32 %v1285
          %vm1292 = vmor %vm1290, %vm1291
          %v1293 = vsel %vm1292, %v1285, %v1289
          %v1294 = vand.u32 2147483647, %v1277
          %vm1295 = vcmp.eq.f32.partialorder %v1294, 8.507059e+37
          %v1296 = vand.u32 %v1277, 2147483648
          %v1297 = vor.u32 1.1754944e-38, %v1296
          %v1298 = vsel %vm1295, %v1297, %v1293
          %v1299 = vrcp.pop %v1278
          %v1300 = vmul.f32 %v1278, %v1299
          %v1301 = vsub.f32 1.0, %v1300
          %v1302 = vmul.f32 %v1299, %v1301
          %v1303 = vadd.f32 %v1299, %v1302
          %vm1304 = vweird.f32 %v1278
          %vm1305 = vweird.f32 %v1299
          %vm1306 = vmor %vm1304, %vm1305
          %v1307 = vsel %vm1306, %v1299, %v1303
          %v1308 = vand.u32 2147483647, %v1278
          %vm1309 = vcmp.eq.f32.partialorder %v1308, 8.507059e+37
          %v1310 = vand.u32 %v1278, 2147483648
          %v1311 = vor.u32 1.1754944e-38, %v1310
          %v1312 = vsel %vm1309, %v1311, %v1307
          %v1313 = vrcp.pop %v1279
          %v1314 = vmul.f32 %v1279, %v1313
          %v1315 = vsub.f32 1.0, %v1314
          %v1316 = vmul.f32 %v1313, %v1315
          %v1317 = vadd.f32 %v1313, %v1316
          %vm1318 = vweird.f32 %v1279
          %vm1319 = vweird.f32 %v1313
          %vm1320 = vmor %vm1318, %vm1319
          %v1321 = vsel %vm1320, %v1313, %v1317
          %v1322 = vand.u32 2147483647, %v1279
          %vm1323 = vcmp.eq.f32.partialorder %v1322, 8.507059e+37
          %v1324 = vand.u32 %v1279, 2147483648
          %v1325 = vor.u32 1.1754944e-38, %v1324
          %v1326 = vsel %vm1323, %v1325, %v1321
          %v1327 = vrcp.pop %v1280
          %v1328 = vmul.f32 %v1280, %v1327
          %v1329 = vsub.f32 1.0, %v1328
          %v1330 = vmul.f32 %v1327, %v1329
          %v1331 = vadd.f32 %v1327, %v1330
          %vm1332 = vweird.f32 %v1280
          %vm1333 = vweird.f32 %v1327
          %vm1334 = vmor %vm1332, %vm1333
          %v1335 = vsel %vm1334, %v1327, %v1331
          %v1336 = vand.u32 2147483647, %v1280
          %vm1337 = vcmp.eq.f32.partialorder %v1336, 8.507059e+37
          %v1338 = vand.u32 %v1280, 2147483648
          %v1339 = vor.u32 1.1754944e-38, %v1338
          %v1340 = vsel %vm1337, %v1339, %v1335
          %v1341 = vrcp.pop %v1281
          %v1342 = vmul.f32 %v1281, %v1341
          %v1343 = vsub.f32 1.0, %v1342
          %v1344 = vmul.f32 %v1341, %v1343
          %v1345 = vadd.f32 %v1341, %v1344
          %vm1346 = vweird.f32 %v1281
          %vm1347 = vweird.f32 %v1341
          %vm1348 = vmor %vm1346, %vm1347
          %v1349 = vsel %vm1348, %v1341, %v1345
          %v1350 = vand.u32 2147483647, %v1281
          %vm1351 = vcmp.eq.f32.partialorder %v1350, 8.507059e+37
          %v1352 = vand.u32 %v1281, 2147483648
          %v1353 = vor.u32 1.1754944e-38, %v1352
          %v1354 = vsel %vm1351, %v1353, %v1349
          %v1355 = vrcp.pop %v1282
          %v1356 = vmul.f32 %v1282, %v1355
          %v1357 = vsub.f32 1.0, %v1356
          %v1358 = vmul.f32 %v1355, %v1357
          %v1359 = vadd.f32 %v1355, %v1358
          %vm1360 = vweird.f32 %v1282
          %vm1361 = vweird.f32 %v1355
          %vm1362 = vmor %vm1360, %vm1361
          %v1363 = vsel %vm1362, %v1355, %v1359
          %v1364 = vand.u32 2147483647, %v1282
          %vm1365 = vcmp.eq.f32.partialorder %v1364, 8.507059e+37
          %v1366 = vand.u32 %v1282, 2147483648
          %v1367 = vor.u32 1.1754944e-38, %v1366
          %v1368 = vsel %vm1365, %v1367, %v1363
          %v1369 = vrcp.pop %v1283
          %v1370 = vmul.f32 %v1283, %v1369
          %v1371 = vsub.f32 1.0, %v1370
          %v1372 = vmul.f32 %v1369, %v1371
          %v1373 = vadd.f32 %v1369, %v1372
          %vm1374 = vweird.f32 %v1283
          %vm1375 = vweird.f32 %v1369
          %vm1376 = vmor %vm1374, %vm1375
          %v1377 = vsel %vm1376, %v1369, %v1373
          %v1378 = vand.u32 2147483647, %v1283
          %vm1379 = vcmp.eq.f32.partialorder %v1378, 8.507059e+37
          %v1380 = vand.u32 %v1283, 2147483648
          %v1381 = vor.u32 1.1754944e-38, %v1380
          %v1382 = vsel %vm1379, %v1381, %v1377
          %v1383 = vrcp.pop %v1284
          %v1384 = vmul.f32 %v1284, %v1383
          %v1385 = vsub.f32 1.0, %v1384
          %v1386 = vmul.f32 %v1383, %v1385
          %v1387 = vadd.f32 %v1383, %v1386
          %vm1388 = vweird.f32 %v1284
          %vm1389 = vweird.f32 %v1383
          %vm1390 = vmor %vm1388, %vm1389
          %v1391 = vsel %vm1390, %v1383, %v1387
          %v1392 = vand.u32 2147483647, %v1284
          %vm1393 = vcmp.eq.f32.partialorder %v1392, 8.507059e+37
          %v1394 = vand.u32 %v1284, 2147483648
          %v1395 = vor.u32 1.1754944e-38, %v1394
          %v1396 = vsel %vm1393, %v1395, %v1391
          %v1397 = vld [vmem:[#allocation4] sm:$0xff]
          %v1398 = vld [vmem:[#allocation4 + $0x8] sm:$0xff]
          %v1399 = vld [vmem:[#allocation4 + $0x10] sm:$0xff]
          %v1400 = vld [vmem:[#allocation4 + $0x18] sm:$0xff]
          %v1401 = vld [vmem:[#allocation4 + $0x20] sm:$0xff]
          %v1402 = vld [vmem:[#allocation4 + $0x28] sm:$0xff]
          %v1403 = vld [vmem:[#allocation4 + $0x30] sm:$0xff]
          %v1404 = vld [vmem:[#allocation4 + $0x38] sm:$0xff]
          %1406 = vset.pattern.permute.xlu0 0
          %1407 = vperm.xlu0 %1406, %v1298
          %v1408 = vpop.permute.xlu0 %1407
          %1411 = vset.pattern.permute.xlu0 0
          %1412 = vperm.xlu0 %1411, %v1312
          %v1413 = vpop.permute.xlu0 %1412
          %1416 = vset.pattern.permute.xlu0 0
          %1417 = vperm.xlu0 %1416, %v1326
          %v1418 = vpop.permute.xlu0 %1417
          %1421 = vset.pattern.permute.xlu0 0
          %1422 = vperm.xlu0 %1421, %v1340
          %v1423 = vpop.permute.xlu0 %1422
          %1426 = vset.pattern.permute.xlu0 0
          %1427 = vperm.xlu0 %1426, %v1354
          %v1428 = vpop.permute.xlu0 %1427
          %1431 = vset.pattern.permute.xlu0 0
          %1432 = vperm.xlu0 %1431, %v1368
          %v1433 = vpop.permute.xlu0 %1432
          %1436 = vset.pattern.permute.xlu0 0
          %1437 = vperm.xlu0 %1436, %v1382
          %v1438 = vpop.permute.xlu0 %1437
          %1441 = vset.pattern.permute.xlu0 0
          %1442 = vperm.xlu0 %1441, %v1396
          %v1443 = vpop.permute.xlu0 %1442
          %v1445 = vmul.f32 %v1397, %v1408
          %v1446 = vmul.f32 %v1398, %v1413
          %v1447 = vmul.f32 %v1399, %v1418
          %v1448 = vmul.f32 %v1400, %v1423
          %v1449 = vmul.f32 %v1401, %v1428
          %v1450 = vmul.f32 %v1402, %v1433
          %v1451 = vmul.f32 %v1403, %v1438
          %v1452 = vmul.f32 %v1404, %v1443
          %1455 = vrot.lane.b32.xlu0 %v1447, 8
          %v1456 = vpop.permute.xlu0 %1455
          %1457 = vrot.lane.b32.xlu0 %v1448, 8
          %v1458 = vpop.permute.xlu0 %1457
          %1463 = vrot.lane.b32.xlu0 %v1449, 16
          %v1464 = vpop.permute.xlu0 %1463
          %1465 = vrot.lane.b32.xlu0 %v1450, 16
          %v1466 = vpop.permute.xlu0 %1465
          %1471 = vrot.lane.b32.xlu0 %v1451, 24
          %v1472 = vpop.permute.xlu0 %1471
          %1473 = vrot.lane.b32.xlu0 %v1452, 24
          %v1474 = vpop.permute.xlu0 %1473
          %v1477 = vsel %vm729, %v1445, %v1456
          %v1478 = vsel %vm729, %v1446, %v1458
          %v1479 = vsel %vm892, %v1477, %v1464
          %v1480 = vsel %vm892, %v1478, %v1466
          %vm1481 = vcmask 195584
          %v1482 = vsel %vm1481, %v1479, %v1472
          %v1483 = vsel %vm1481, %v1480, %v1474
          %v1484 = vld [vmem:[%s633] sm:$0xff]
          %v1485 = vld [vmem:[%s633 + $0x8] sm:$0xff]
          %v1486 = vmul.f32 %v1482, %v1484
          %v1487 = vmul.f32 %v1483, %v1485
          %v1488 = vld [vmem:[%s8] sm:$0xff]
          %v1489 = vld [vmem:[%s8 + $0x8] sm:$0xff]
          %v1490 = vld [vmem:[%s8 + $0x10] sm:$0xff]
          %v1491 = vld [vmem:[%s8 + $0x18] sm:$0xff]
          %vm1492 = vcmask 261120
          %v1494 = vsel %vm1492, %v1486, 0
          %v1497 = vsel %vm1492, %v1487, 0
          %1499 = vmatpush.msra.mxu0 0.0
          %1500 = vmatpush.msra.mxu0 0.0
          %1501 = vmatpush.msra.mxu0 0.0
          %1502 = vmatpush.msra.mxu0 0.0
          %1503 = vmatpush.msra.mxu0 0.0
          %1504 = vmatpush.msra.mxu0 0.0
          %1505 = vmatpush.msra.mxu0 0.0
          %1506 = vmatpush.msra.mxu0 0.0
          %1507 = vmatpush.msra.mxu0 0.0
          %1508 = vmatpush.msra.mxu0 0.0
          %1509 = vmatpush.msra.mxu0 0.0
          %1510 = vmatpush.msra.mxu0 0.0
          %1511 = vmatpush.msra.mxu0 %v1491
          %1512 = vmatpush.msra.mxu0 %v1490
          %1513 = vmatpush.msra.mxu0 %v1489
          %1514 = vmatpush.msra.mxu0 %v1488
          %1515 = vmatmul.f32.gmra.mxu0 %v1494
          %v1516 = vpop.f32.mrf.mxu0
          %v1517 = vadd.f32 0.0, %v1516
          %1518 = vmatmul.f32.gmra.mxu0 %v1497
          %v1519 = vpop.f32.mrf.mxu0
          %v1520 = vadd.f32 0.0, %v1519
          %1521 = vdwg.mxu0
          %v1522 = vld [vmem:[%s662] sm:$0xff]
          %v1523 = vld [vmem:[%s662 + $0x8] sm:$0xff]
          %1525 = vset.pattern.permute.xlu0 0
          %1526 = vperm.xlu0 %1525, %v1522
          %v1527 = vpop.permute.xlu0 %1526
          %1530 = vset.pattern.permute.xlu0 0
          %1531 = vperm.xlu0 %1530, %v1523
          %v1532 = vpop.permute.xlu0 %1531
          %v1534 = vmul.f32 %v1517, %v1527
          %v1535 = vmul.f32 %v1520, %v1532
          %v1536 = vld [vmem:[%s672] sm:$0xff]
          %v1537 = vld [vmem:[%s672 + $0x8] sm:$0xff]
          %v1538 = vld [vmem:[%s9] sm:$0xff]
          %v1539 = vld [vmem:[%s9 + $0x8] sm:$0xff]
          %v1540 = vld [vmem:[%s10] sm:$0x1]
          %v1542 = vperm.slane %v1540, 0
          %v1545 = vsel %vm892, %v1536, 0
          %v1548 = vsel %vm892, %v1537, 0
          %1550 = vmatpush.msra.mxu0 0.0
          %1551 = vmatpush.msra.mxu0 0.0
          %1552 = vmatpush.msra.mxu0 0.0
          %1553 = vmatpush.msra.mxu0 0.0
          %1554 = vmatpush.msra.mxu0 0.0
          %1555 = vmatpush.msra.mxu0 0.0
          %1556 = vmatpush.msra.mxu0 0.0
          %1557 = vmatpush.msra.mxu0 0.0
          %1558 = vmatpush.msra.mxu0 0.0
          %1559 = vmatpush.msra.mxu0 0.0
          %1560 = vmatpush.msra.mxu0 0.0
          %1561 = vmatpush.msra.mxu0 0.0
          %1562 = vmatpush.msra.mxu0 0.0
          %1563 = vmatpush.msra.mxu0 0.0
          %1564 = vmatpush.msra.mxu0 %v1539
          %1565 = vmatpush.msra.mxu0 %v1538
          %1566 = vmatmul.f32.gmra.mxu0 %v1545
          %v1567 = vpop.f32.mrf.mxu0
          %v1568 = vadd.f32 %v1542, %v1567
          %1569 = vmatmul.f32.gmra.mxu0 %v1548
          %v1570 = vpop.f32.mrf.mxu0
          %v1571 = vadd.f32 %v1542, %v1570
          %1572 = vdwg.mxu0
          %v1573 = vxor.u32 %v1568, 2147483648
          %v1574 = vxor.u32 %v1571, 2147483648
          %v1575 = vmul.f32 %v1573, 1.442695
          %v1576 = vpow.pop %v1575
          %v1577 = vmul.f32 %v1574, 1.442695
          %v1578 = vpow.pop %v1577
          %v1579 = vadd.f32 %v1576, 1.0
          %v1580 = vadd.f32 %v1578, 1.0
          %v1581 = vrcp.pop %v1579
          %v1582 = vmul.f32 %v1579, %v1581
          %v1583 = vsub.f32 1.0, %v1582
          %v1584 = vmul.f32 %v1581, %v1583
          %v1585 = vadd.f32 %v1581, %v1584
          %vm1586 = vweird.f32 %v1579
          %vm1587 = vweird.f32 %v1581
          %vm1588 = vmor %vm1586, %vm1587
          %v1589 = vsel %vm1588, %v1581, %v1585
          %v1590 = vand.u32 2147483647, %v1579
          %vm1591 = vcmp.eq.f32.partialorder %v1590, 8.507059e+37
          %v1592 = vand.u32 %v1579, 2147483648
          %v1593 = vor.u32 1.1754944e-38, %v1592
          %v1594 = vsel %vm1591, %v1593, %v1589
          %v1595 = vmul.f32 1.0, %v1594
          %v1596 = vrcp.pop %v1580
          %v1597 = vmul.f32 %v1580, %v1596
          %v1598 = vsub.f32 1.0, %v1597
          %v1599 = vmul.f32 %v1596, %v1598
          %v1600 = vadd.f32 %v1596, %v1599
          %vm1601 = vweird.f32 %v1580
          %vm1602 = vweird.f32 %v1596
          %vm1603 = vmor %vm1601, %vm1602
          %v1604 = vsel %vm1603, %v1596, %v1600
          %v1605 = vand.u32 2147483647, %v1580
          %vm1606 = vcmp.eq.f32.partialorder %v1605, 8.507059e+37
          %v1607 = vand.u32 %v1580, 2147483648
          %v1608 = vor.u32 1.1754944e-38, %v1607
          %v1609 = vsel %vm1606, %v1608, %v1604
          %v1610 = vmul.f32 1.0, %v1609
          %v1611 = vmul.f32 %v1534, %v1595
          %v1612 = vmul.f32 %v1535, %v1610
          %1613 = vst.msk [vmem:[%s594] sm:$0xff] %vm1492, %v1611
          %1614 = vst.msk [vmem:[%s594 + $0x8] sm:$0xff] %vm1492, %v1612
        $region72: #{attention_pair_bias.5} parent=63 // pred_fallthru
          _
        %s1615 = sand.u32 %s343, 1
        %s1616 = scalar_lea.sflag [#allocation6], %s1615
        %s1617 = sand.u32 %s343, 1
        %s1618 = smul.addr %s1617, 16
        %s1619 = scalar_lea.vmem [#allocation5], %s1618
        // Predicated region
        $region73: #{attention_pair_bias.5} parent=63 // pred_check
          %p1620 = pneg %p353
        $region74: #{attention_pair_bias.5} parent=63 // pred_check_branch
          %1622 = sbr.rel (%p1620) target = $region76
        $region75: #{attention_pair_bias.5} parent=63 // pred_region
          %s1623 = smul.u32 2, %s31
          %1625 = vsyncadd %s1616, 0
          %s1626 = smul.addr %s30, 2
          %s1627 = sadd.s32 %s1623, %s1626
          %s1628 = smul.addr %s1627, 8
          %s1629 = scalar_lea.hbm %s11, %s1628
          %s1630 = sshll.u32 %s1619, 4
          %s1631 = int_to_ptr.vmem [resolvable:$true] %s1630
          %s1632 = sshll.u32 %s1629, 4
          %s1633 = int_to_ptr.hbm [resolvable:$true] %s1632
          %1638 = dma.vmem_to_hbm [thread:$0]  %s1631, 256, %s1633, %s1616, 128, 128, 8
        $region76: #{attention_pair_bias.5} parent=63 // pred_fallthru
          _
      $region64: #{attention_pair_bias.5} parent=5 // pred_fallthru
        _
      %p1639 = scmp.le.s32.totalorder 2, %s20
      // Predicated region
      $region77: #{attention_pair_bias.5} parent=5 // pred_check
        %p1640 = pneg %p1639
      $region78: #{attention_pair_bias.5} parent=5 // pred_check_branch
        %1642 = sbr.rel (%p1640) target = $region80
      $region79: #{attention_pair_bias.5} parent=5 // pred_region
        %s1643 = ssub.s32 %s20, 2
        // Predicated region
        $region81: #{attention_pair_bias.5} parent=79 // pred_check
          %p1644 = pneg %p359
        $region82: #{attention_pair_bias.5} parent=79 // pred_check_branch
          %1646 = sbr.rel (%p1644) target = $region84
        $region83: #{attention_pair_bias.5} parent=79 // pred_region
          %s1647 = sand.u32 %s344, 1
          %s1648 = scalar_lea.sflag [#allocation6], %s1647
          %s1649 = sand.u32 %s344, 1
          %s1650 = smul.addr %s1649, 16
          %s1651 = scalar_lea.vmem [#allocation5], %s1650
          %1653 = dma.done %s1648, 256
        $region84: #{attention_pair_bias.5} parent=79 // pred_fallthru
          _
      $region80: #{attention_pair_bias.5} parent=5 // pred_fallthru
        _
    $region6: #{attention_pair_bias.5} parent=1 // loop_footer
      %s24 = sadd.s32 1, %s20
    $region7: #{attention_pair_bias.5} parent=1 // loop_footer_branch
      %19 = sbr.rel target = $region3
    $region8: #{attention_pair_bias.5} parent=1 // loop_exit
      _
    %1654 = vsyncpa [#allocation6], 1
    %s1655 = scalar_lea.sflag [#allocation6], 1
    %1656 = vsyncpa %s1655, 1

</llo_original>
